<compile_context>
chip_gen: v5e
topology: v5e:2x2
jax: 0.10.0
libtpu: 0.0.40
codegen_flags: <defaults>
</compile_context>

<pallas_src>
import functools

import jax
import jax.numpy as jnp
from jax.experimental import pallas as pl
from jax.experimental.pallas import tpu as pltpu

_VMEM_LIMIT = 8 * 1024 * 1024


def _round_up(x, m):
    return ((x + m - 1) // m) * m


def _pick_bt(batch, hw, lane_budget=1024):
    """Largest batch tile BT dividing `batch` with BT*hw <= lane_budget,
    preferring a grid of >= 2 steps (v7x has two TensorCores)."""
    divs = [d for d in range(1, batch + 1) if batch % d == 0]
    fits = [d for d in divs if d * hw <= lane_budget] or [1]
    multi = [d for d in fits if batch // d >= 2]
    return max(multi) if multi else max(fits)


def _conv_out_dims(h, w, k, pad):
    hc, wc = h + 2 * pad - k + 1, w + 2 * pad - k + 1
    assert hc % 2 == 0 and wc % 2 == 0, "pool parity split needs even conv dims"
    return hc // 2, wc // 2


# --------------------------- im2col (XLA HLO side) ---------------------------

def _build_patches(x, k, pad, bt, *, pos_major=False, btp=None):
    """im2col in pool-parity order, batch-tiled and lane-padded.

    Returns (patches, masks, lp):
      patches: (B//bt, Kp, 4*lp) bf16.  Parity q = ry*2+rx (conv position
               (2yo+ry, 2xo+rx)) occupies lanes [q*lp, (q+1)*lp).  Within a
               parity the lane index is n*Ho*Wo + yo*Wo + xo (batch-major) or
               (yo*Wo+xo)*btp + n when pos_major (head-fused block).
      masks:   (2, lp) f32.  Row 0 zeroes xo == 0 lanes, row 1 zeroes yo == 0
               lanes (left / top pool borders, also kills cross-image wrap of
               the rolls).
    """
    x = x.astype(jnp.bfloat16)
    if pad:
        x = jnp.pad(x, ((0, 0), (0, 0), (pad, pad), (pad, pad)))
    b, c, h, w = x.shape
    hc, wc = h - k + 1, w - k + 1
    ho, wo = hc // 2, wc // 2
    hwo = ho * wo
    kk = c * k * k
    g = b // bt

    taps = [x[:, :, dy:dy + hc, dx:dx + wc]
            for dy in range(k) for dx in range(k)]            # each (B, C, Hc, Wc)
    cols = jnp.stack(taps, axis=2).reshape(b, kk, hc, wc)     # kappa = ci*k*k + dy*k + dx
    cols = cols.reshape(g, bt, kk, ho, 2, wo, 2)              # (G, n, K, yo, ry, xo, rx)

    if pos_major:
        assert btp is not None
        cols = cols.transpose(0, 2, 4, 6, 3, 5, 1)            # (G, K, ry, rx, yo, xo, n)
        cols = jnp.pad(cols, ((0, 0),) * 6 + ((0, btp - bt),))
        lp = hwo * btp
        cols = cols.reshape(g, kk, 4, lp)
        s = jnp.arange(lp, dtype=jnp.int32) // btp
        xo_l, yo_l = s % wo, s // wo
    else:
        cols = cols.transpose(0, 2, 4, 6, 1, 3, 5)            # (G, K, ry, rx, n, yo, xo)
        lp = _round_up(max(bt * hwo, 128), 128)
        cols = cols.reshape(g, kk, 4, bt * hwo)
        cols = jnp.pad(cols, ((0, 0), (0, 0), (0, 0), (0, lp - bt * hwo)))
        lane = jnp.arange(lp, dtype=jnp.int32)
        pos = lane % hwo
        valid = lane < bt * hwo
        xo_l = jnp.where(valid, pos % wo, 0)
        yo_l = jnp.where(valid, pos // wo, 0)

    kp = _round_up(kk, 8)
    if kp != kk:
        cols = jnp.pad(cols, ((0, 0), (0, kp - kk), (0, 0), (0, 0)))
    patches = cols.reshape(g, kp, 4 * lp)

    masks = jnp.stack([(xo_l != 0), (yo_l != 0)], axis=0).astype(jnp.float32)
    return patches, masks, lp


# ------------------------------ kernel bodies --------------------------------

def _conv_pool(p, w, bias, xm, ym, lp, sx, sy):
    """Conv (single parity-merged MXU matmul) + bias + ReLU + MaxPool(3,2,1)."""
    z = jnp.dot(w, p, preferred_element_type=jnp.float32)     # (Cout, 4*lp) f32
    z = jnp.maximum(z + bias, 0.0)
    a, b = z[:, 0 * lp:1 * lp], z[:, 1 * lp:2 * lp]           # (2yo,2xo), (2yo,2xo+1)
    c, d = z[:, 2 * lp:3 * lp], z[:, 3 * lp:4 * lp]           # (2yo+1,2xo), (2yo+1,2xo+1)
    # ReLU output >= 0, so the zero-masked rolled taps are equivalent to the
    # -inf padding PyTorch uses for MaxPool2d(padding=1).
    row0 = jnp.maximum(jnp.maximum(a, b), pltpu.roll(b, sx, axis=1) * xm)
    row1 = jnp.maximum(jnp.maximum(c, d), pltpu.roll(d, sx, axis=1) * xm)
    return jnp.maximum(jnp.maximum(row0, row1), pltpu.roll(row1, sy, axis=1) * ym)


def _conv_block_kernel(p_ref, w_ref, b_ref, m_ref, o_ref, *, lp, sx, sy):
    pooled = _conv_pool(p_ref[0], w_ref[...], b_ref[...],
                        m_ref[0:1, :], m_ref[1:2, :], lp, sx, sy)
    o_ref[0] = pooled.astype(o_ref.dtype)                     # bf16 lane-dense store


def _conv_block_head_kernel(p_ref, w_ref, b_ref, m_ref,
                            w1_ref, b1_ref, w2_ref, b2_ref, w3_ref, b3_ref,
                            o_ref, *, lp, sx, sy, btp, n_taps):
    pooled = _conv_pool(p_ref[0], w_ref[...], b_ref[...],
                        m_ref[0:1, :], m_ref[1:2, :], lp, sx, sy)
    pooled = pooled.astype(jnp.bfloat16)          # (32, n_taps*btp), lane = s*btp + n
    # dense1: flatten feature index is f = c*n_taps + s (PyTorch channel-major
    # flatten).  Contract the channel dim on the MXU and sum the n_taps spatial
    # slabs (lane-aligned slices), which avoids any in-kernel transpose.
    h1 = jnp.dot(w1_ref[0], pooled[:, 0:btp], preferred_element_type=jnp.float32)
    for s in range(1, n_taps):
        h1 = h1 + jnp.dot(w1_ref[s], pooled[:, s * btp:(s + 1) * btp],
                          preferred_element_type=jnp.float32)
    h1 = jnp.maximum(h1 + b1_ref[...], 0.0).astype(jnp.bfloat16)         # (32, btp)
    h2 = jnp.dot(w2_ref[...], h1, preferred_element_type=jnp.float32)
    h2 = jnp.maximum(h2 + b2_ref[...], 0.0).astype(jnp.bfloat16)         # (8, btp)
    y = jnp.dot(w3_ref[...], h2, preferred_element_type=jnp.float32) + b3_ref[...]
    o_ref[0] = y                                                          # (1, btp)


# ------------------------------ block wrappers -------------------------------

def conv_block(x, w, b, pad):
    """Conv2d(stride=1) + ReLU + MaxPool2d(3,2,1) as one pallas_call."""
    bsz, cin, h, wdim = x.shape
    cout, _, k, _ = w.shape
    ho, wo = _conv_out_dims(h, wdim, k, pad)
    bt = _pick_bt(bsz, ho * wo)
    g = bsz // bt
    patches, masks, lp = _build_patches(x, k, pad, bt)
    kp = patches.shape[1]

    w2 = jnp.pad(w.reshape(cout, -1),
                 ((0, 0), (0, kp - cin * k * k))).astype(jnp.bfloat16)
    b2 = b.reshape(cout, 1).astype(jnp.float32)

    out = pl.pallas_call(
        functools.partial(_conv_block_kernel, lp=lp, sx=1, sy=wo),
        out_shape=jax.ShapeDtypeStruct((g, cout, lp), jnp.bfloat16),
        grid=(g,),
        in_specs=[
            pl.BlockSpec((1, kp, 4 * lp), lambda i: (i, 0, 0)),
            pl.BlockSpec((cout, kp), lambda i: (0, 0)),
            pl.BlockSpec((cout, 1), lambda i: (0, 0)),
            pl.BlockSpec((2, lp), lambda i: (0, 0)),
        ],
        out_specs=pl.BlockSpec((1, cout, lp), lambda i: (i, 0, 0)),
        compiler_params=pltpu.CompilerParams(
            dimension_semantics=("parallel",),
            vmem_limit_bytes=_VMEM_LIMIT,
        ),
    )(patches, w2, b2, masks)

    out = out[:, :, :bt * ho * wo].reshape(g, cout, bt, ho, wo)
    return out.transpose(0, 2, 1, 3, 4).reshape(bsz, cout, ho, wo)


def conv_block_with_head(x, w, b, pad, hp):
    """Conv block 3 fused with Flatten + dense1/ReLU + dense2/ReLU + output."""
    bsz, cin, h, wdim = x.shape
    cout, _, k, _ = w.shape
    ho, wo = _conv_out_dims(h, wdim, k, pad)
    hwo = ho * wo
    assert cout * hwo == 128, "flatten width must match dense1 fan-in"
    bt = _pick_bt(bsz, hwo)
    btp = _round_up(max(bt, 128), 128)          # lane-dense batch-in-lane layout
    g = bsz // bt
    patches, masks, lp = _build_patches(x, k, pad, bt, pos_major=True, btp=btp)
    kp = patches.shape[1]

    w2 = jnp.pad(w.reshape(cout, -1),
                 ((0, 0), (0, kp - cin * k * k))).astype(jnp.bfloat16)
    b2 = b.reshape(cout, 1).astype(jnp.float32)

    # dense1 weight regrouped per spatial tap: (hwo, 32_out, Cout_chan); f = c*hwo + s.
    w1 = hp["dense1_w"].reshape(32, cout, hwo).transpose(2, 0, 1).astype(jnp.bfloat16)
    b1 = hp["dense1_b"].reshape(32, 1).astype(jnp.float32)
    w2d = hp["dense2_w"].astype(jnp.bfloat16)                 # (8, 32)
    b2d = hp["dense2_b"].reshape(8, 1).astype(jnp.float32)
    w3d = hp["out_w"].astype(jnp.bfloat16)                    # (1, 8)
    b3d = hp["out_b"].reshape(1, 1).astype(jnp.float32)

    out = pl.pallas_call(
        functools.partial(_conv_block_head_kernel,
                          lp=lp, sx=btp, sy=wo * btp, btp=btp, n_taps=hwo),
        out_shape=jax.ShapeDtypeStruct((g, 1, btp), jnp.float32),
        grid=(g,),
        in_specs=[
            pl.BlockSpec((1, kp, 4 * lp), lambda i: (i, 0, 0)),
            pl.BlockSpec((cout, kp), lambda i: (0, 0)),
            pl.BlockSpec((cout, 1), lambda i: (0, 0)),
            pl.BlockSpec((2, lp), lambda i: (0, 0)),
            pl.BlockSpec((hwo, 32, cout), lambda i: (0, 0, 0)),
            pl.BlockSpec((32, 1), lambda i: (0, 0)),
            pl.BlockSpec((8, 32), lambda i: (0, 0)),
            pl.BlockSpec((8, 1), lambda i: (0, 0)),
            pl.BlockSpec((1, 8), lambda i: (0, 0)),
            pl.BlockSpec((1, 1), lambda i: (0, 0)),
        ],
        out_specs=pl.BlockSpec((1, 1, btp), lambda i: (i, 0, 0)),
        compiler_params=pltpu.CompilerParams(
            dimension_semantics=("parallel",),
            vmem_limit_bytes=_VMEM_LIMIT,
        ),
    )(patches, w2, b2, masks, w1, b1, w2d, b2d, w3d, b3d)

    return out[:, 0, :bt].reshape(bsz, 1)


# ------------------------------- model glue ----------------------------------

def init_params(key):
    # PyTorch-style uniform(-1/sqrt(fan_in), 1/sqrt(fan_in)) init.
    def uniform(k, shape, fan_in):
        bound = 1.0 / (fan_in ** 0.5)
        return jax.random.uniform(k, shape, jnp.float32, -bound, bound)

    keys = jax.random.split(key, 12)
    p = {}
    p["conv1_w"] = uniform(keys[0], (8, 3, 5, 5), 3 * 5 * 5)
    p["conv1_b"] = uniform(keys[1], (8,), 3 * 5 * 5)
    p["conv2_w"] = uniform(keys[2], (16, 8, 5, 5), 8 * 5 * 5)
    p["conv2_b"] = uniform(keys[3], (16,), 8 * 5 * 5)
    p["conv3_w"] = uniform(keys[4], (32, 16, 3, 3), 16 * 3 * 3)
    p["conv3_b"] = uniform(keys[5], (32,), 16 * 3 * 3)
    p["dense1_w"] = uniform(keys[6], (32, 128), 128)   # PyTorch Linear: (out, in)
    p["dense1_b"] = uniform(keys[7], (32,), 128)
    p["dense2_w"] = uniform(keys[8], (8, 32), 32)
    p["dense2_b"] = uniform(keys[9], (8,), 32)
    p["out_w"] = uniform(keys[10], (1, 8), 8)
    p["out_b"] = uniform(keys[11], (1,), 8)
    return p


def convnet_forward(params, x):
    # conv_block_1: Conv2d(3, 8, 5, padding='same' -> pad=2) + ReLU + MaxPool(3,2,1)
    x = conv_block(x, params["conv1_w"], params["conv1_b"], pad=2)   # (B, 8, 16, 16)
    # conv_block_2: Conv2d(8, 16, 5, 'valid') + ReLU + MaxPool(3,2,1)
    x = conv_block(x, params["conv2_w"], params["conv2_b"], pad=0)   # (B, 16, 6, 6)
    # conv_block_3 + Flatten + dense1/ReLU + dense2/ReLU + output in one kernel.
    # TODO(synk): nn.Dropout(0.1) is identity at inference; no random masking.
    return conv_block_with_head(x, params["conv3_w"], params["conv3_b"],
                                pad=0, hp=params)                    # (B, 1)


if __name__ == "__main__":
    key = jax.random.PRNGKey(0)
    k_param, k_x = jax.random.split(key)
    params = init_params(k_param)
    # Input must be 3x32x32 (the flatten width of 128 is hard-coded by the module).
    x = jax.random.normal(k_x, (2, 3, 32, 32), jnp.float32)
    y = jax.jit(convnet_forward)(params, x)
    y = jax.block_until_ready(y)
    assert y.shape == (2, 1) and y.dtype == jnp.float32
    print("KERNEL_OK")
</pallas_src>

<mosaic_0001>
module attributes {stable_mosaic.version = 11 : i64} {
  func.func @_conv_block_kernel(%arg0: i32, %arg1: memref<1x80x1024xbf16, #tpu.memory_space<vmem>>, %arg2: memref<8x80xbf16, #tpu.memory_space<vmem>>, %arg3: memref<8x1xf32, #tpu.memory_space<vmem>>, %arg4: memref<2x256xf32, #tpu.memory_space<vmem>>, %arg5: memref<1x8x256xbf16, #tpu.memory_space<vmem>>) attributes {dimension_semantics = [#tpu.dimension_semantics<parallel>], iteration_bounds = array<i64: 2>, scalar_prefetch = 0 : i64, scratch_operands = 0 : i64, tpu.core_type = #tpu.core_type<tc>, window_params = [{transform_indices = @transform_0, window_bounds = array<i64: 1, 80, 1024>}, {pipeline_mode = #tpu.pipeline_mode<synchronous>, transform_indices = @transform_1, window_bounds = array<i64: 8, 80>}, {pipeline_mode = #tpu.pipeline_mode<synchronous>, transform_indices = @transform_2, window_bounds = array<i64: 8, 1>}, {pipeline_mode = #tpu.pipeline_mode<synchronous>, transform_indices = @transform_3, window_bounds = array<i64: 2, 256>}, {transform_indices = @transform_4, window_bounds = array<i64: 1, 8, 256>}]} {
    %c0 = arith.constant 0 : index
    %c0_0 = arith.constant 0 : index
    %c0_1 = arith.constant 0 : index
    %0 = vector.load %arg1[%c0, %c0_0, %c0_1] : memref<1x80x1024xbf16, #tpu.memory_space<vmem>>, vector<1x80x1024xbf16>
    %1 = vector.shape_cast %0 : vector<1x80x1024xbf16> to vector<80x1024xbf16>
    %c0_2 = arith.constant 0 : index
    %c0_3 = arith.constant 0 : index
    %2 = vector.load %arg2[%c0_2, %c0_3] : memref<8x80xbf16, #tpu.memory_space<vmem>>, vector<8x80xbf16>
    %c0_4 = arith.constant 0 : index
    %c0_5 = arith.constant 0 : index
    %3 = vector.load %arg3[%c0_4, %c0_5] : memref<8x1xf32, #tpu.memory_space<vmem>>, vector<8x1xf32>
    %c0_6 = arith.constant 0 : index
    %c0_7 = arith.constant 0 : index
    %4 = vector.load %arg4[%c0_6, %c0_7] : memref<2x256xf32, #tpu.memory_space<vmem>>, vector<1x256xf32>
    %c1 = arith.constant 1 : index
    %c0_8 = arith.constant 0 : index
    %5 = vector.load %arg4[%c1, %c0_8] : memref<2x256xf32, #tpu.memory_space<vmem>>, vector<1x256xf32>
    %cst = arith.constant dense<0.000000e+00> : vector<8x1024xf32>
    %6 = tpu.matmul %2, %1, %cst {dimension_numbers = #tpu.dot_dimension_numbers<[1], [0], [0], [1], [0, 0, 1, 1], [], []>} : vector<8x80xbf16>, vector<80x1024xbf16>, vector<8x1024xf32> -> vector<8x1024xf32>
    %7 = vector.broadcast %3 : vector<8x1xf32> to vector<8x1024xf32>
    %8 = arith.addf %6, %7 : vector<8x1024xf32>
    %cst_9 = arith.constant 0.000000e+00 : f32
    %9 = vector.broadcast %cst_9 : f32 to vector<8x1024xf32>
    %10 = arith.maximumf %8, %9 : vector<8x1024xf32>
    %11 = vector.extract_strided_slice %10 {offsets = [0, 0], sizes = [8, 256], strides = [1, 1]} : vector<8x1024xf32> to vector<8x256xf32>
    %12 = vector.extract_strided_slice %10 {offsets = [0, 256], sizes = [8, 256], strides = [1, 1]} : vector<8x1024xf32> to vector<8x256xf32>
    %13 = vector.extract_strided_slice %10 {offsets = [0, 512], sizes = [8, 256], strides = [1, 1]} : vector<8x1024xf32> to vector<8x256xf32>
    %14 = vector.extract_strided_slice %10 {offsets = [0, 768], sizes = [8, 256], strides = [1, 1]} : vector<8x1024xf32> to vector<8x256xf32>
    %15 = arith.maximumf %11, %12 : vector<8x256xf32>
    %c1_i32 = arith.constant 1 : i32
    %16 = tpu.dynamic_rotate %12 by %c1_i32 dim 1 : vector<8x256xf32>, i32 -> vector<8x256xf32>
    %17 = vector.broadcast %4 : vector<1x256xf32> to vector<8x256xf32>
    %18 = arith.mulf %16, %17 : vector<8x256xf32>
    %19 = arith.maximumf %15, %18 : vector<8x256xf32>
    %20 = arith.maximumf %13, %14 : vector<8x256xf32>
    %c1_i32_10 = arith.constant 1 : i32
    %21 = tpu.dynamic_rotate %14 by %c1_i32_10 dim 1 : vector<8x256xf32>, i32 -> vector<8x256xf32>
    %22 = vector.broadcast %4 : vector<1x256xf32> to vector<8x256xf32>
    %23 = arith.mulf %21, %22 : vector<8x256xf32>
    %24 = arith.maximumf %20, %23 : vector<8x256xf32>
    %25 = arith.maximumf %19, %24 : vector<8x256xf32>
    %c16_i32 = arith.constant 16 : i32
    %26 = tpu.dynamic_rotate %24 by %c16_i32 dim 1 : vector<8x256xf32>, i32 -> vector<8x256xf32>
    %27 = vector.broadcast %5 : vector<1x256xf32> to vector<8x256xf32>
    %28 = arith.mulf %26, %27 : vector<8x256xf32>
    %29 = arith.maximumf %25, %28 : vector<8x256xf32>
    %30 = arith.truncf %29 : vector<8x256xf32> to vector<8x256xbf16>
    %c0_11 = arith.constant 0 : index
    %c0_12 = arith.constant 0 : index
    %c0_13 = arith.constant 0 : index
    %31 = vector.load %arg5[%c0_11, %c0_12, %c0_13] : memref<1x8x256xbf16, #tpu.memory_space<vmem>>, vector<1x8x256xbf16>
    %32 = vector.shape_cast %31 : vector<1x8x256xbf16> to vector<8x256xbf16>
    %33 = vector.shape_cast %30 : vector<8x256xbf16> to vector<1x8x256xbf16>
    tpu.vector_store %arg5[%c0_11, %c0_12, %c0_13], %33 {strides = array<i32>} : memref<1x8x256xbf16, #tpu.memory_space<vmem>>, vector<1x8x256xbf16>,
    return
  }
  func.func @transform_0(%arg0: i32) -> (i32, i32, i32) {
    %c0_i32 = arith.constant 0 : i32
    %c0_i32_0 = arith.constant 0 : i32
    %c0_i32_1 = arith.constant 0 : i32
    return %arg0, %c0_i32, %c0_i32_0 : i32, i32, i32
  }
  func.func @transform_1(%arg0: i32) -> (i32, i32) {
    %c0_i32 = arith.constant 0 : i32
    %c0_i32_0 = arith.constant 0 : i32
    %c0_i32_1 = arith.constant 0 : i32
    return %c0_i32, %c0_i32_0 : i32, i32
  }
  func.func @transform_2(%arg0: i32) -> (i32, i32) {
    %c0_i32 = arith.constant 0 : i32
    %c0_i32_0 = arith.constant 0 : i32
    %c0_i32_1 = arith.constant 0 : i32
    return %c0_i32, %c0_i32_0 : i32, i32
  }
  func.func @transform_3(%arg0: i32) -> (i32, i32) {
    %c0_i32 = arith.constant 0 : i32
    %c0_i32_0 = arith.constant 0 : i32
    %c0_i32_1 = arith.constant 0 : i32
    return %c0_i32, %c0_i32_0 : i32, i32
  }
  func.func @transform_4(%arg0: i32) -> (i32, i32, i32) {
    %c0_i32 = arith.constant 0 : i32
    %c0_i32_0 = arith.constant 0 : i32
    %c0_i32_1 = arith.constant 0 : i32
    return %arg0, %c0_i32, %c0_i32_0 : i32, i32, i32
  }
}

module attributes {stable_mosaic.version = 11 : i64} {
  func.func @_conv_block_kernel(%arg0: i32, %arg1: memref<1x200x512xbf16, #tpu.memory_space<vmem>>, %arg2: memref<16x200xbf16, #tpu.memory_space<vmem>>, %arg3: memref<16x1xf32, #tpu.memory_space<vmem>>, %arg4: memref<2x128xf32, #tpu.memory_space<vmem>>, %arg5: memref<1x16x128xbf16, #tpu.memory_space<vmem>>) attributes {dimension_semantics = [#tpu.dimension_semantics<parallel>], iteration_bounds = array<i64: 2>, scalar_prefetch = 0 : i64, scratch_operands = 0 : i64, tpu.core_type = #tpu.core_type<tc>, window_params = [{transform_indices = @transform_0, window_bounds = array<i64: 1, 200, 512>}, {pipeline_mode = #tpu.pipeline_mode<synchronous>, transform_indices = @transform_1, window_bounds = array<i64: 16, 200>}, {pipeline_mode = #tpu.pipeline_mode<synchronous>, transform_indices = @transform_2, window_bounds = array<i64: 16, 1>}, {pipeline_mode = #tpu.pipeline_mode<synchronous>, transform_indices = @transform_3, window_bounds = array<i64: 2, 128>}, {transform_indices = @transform_4, window_bounds = array<i64: 1, 16, 128>}]} {
    %c0 = arith.constant 0 : index
    %c0_0 = arith.constant 0 : index
    %c0_1 = arith.constant 0 : index
    %0 = vector.load %arg1[%c0, %c0_0, %c0_1] : memref<1x200x512xbf16, #tpu.memory_space<vmem>>, vector<1x200x512xbf16>
    %1 = vector.shape_cast %0 : vector<1x200x512xbf16> to vector<200x512xbf16>
    %c0_2 = arith.constant 0 : index
    %c0_3 = arith.constant 0 : index
    %2 = vector.load %arg2[%c0_2, %c0_3] : memref<16x200xbf16, #tpu.memory_space<vmem>>, vector<16x200xbf16>
    %c0_4 = arith.constant 0 : index
    %c0_5 = arith.constant 0 : index
    %3 = vector.load %arg3[%c0_4, %c0_5] : memref<16x1xf32, #tpu.memory_space<vmem>>, vector<16x1xf32>
    %c0_6 = arith.constant 0 : index
    %c0_7 = arith.constant 0 : index
    %4 = vector.load %arg4[%c0_6, %c0_7] : memref<2x128xf32, #tpu.memory_space<vmem>>, vector<1x128xf32>
    %c1 = arith.constant 1 : index
    %c0_8 = arith.constant 0 : index
    %5 = vector.load %arg4[%c1, %c0_8] : memref<2x128xf32, #tpu.memory_space<vmem>>, vector<1x128xf32>
    %cst = arith.constant dense<0.000000e+00> : vector<16x512xf32>
    %6 = tpu.matmul %2, %1, %cst {dimension_numbers = #tpu.dot_dimension_numbers<[1], [0], [0], [1], [0, 0, 1, 1], [], []>} : vector<16x200xbf16>, vector<200x512xbf16>, vector<16x512xf32> -> vector<16x512xf32>
    %7 = vector.broadcast %3 : vector<16x1xf32> to vector<16x512xf32>
    %8 = arith.addf %6, %7 : vector<16x512xf32>
    %cst_9 = arith.constant 0.000000e+00 : f32
    %9 = vector.broadcast %cst_9 : f32 to vector<16x512xf32>
    %10 = arith.maximumf %8, %9 : vector<16x512xf32>
    %11 = vector.extract_strided_slice %10 {offsets = [0, 0], sizes = [16, 128], strides = [1, 1]} : vector<16x512xf32> to vector<16x128xf32>
    %12 = vector.extract_strided_slice %10 {offsets = [0, 128], sizes = [16, 128], strides = [1, 1]} : vector<16x512xf32> to vector<16x128xf32>
    %13 = vector.extract_strided_slice %10 {offsets = [0, 256], sizes = [16, 128], strides = [1, 1]} : vector<16x512xf32> to vector<16x128xf32>
    %14 = vector.extract_strided_slice %10 {offsets = [0, 384], sizes = [16, 128], strides = [1, 1]} : vector<16x512xf32> to vector<16x128xf32>
    %15 = arith.maximumf %11, %12 : vector<16x128xf32>
    %c1_i32 = arith.constant 1 : i32
    %16 = tpu.dynamic_rotate %12 by %c1_i32 dim 1 : vector<16x128xf32>, i32 -> vector<16x128xf32>
    %17 = vector.broadcast %4 : vector<1x128xf32> to vector<16x128xf32>
    %18 = arith.mulf %16, %17 : vector<16x128xf32>
    %19 = arith.maximumf %15, %18 : vector<16x128xf32>
    %20 = arith.maximumf %13, %14 : vector<16x128xf32>
    %c1_i32_10 = arith.constant 1 : i32
    %21 = tpu.dynamic_rotate %14 by %c1_i32_10 dim 1 : vector<16x128xf32>, i32 -> vector<16x128xf32>
    %22 = vector.broadcast %4 : vector<1x128xf32> to vector<16x128xf32>
    %23 = arith.mulf %21, %22 : vector<16x128xf32>
    %24 = arith.maximumf %20, %23 : vector<16x128xf32>
    %25 = arith.maximumf %19, %24 : vector<16x128xf32>
    %c6_i32 = arith.constant 6 : i32
    %26 = tpu.dynamic_rotate %24 by %c6_i32 dim 1 : vector<16x128xf32>, i32 -> vector<16x128xf32>
    %27 = vector.broadcast %5 : vector<1x128xf32> to vector<16x128xf32>
    %28 = arith.mulf %26, %27 : vector<16x128xf32>
    %29 = arith.maximumf %25, %28 : vector<16x128xf32>
    %30 = arith.truncf %29 : vector<16x128xf32> to vector<16x128xbf16>
    %c0_11 = arith.constant 0 : index
    %c0_12 = arith.constant 0 : index
    %c0_13 = arith.constant 0 : index
    %31 = vector.load %arg5[%c0_11, %c0_12, %c0_13] : memref<1x16x128xbf16, #tpu.memory_space<vmem>>, vector<1x16x128xbf16>
    %32 = vector.shape_cast %31 : vector<1x16x128xbf16> to vector<16x128xbf16>
    %33 = vector.shape_cast %30 : vector<16x128xbf16> to vector<1x16x128xbf16>
    tpu.vector_store %arg5[%c0_11, %c0_12, %c0_13], %33 {strides = array<i32>} : memref<1x16x128xbf16, #tpu.memory_space<vmem>>, vector<1x16x128xbf16>,
    return
  }
  func.func @transform_0(%arg0: i32) -> (i32, i32, i32) {
    %c0_i32 = arith.constant 0 : i32
    %c0_i32_0 = arith.constant 0 : i32
    %c0_i32_1 = arith.constant 0 : i32
    return %arg0, %c0_i32, %c0_i32_0 : i32, i32, i32
  }
  func.func @transform_1(%arg0: i32) -> (i32, i32) {
    %c0_i32 = arith.constant 0 : i32
    %c0_i32_0 = arith.constant 0 : i32
    %c0_i32_1 = arith.constant 0 : i32
    return %c0_i32, %c0_i32_0 : i32, i32
  }
  func.func @transform_2(%arg0: i32) -> (i32, i32) {
    %c0_i32 = arith.constant 0 : i32
    %c0_i32_0 = arith.constant 0 : i32
    %c0_i32_1 = arith.constant 0 : i32
    return %c0_i32, %c0_i32_0 : i32, i32
  }
  func.func @transform_3(%arg0: i32) -> (i32, i32) {
    %c0_i32 = arith.constant 0 : i32
    %c0_i32_0 = arith.constant 0 : i32
    %c0_i32_1 = arith.constant 0 : i32
    return %c0_i32, %c0_i32_0 : i32, i32
  }
  func.func @transform_4(%arg0: i32) -> (i32, i32, i32) {
    %c0_i32 = arith.constant 0 : i32
    %c0_i32_0 = arith.constant 0 : i32
    %c0_i32_1 = arith.constant 0 : i32
    return %arg0, %c0_i32, %c0_i32_0 : i32, i32, i32
  }
}

module attributes {stable_mosaic.version = 11 : i64} {
  func.func @_conv_block_head_kernel(%arg0: i32, %arg1: memref<1x144x2048xbf16, #tpu.memory_space<vmem>>, %arg2: memref<32x144xbf16, #tpu.memory_space<vmem>>, %arg3: memref<32x1xf32, #tpu.memory_space<vmem>>, %arg4: memref<2x512xf32, #tpu.memory_space<vmem>>, %arg5: memref<4x32x32xbf16, #tpu.memory_space<vmem>>, %arg6: memref<32x1xf32, #tpu.memory_space<vmem>>, %arg7: memref<8x32xbf16, #tpu.memory_space<vmem>>, %arg8: memref<8x1xf32, #tpu.memory_space<vmem>>, %arg9: memref<1x8xbf16, #tpu.memory_space<vmem>>, %arg10: memref<1x1xf32, #tpu.memory_space<vmem>>, %arg11: memref<1x1x128xf32, #tpu.memory_space<vmem>>) attributes {dimension_semantics = [#tpu.dimension_semantics<parallel>], iteration_bounds = array<i64: 2>, scalar_prefetch = 0 : i64, scratch_operands = 0 : i64, tpu.core_type = #tpu.core_type<tc>, window_params = [{transform_indices = @transform_0, window_bounds = array<i64: 1, 144, 2048>}, {pipeline_mode = #tpu.pipeline_mode<synchronous>, transform_indices = @transform_1, window_bounds = array<i64: 32, 144>}, {pipeline_mode = #tpu.pipeline_mode<synchronous>, transform_indices = @transform_2, window_bounds = array<i64: 32, 1>}, {pipeline_mode = #tpu.pipeline_mode<synchronous>, transform_indices = @transform_3, window_bounds = array<i64: 2, 512>}, {pipeline_mode = #tpu.pipeline_mode<synchronous>, transform_indices = @transform_4, window_bounds = array<i64: 4, 32, 32>}, {pipeline_mode = #tpu.pipeline_mode<synchronous>, transform_indices = @transform_5, window_bounds = array<i64: 32, 1>}, {pipeline_mode = #tpu.pipeline_mode<synchronous>, transform_indices = @transform_6, window_bounds = array<i64: 8, 32>}, {pipeline_mode = #tpu.pipeline_mode<synchronous>, transform_indices = @transform_7, window_bounds = array<i64: 8, 1>}, {pipeline_mode = #tpu.pipeline_mode<synchronous>, transform_indices = @transform_8, window_bounds = array<i64: 1, 8>}, {pipeline_mode = #tpu.pipeline_mode<synchronous>, transform_indices = @transform_9, window_bounds = array<i64: 1, 1>}, {transform_indices = @transform_10, window_bounds = array<i64: 1, 1, 128>}]} {
    %c0 = arith.constant 0 : index
    %c0_0 = arith.constant 0 : index
    %c0_1 = arith.constant 0 : index
    %0 = vector.load %arg1[%c0, %c0_0, %c0_1] : memref<1x144x2048xbf16, #tpu.memory_space<vmem>>, vector<1x144x2048xbf16>
    %1 = vector.shape_cast %0 : vector<1x144x2048xbf16> to vector<144x2048xbf16>
    %c0_2 = arith.constant 0 : index
    %c0_3 = arith.constant 0 : index
    %2 = vector.load %arg2[%c0_2, %c0_3] : memref<32x144xbf16, #tpu.memory_space<vmem>>, vector<32x144xbf16>
    %c0_4 = arith.constant 0 : index
    %c0_5 = arith.constant 0 : index
    %3 = vector.load %arg3[%c0_4, %c0_5] : memref<32x1xf32, #tpu.memory_space<vmem>>, vector<32x1xf32>
    %c0_6 = arith.constant 0 : index
    %c0_7 = arith.constant 0 : index
    %4 = vector.load %arg4[%c0_6, %c0_7] : memref<2x512xf32, #tpu.memory_space<vmem>>, vector<1x512xf32>
    %c1 = arith.constant 1 : index
    %c0_8 = arith.constant 0 : index
    %5 = vector.load %arg4[%c1, %c0_8] : memref<2x512xf32, #tpu.memory_space<vmem>>, vector<1x512xf32>
    %cst = arith.constant dense<0.000000e+00> : vector<32x2048xf32>
    %6 = tpu.matmul %2, %1, %cst {dimension_numbers = #tpu.dot_dimension_numbers<[1], [0], [0], [1], [0, 0, 1, 1], [], []>} : vector<32x144xbf16>, vector<144x2048xbf16>, vector<32x2048xf32> -> vector<32x2048xf32>
    %7 = vector.broadcast %3 : vector<32x1xf32> to vector<32x2048xf32>
    %8 = arith.addf %6, %7 : vector<32x2048xf32>
    %cst_9 = arith.constant 0.000000e+00 : f32
    %9 = vector.broadcast %cst_9 : f32 to vector<32x2048xf32>
    %10 = arith.maximumf %8, %9 : vector<32x2048xf32>
    %11 = vector.extract_strided_slice %10 {offsets = [0, 0], sizes = [32, 512], strides = [1, 1]} : vector<32x2048xf32> to vector<32x512xf32>
    %12 = vector.extract_strided_slice %10 {offsets = [0, 512], sizes = [32, 512], strides = [1, 1]} : vector<32x2048xf32> to vector<32x512xf32>
    %13 = vector.extract_strided_slice %10 {offsets = [0, 1024], sizes = [32, 512], strides = [1, 1]} : vector<32x2048xf32> to vector<32x512xf32>
    %14 = vector.extract_strided_slice %10 {offsets = [0, 1536], sizes = [32, 512], strides = [1, 1]} : vector<32x2048xf32> to vector<32x512xf32>
    %15 = arith.maximumf %11, %12 : vector<32x512xf32>
    %c128_i32 = arith.constant 128 : i32
    %16 = tpu.dynamic_rotate %12 by %c128_i32 dim 1 : vector<32x512xf32>, i32 -> vector<32x512xf32>
    %17 = vector.broadcast %4 : vector<1x512xf32> to vector<32x512xf32>
    %18 = arith.mulf %16, %17 : vector<32x512xf32>
    %19 = arith.maximumf %15, %18 : vector<32x512xf32>
    %20 = arith.maximumf %13, %14 : vector<32x512xf32>
    %c128_i32_10 = arith.constant 128 : i32
    %21 = tpu.dynamic_rotate %14 by %c128_i32_10 dim 1 : vector<32x512xf32>, i32 -> vector<32x512xf32>
    %22 = vector.broadcast %4 : vector<1x512xf32> to vector<32x512xf32>
    %23 = arith.mulf %21, %22 : vector<32x512xf32>
    %24 = arith.maximumf %20, %23 : vector<32x512xf32>
    %25 = arith.maximumf %19, %24 : vector<32x512xf32>
    %c256_i32 = arith.constant 256 : i32
    %26 = tpu.dynamic_rotate %24 by %c256_i32 dim 1 : vector<32x512xf32>, i32 -> vector<32x512xf32>
    %27 = vector.broadcast %5 : vector<1x512xf32> to vector<32x512xf32>
    %28 = arith.mulf %26, %27 : vector<32x512xf32>
    %29 = arith.maximumf %25, %28 : vector<32x512xf32>
    %30 = arith.truncf %29 : vector<32x512xf32> to vector<32x512xbf16>
    %c0_11 = arith.constant 0 : index
    %c0_12 = arith.constant 0 : index
    %c0_13 = arith.constant 0 : index
    %31 = vector.load %arg5[%c0_11, %c0_12, %c0_13] : memref<4x32x32xbf16, #tpu.memory_space<vmem>>, vector<1x32x32xbf16>
    %32 = vector.shape_cast %31 : vector<1x32x32xbf16> to vector<32x32xbf16>
    %33 = vector.extract_strided_slice %30 {offsets = [0, 0], sizes = [32, 128], strides = [1, 1]} : vector<32x512xbf16> to vector<32x128xbf16>
    %cst_14 = arith.constant dense<0.000000e+00> : vector<32x128xf32>
    %34 = tpu.matmul %32, %33, %cst_14 {dimension_numbers = #tpu.dot_dimension_numbers<[1], [0], [0], [1], [0, 0, 1, 1], [], []>} : vector<32x32xbf16>, vector<32x128xbf16>, vector<32x128xf32> -> vector<32x128xf32>
    %c1_15 = arith.constant 1 : index
    %c0_16 = arith.constant 0 : index
    %c0_17 = arith.constant 0 : index
    %35 = vector.load %arg5[%c1_15, %c0_16, %c0_17] : memref<4x32x32xbf16, #tpu.memory_space<vmem>>, vector<1x32x32xbf16>
    %36 = vector.shape_cast %35 : vector<1x32x32xbf16> to vector<32x32xbf16>
    %37 = vector.extract_strided_slice %30 {offsets = [0, 128], sizes = [32, 128], strides = [1, 1]} : vector<32x512xbf16> to vector<32x128xbf16>
    %cst_18 = arith.constant dense<0.000000e+00> : vector<32x128xf32>
    %38 = tpu.matmul %36, %37, %cst_18 {dimension_numbers = #tpu.dot_dimension_numbers<[1], [0], [0], [1], [0, 0, 1, 1], [], []>} : vector<32x32xbf16>, vector<32x128xbf16>, vector<32x128xf32> -> vector<32x128xf32>
    %39 = arith.addf %34, %38 : vector<32x128xf32>
    %c2 = arith.constant 2 : index
    %c0_19 = arith.constant 0 : index
    %c0_20 = arith.constant 0 : index
    %40 = vector.load %arg5[%c2, %c0_19, %c0_20] : memref<4x32x32xbf16, #tpu.memory_space<vmem>>, vector<1x32x32xbf16>
    %41 = vector.shape_cast %40 : vector<1x32x32xbf16> to vector<32x32xbf16>
    %42 = vector.extract_strided_slice %30 {offsets = [0, 256], sizes = [32, 128], strides = [1, 1]} : vector<32x512xbf16> to vector<32x128xbf16>
    %cst_21 = arith.constant dense<0.000000e+00> : vector<32x128xf32>
    %43 = tpu.matmul %41, %42, %cst_21 {dimension_numbers = #tpu.dot_dimension_numbers<[1], [0], [0], [1], [0, 0, 1, 1], [], []>} : vector<32x32xbf16>, vector<32x128xbf16>, vector<32x128xf32> -> vector<32x128xf32>
    %44 = arith.addf %39, %43 : vector<32x128xf32>
    %c3 = arith.constant 3 : index
    %c0_22 = arith.constant 0 : index
    %c0_23 = arith.constant 0 : index
    %45 = vector.load %arg5[%c3, %c0_22, %c0_23] : memref<4x32x32xbf16, #tpu.memory_space<vmem>>, vector<1x32x32xbf16>
    %46 = vector.shape_cast %45 : vector<1x32x32xbf16> to vector<32x32xbf16>
    %47 = vector.extract_strided_slice %30 {offsets = [0, 384], sizes = [32, 128], strides = [1, 1]} : vector<32x512xbf16> to vector<32x128xbf16>
    %cst_24 = arith.constant dense<0.000000e+00> : vector<32x128xf32>
    %48 = tpu.matmul %46, %47, %cst_24 {dimension_numbers = #tpu.dot_dimension_numbers<[1], [0], [0], [1], [0, 0, 1, 1], [], []>} : vector<32x32xbf16>, vector<32x128xbf16>, vector<32x128xf32> -> vector<32x128xf32>
    %49 = arith.addf %44, %48 : vector<32x128xf32>
    %c0_25 = arith.constant 0 : index
    %c0_26 = arith.constant 0 : index
    %50 = vector.load %arg6[%c0_25, %c0_26] : memref<32x1xf32, #tpu.memory_space<vmem>>, vector<32x1xf32>
    %51 = vector.broadcast %50 : vector<32x1xf32> to vector<32x128xf32>
    %52 = arith.addf %49, %51 : vector<32x128xf32>
    %cst_27 = arith.constant 0.000000e+00 : f32
    %53 = vector.broadcast %cst_27 : f32 to vector<32x128xf32>
    %54 = arith.maximumf %52, %53 : vector<32x128xf32>
    %55 = arith.truncf %54 : vector<32x128xf32> to vector<32x128xbf16>
    %c0_28 = arith.constant 0 : index
    %c0_29 = arith.constant 0 : index
    %56 = vector.load %arg7[%c0_28, %c0_29] : memref<8x32xbf16, #tpu.memory_space<vmem>>, vector<8x32xbf16>
    %cst_30 = arith.constant dense<0.000000e+00> : vector<8x128xf32>
    %57 = tpu.matmul %56, %55, %cst_30 {dimension_numbers = #tpu.dot_dimension_numbers<[1], [0], [0], [1], [0, 0, 1, 1], [], []>} : vector<8x32xbf16>, vector<32x128xbf16>, vector<8x128xf32> -> vector<8x128xf32>
    %c0_31 = arith.constant 0 : index
    %c0_32 = arith.constant 0 : index
    %58 = vector.load %arg8[%c0_31, %c0_32] : memref<8x1xf32, #tpu.memory_space<vmem>>, vector<8x1xf32>
    %59 = vector.broadcast %58 : vector<8x1xf32> to vector<8x128xf32>
    %60 = arith.addf %57, %59 : vector<8x128xf32>
    %cst_33 = arith.constant 0.000000e+00 : f32
    %61 = vector.broadcast %cst_33 : f32 to vector<8x128xf32>
    %62 = arith.maximumf %60, %61 : vector<8x128xf32>
    %63 = arith.truncf %62 : vector<8x128xf32> to vector<8x128xbf16>
    %c0_34 = arith.constant 0 : index
    %c0_35 = arith.constant 0 : index
    %64 = vector.load %arg9[%c0_34, %c0_35] : memref<1x8xbf16, #tpu.memory_space<vmem>>, vector<1x8xbf16>
    %cst_36 = arith.constant dense<0.000000e+00> : vector<1x128xf32>
    %65 = tpu.matmul %64, %63, %cst_36 {dimension_numbers = #tpu.dot_dimension_numbers<[1], [0], [0], [1], [0, 0, 1, 1], [], []>} : vector<1x8xbf16>, vector<8x128xbf16>, vector<1x128xf32> -> vector<1x128xf32>
    %c0_37 = arith.constant 0 : index
    %c0_38 = arith.constant 0 : index
    %66 = vector.load %arg10[%c0_37, %c0_38] : memref<1x1xf32, #tpu.memory_space<vmem>>, vector<1x1xf32>
    %67 = vector.broadcast %66 : vector<1x1xf32> to vector<1x128xf32>
    %68 = arith.addf %65, %67 : vector<1x128xf32>
    %c0_39 = arith.constant 0 : index
    %c0_40 = arith.constant 0 : index
    %c0_41 = arith.constant 0 : index
    %69 = vector.load %arg11[%c0_39, %c0_40, %c0_41] : memref<1x1x128xf32, #tpu.memory_space<vmem>>, vector<1x1x128xf32>
    %70 = vector.shape_cast %69 : vector<1x1x128xf32> to vector<1x128xf32>
    %71 = vector.shape_cast %68 : vector<1x128xf32> to vector<1x1x128xf32>
    tpu.vector_store %arg11[%c0_39, %c0_40, %c0_41], %71 {strides = array<i32>} : memref<1x1x128xf32, #tpu.memory_space<vmem>>, vector<1x1x128xf32>,
    return
  }
  func.func @transform_0(%arg0: i32) -> (i32, i32, i32) {
    %c0_i32 = arith.constant 0 : i32
    %c0_i32_0 = arith.constant 0 : i32
    %c0_i32_1 = arith.constant 0 : i32
    return %arg0, %c0_i32, %c0_i32_0 : i32, i32, i32
  }
  func.func @transform_1(%arg0: i32) -> (i32, i32) {
    %c0_i32 = arith.constant 0 : i32
    %c0_i32_0 = arith.constant 0 : i32
    %c0_i32_1 = arith.constant 0 : i32
    return %c0_i32, %c0_i32_0 : i32, i32
  }
  func.func @transform_2(%arg0: i32) -> (i32, i32) {
    %c0_i32 = arith.constant 0 : i32
    %c0_i32_0 = arith.constant 0 : i32
    %c0_i32_1 = arith.constant 0 : i32
    return %c0_i32, %c0_i32_0 : i32, i32
  }
  func.func @transform_3(%arg0: i32) -> (i32, i32) {
    %c0_i32 = arith.constant 0 : i32
    %c0_i32_0 = arith.constant 0 : i32
    %c0_i32_1 = arith.constant 0 : i32
    return %c0_i32, %c0_i32_0 : i32, i32
  }
  func.func @transform_4(%arg0: i32) -> (i32, i32, i32) {
    %c0_i32 = arith.constant 0 : i32
    %c0_i32_0 = arith.constant 0 : i32
    %c0_i32_1 = arith.constant 0 : i32
    %c0_i32_2 = arith.constant 0 : i32
    return %c0_i32, %c0_i32_0, %c0_i32_1 : i32, i32, i32
  }
  func.func @transform_5(%arg0: i32) -> (i32, i32) {
    %c0_i32 = arith.constant 0 : i32
    %c0_i32_0 = arith.constant 0 : i32
    %c0_i32_1 = arith.constant 0 : i32
    return %c0_i32, %c0_i32_0 : i32, i32
  }
  func.func @transform_6(%arg0: i32) -> (i32, i32) {
    %c0_i32 = arith.constant 0 : i32
    %c0_i32_0 = arith.constant 0 : i32
    %c0_i32_1 = arith.constant 0 : i32
    return %c0_i32, %c0_i32_0 : i32, i32
  }
  func.func @transform_7(%arg0: i32) -> (i32, i32) {
    %c0_i32 = arith.constant 0 : i32
    %c0_i32_0 = arith.constant 0 : i32
    %c0_i32_1 = arith.constant 0 : i32
    return %c0_i32, %c0_i32_0 : i32, i32
  }
  func.func @transform_8(%arg0: i32) -> (i32, i32) {
    %c0_i32 = arith.constant 0 : i32
    %c0_i32_0 = arith.constant 0 : i32
    %c0_i32_1 = arith.constant 0 : i32
    return %c0_i32, %c0_i32_0 : i32, i32
  }
  func.func @transform_9(%arg0: i32) -> (i32, i32) {
    %c0_i32 = arith.constant 0 : i32
    %c0_i32_0 = arith.constant 0 : i32
    %c0_i32_1 = arith.constant 0 : i32
    return %c0_i32, %c0_i32_0 : i32, i32
  }
  func.func @transform_10(%arg0: i32) -> (i32, i32, i32) {
    %c0_i32 = arith.constant 0 : i32
    %c0_i32_0 = arith.constant 0 : i32
    %c0_i32_1 = arith.constant 0 : i32
    return %arg0, %c0_i32, %c0_i32_0 : i32, i32, i32
  }
}

</mosaic_0001>

<llo_original>
// kernel: convnet_forward.3
$region0: #{convnet_forward.3}
  #allocation0 [shape = 'u32[]', space=smem, size = 0x4, offset = 0x4, fixed_abs, tag = 'smem constant byte address 0x4 - core index']
  #allocation1 [shape = 'u32[72,128]{1,0:T(1,128)}', space=vmem, size = 0x9000, scoped, tag = 'internal scratch']
  %s0 = inlined_call_operand.vmem [shape: bf16[2,80,1024], index: 0, kind: input, shape index: {}]
  %s1 = inlined_call_operand.vmem [shape: bf16[8,80], index: 1, kind: input, shape index: {}]
  %s2 = inlined_call_operand.vmem [shape: f32[8,1], index: 2, kind: input, shape index: {}]
  %s3 = inlined_call_operand.vmem [shape: f32[2,256], index: 3, kind: input, shape index: {}]
  %s4 = inlined_call_operand.vmem [shape: bf16[2,8,256], index: 4, kind: output, shape index: {}]
  %s5 = sld [smem:[#allocation0]]
  $region49: #{convnet_forward.3} parent=0
    _
  %s7 = ssub.s32 1, %s5
  %s8 = scalar_select 0, %s7, %s5
  loop: start=0, step=1, limit=4
  $region2: #{convnet_forward.3} parent=0 // loop_pre_header
    _
  $region3: #{convnet_forward.3} parent=0 // loop_header
    %s10 = sphi 0, %s14
    %p11 = scmp.ge.s32.totalorder %s10, 4
    %s20 = sphi 0, %s22
    %s23 = sphi 0, %s20
    %s24 = sphi 0, %s23
    %s40 = sphi 0, %s24
    %s44 = sphi 0, %s44
    %s46 = sphi 0, %s44
    %s47 = sphi 0, %s46
    %s61 = sphi 0, %s47
    %s65 = sphi 0, %s65
    %s67 = sphi 0, %s65
    %s68 = sphi 0, %s67
    %s82 = sphi 0, %s68
    %s86 = sphi 0, %s86
    %s88 = sphi 0, %s86
    %s89 = sphi 0, %s88
    %s103 = sphi 0, %s89
    %s109 = sphi 0, %s111
    %s112 = sphi 0, %s109
    %s113 = sphi 0, %s112
    %s129 = sphi 0, %s113
  $region4: #{convnet_forward.3} parent=0 // loop_header_branch
    %13 = sbr.rel (%p11) target = $region8
  $region5: #{convnet_forward.3} parent=0 // loop_body
    %s15 = ssub.s32 %s10, 1
    %s16 = ssub.s32 %s10, 2
    %s17 = sadd.s32 %s10, 1
    %s18 = ssub.s32 %s10, %s17
    %p19 = scmp.eq.s32.totalorder %s18, 0
    %s21 = sadd.s32 %s20, 1
    %s22 = scalar_select %p19, %s20, %s21
    %p25 = pneg %p19
    %p26 = scmp.eq.s32.totalorder %s10, 1
    %p27 = por %p25, %p26
    %p28 = scmp.ne.s32.totalorder %s20, %s23
    %p29 = scmp.eq.s32.totalorder %s10, 0
    %p30 = por %p28, %p29
    %p31 = scmp.ne.s32.totalorder %s20, %s23
    %p32 = scmp.eq.s32.totalorder %s15, 1
    %p33 = por %p31, %p32
    %p34 = scmp.ne.s32.totalorder %s23, %s24
    %p35 = scmp.eq.s32.totalorder %s15, 0
    %p36 = por %p34, %p35
    %p37 = scmp.ne.s32.totalorder %s23, %s24
    %p38 = scmp.eq.s32.totalorder %s16, 1
    %p39 = por %p37, %p38
    %p41 = scmp.ne.s32.totalorder %s24, %s40
    %p42 = scmp.eq.s32.totalorder %s16, 0
    %p43 = por %p41, %p42
    %s45 = sadd.s32 %s44, 1
    %p48 = scmp.eq.s32.totalorder %s10, 1
    %p49 = scmp.ne.s32.totalorder %s44, %s46
    %p50 = scmp.eq.s32.totalorder %s10, 0
    %p51 = por %p49, %p50
    %p52 = scmp.ne.s32.totalorder %s44, %s46
    %p53 = scmp.eq.s32.totalorder %s15, 1
    %p54 = por %p52, %p53
    %p55 = scmp.ne.s32.totalorder %s46, %s47
    %p56 = scmp.eq.s32.totalorder %s15, 0
    %p57 = por %p55, %p56
    %p58 = scmp.ne.s32.totalorder %s46, %s47
    %p59 = scmp.eq.s32.totalorder %s16, 1
    %p60 = por %p58, %p59
    %p62 = scmp.ne.s32.totalorder %s47, %s61
    %p63 = scmp.eq.s32.totalorder %s16, 0
    %p64 = por %p62, %p63
    %s66 = sadd.s32 %s65, 1
    %p69 = scmp.eq.s32.totalorder %s10, 1
    %p70 = scmp.ne.s32.totalorder %s65, %s67
    %p71 = scmp.eq.s32.totalorder %s10, 0
    %p72 = por %p70, %p71
    %p73 = scmp.ne.s32.totalorder %s65, %s67
    %p74 = scmp.eq.s32.totalorder %s15, 1
    %p75 = por %p73, %p74
    %p76 = scmp.ne.s32.totalorder %s67, %s68
    %p77 = scmp.eq.s32.totalorder %s15, 0
    %p78 = por %p76, %p77
    %p79 = scmp.ne.s32.totalorder %s67, %s68
    %p80 = scmp.eq.s32.totalorder %s16, 1
    %p81 = por %p79, %p80
    %p83 = scmp.ne.s32.totalorder %s68, %s82
    %p84 = scmp.eq.s32.totalorder %s16, 0
    %p85 = por %p83, %p84
    %s87 = sadd.s32 %s86, 1
    %p90 = scmp.eq.s32.totalorder %s10, 1
    %p91 = scmp.ne.s32.totalorder %s86, %s88
    %p92 = scmp.eq.s32.totalorder %s10, 0
    %p93 = por %p91, %p92
    %p94 = scmp.ne.s32.totalorder %s86, %s88
    %p95 = scmp.eq.s32.totalorder %s15, 1
    %p96 = por %p94, %p95
    %p97 = scmp.ne.s32.totalorder %s88, %s89
    %p98 = scmp.eq.s32.totalorder %s15, 0
    %p99 = por %p97, %p98
    %p100 = scmp.ne.s32.totalorder %s88, %s89
    %p101 = scmp.eq.s32.totalorder %s16, 1
    %p102 = por %p100, %p101
    %p104 = scmp.ne.s32.totalorder %s89, %s103
    %p105 = scmp.eq.s32.totalorder %s16, 0
    %p106 = por %p104, %p105
    %s107 = ssub.s32 %s10, %s17
    %p108 = scmp.eq.s32.totalorder %s107, 0
    %s110 = sadd.s32 %s109, 1
    %s111 = scalar_select %p108, %s109, %s110
    %p114 = pneg %p108
    %p115 = scmp.eq.s32.totalorder %s10, 1
    %p116 = por %p114, %p115
    %p117 = scmp.ne.s32.totalorder %s109, %s112
    %p118 = scmp.eq.s32.totalorder %s10, 0
    %p119 = por %p117, %p118
    %p120 = scmp.ne.s32.totalorder %s109, %s112
    %p121 = scmp.eq.s32.totalorder %s15, 1
    %p122 = por %p120, %p121
    %p123 = scmp.ne.s32.totalorder %s112, %s113
    %p124 = scmp.eq.s32.totalorder %s15, 0
    %p125 = por %p123, %p124
    %p126 = scmp.ne.s32.totalorder %s112, %s113
    %p127 = scmp.eq.s32.totalorder %s16, 1
    %p128 = por %p126, %p127
    %p130 = scmp.ne.s32.totalorder %s113, %s129
    %p131 = scmp.eq.s32.totalorder %s16, 0
    %p132 = por %p130, %p131
    %p133 = scmp.le.s32.totalorder 1, %s10
    %p134 = scmp.lt.s32.totalorder %s10, 3
    %p135 = pnand %p133, %p134
    %p136 = pneg %p135
    // Predicated region
    $region9: #{convnet_forward.3} parent=5 // pred_check
      _
    $region10: #{convnet_forward.3} parent=5 // pred_check_branch
      %138 = sbr.rel (%p135) target = $region12
    $region11: #{convnet_forward.3} parent=5 // pred_region
      %s139 = ssub.s32 %s10, 1
      // Predicated region
      $region13: #{convnet_forward.3} parent=11 // pred_check
        %p140 = pneg %p57
      $region14: #{convnet_forward.3} parent=11 // pred_check_branch
        %142 = sbr.rel (%p140) target = $region16
      $region15: #{convnet_forward.3} parent=11 // pred_region
        _
      $region16: #{convnet_forward.3} parent=11 // pred_fallthru
        _
      // Predicated region
      $region17: #{convnet_forward.3} parent=11 // pred_check
        %p143 = pneg %p78
      $region18: #{convnet_forward.3} parent=11 // pred_check_branch
        %145 = sbr.rel (%p143) target = $region20
      $region19: #{convnet_forward.3} parent=11 // pred_region
        _
      $region20: #{convnet_forward.3} parent=11 // pred_fallthru
        _
      // Predicated region
      $region21: #{convnet_forward.3} parent=11 // pred_check
        %p146 = pneg %p99
      $region22: #{convnet_forward.3} parent=11 // pred_check_branch
        %148 = sbr.rel (%p146) target = $region24
      $region23: #{convnet_forward.3} parent=11 // pred_region
        _
      $region24: #{convnet_forward.3} parent=11 // pred_fallthru
        _
    $region12: #{convnet_forward.3} parent=5 // pred_fallthru
      _
    %p149 = scmp.lt.s32.totalorder %s10, 2
    // Predicated region
    $region25: #{convnet_forward.3} parent=5 // pred_check
      %p150 = pneg %p149
    $region26: #{convnet_forward.3} parent=5 // pred_check_branch
      %152 = sbr.rel (%p150) target = $region28
    $region27: #{convnet_forward.3} parent=5 // pred_region
      // Predicated region
      $region29: #{convnet_forward.3} parent=27 // pred_check
        %p153 = pneg %p30
      $region30: #{convnet_forward.3} parent=27 // pred_check_branch
        %155 = sbr.rel (%p153) target = $region32
      $region31: #{convnet_forward.3} parent=27 // pred_region
        %p156 = scmp.lt.s32.totalorder %s10, 1
        %s157 = scalar_select %p156, %s10, 1
        %s158 = smul.addr %s157, 80
        %s159 = smul.addr %s158, 4
        %s160 = scalar_lea.vmem %s0, %s159
      $region32: #{convnet_forward.3} parent=27 // pred_fallthru
        _
    $region28: #{convnet_forward.3} parent=5 // pred_fallthru
      _
    %p161 = scmp.le.s32.totalorder 1, %s10
    %p162 = scmp.lt.s32.totalorder %s10, 3
    %p163 = pnand %p161, %p162
    %p164 = pneg %p163
    // Predicated region
    $region33: #{convnet_forward.3} parent=5 // pred_check
      _
    $region34: #{convnet_forward.3} parent=5 // pred_check_branch
      %166 = sbr.rel (%p163) target = $region36
    $region35: #{convnet_forward.3} parent=5 // pred_region
      %s167 = ssub.s32 %s10, 1
      %p168 = scmp.lt.s32.totalorder %s15, 1
      %s169 = scalar_select %p168, %s15, 1
      %s170 = smul.addr %s169, 80
      %s171 = smul.addr %s170, 4
      %s172 = scalar_lea.vmem %s0, %s171
      %p173 = pneg %p36
      %p174 = pneg %p33
      %p175 = pneg %p57
      %p176 = pneg %p54
      %p177 = pneg %p78
      %p178 = pneg %p75
      %p179 = pneg %p99
      %p180 = pneg %p96
      %p181 = pneg %p125
      %p182 = pneg %p122
      %p183 = scmp.lt.s32.totalorder %s15, 1
      %s184 = scalar_select %p183, %s15, 1
      %s185 = smul.addr %s184, 2
      %s186 = smul.addr %s185, 4
      %s187 = scalar_lea.vmem %s4, %s186
      %p188 = scmp.lt.s32.totalorder %s15, 1
      %s189 = scalar_select %p188, %s15, 1
      %s190 = smul.addr %s189, 80
      %s191 = smul.addr %s190, 4
      %s192 = scalar_lea.vmem %s0, %s191
      %p193 = scmp.lt.s32.totalorder %s15, 1
      %s194 = scalar_select %p193, %s15, 1
      %s195 = smul.addr %s194, 2
      %s196 = smul.addr %s195, 4
      %s197 = scalar_lea.vmem %s4, %s196
      %v199 = vld [vmem:[%s192] sm:$0xff]
      %v200 = vld [vmem:[%s192 + $0x8] sm:$0xff]
      %v201 = vld [vmem:[%s192 + $0x10] sm:$0xff]
      %v202 = vld [vmem:[%s192 + $0x18] sm:$0xff]
      %v203 = vld [vmem:[%s192 + $0x20] sm:$0xff]
      %v204 = vld [vmem:[%s192 + $0x28] sm:$0xff]
      %v205 = vld [vmem:[%s192 + $0x30] sm:$0xff]
      %v206 = vld [vmem:[%s192 + $0x38] sm:$0xff]
      %v207 = vld [vmem:[%s192 + $0x40] sm:$0xff]
      %v208 = vld [vmem:[%s192 + $0x48] sm:$0xff]
      %v209 = vld [vmem:[%s192 + $0x50] sm:$0xff]
      %v210 = vld [vmem:[%s192 + $0x58] sm:$0xff]
      %v211 = vld [vmem:[%s192 + $0x60] sm:$0xff]
      %v212 = vld [vmem:[%s192 + $0x68] sm:$0xff]
      %v213 = vld [vmem:[%s192 + $0x70] sm:$0xff]
      %v214 = vld [vmem:[%s192 + $0x78] sm:$0xff]
      %v215 = vld [vmem:[%s192 + $0x80] sm:$0xff]
      %v216 = vld [vmem:[%s192 + $0x88] sm:$0xff]
      %v217 = vld [vmem:[%s192 + $0x90] sm:$0xff]
      %v218 = vld [vmem:[%s192 + $0x98] sm:$0xff]
      %v219 = vld [vmem:[%s192 + $0xa0] sm:$0xff]
      %v220 = vld [vmem:[%s192 + $0xa8] sm:$0xff]
      %v221 = vld [vmem:[%s192 + $0xb0] sm:$0xff]
      %v222 = vld [vmem:[%s192 + $0xb8] sm:$0xff]
      %v223 = vld [vmem:[%s192 + $0xc0] sm:$0xff]
      %v224 = vld [vmem:[%s192 + $0xc8] sm:$0xff]
      %v225 = vld [vmem:[%s192 + $0xd0] sm:$0xff]
      %v226 = vld [vmem:[%s192 + $0xd8] sm:$0xff]
      %v227 = vld [vmem:[%s192 + $0xe0] sm:$0xff]
      %v228 = vld [vmem:[%s192 + $0xe8] sm:$0xff]
      %v229 = vld [vmem:[%s192 + $0xf0] sm:$0xff]
      %v230 = vld [vmem:[%s192 + $0xf8] sm:$0xff]
      %v231 = vld [vmem:[%s192 + $0x100] sm:$0xff]
      %v232 = vld [vmem:[%s192 + $0x108] sm:$0xff]
      %v233 = vld [vmem:[%s192 + $0x110] sm:$0xff]
      %v234 = vld [vmem:[%s192 + $0x118] sm:$0xff]
      %v235 = vld [vmem:[%s192 + $0x120] sm:$0xff]
      %v236 = vld [vmem:[%s192 + $0x128] sm:$0xff]
      %v237 = vld [vmem:[%s192 + $0x130] sm:$0xff]
      %v238 = vld [vmem:[%s192 + $0x138] sm:$0xff]
      %v239 = vld [vmem:[%s1] sm:$0xf]
      %v240 = vld [vmem:[%s2] sm:$0xff]
      %v241 = vld [vmem:[%s3] ss:$2 sm:$0x3]
      %s242 = scalar_lea.vmem %s3, 1
      %v243 = vld [vmem:[%s242] ss:$2 sm:$0x3]
      %245 = vset.pattern.permute.xlu0 0
      %246 = vperm.xlu0 %245, %v240
      %v247 = vpop.permute.xlu0 %246
      %v289 = vunpack.c.l.b16 %v199
      %v290 = vunpack.c.h.b16 %v199
      %v291 = vunpack.c.l.b16 %v200
      %v292 = vunpack.c.h.b16 %v200
      %v293 = vunpack.c.l.b16 %v201
      %v294 = vunpack.c.h.b16 %v201
      %v295 = vunpack.c.l.b16 %v202
      %v296 = vunpack.c.h.b16 %v202
      %v297 = vunpack.c.l.b16 %v203
      %v298 = vunpack.c.h.b16 %v203
      %v299 = vunpack.c.l.b16 %v204
      %v300 = vunpack.c.h.b16 %v204
      %v301 = vunpack.c.l.b16 %v205
      %v302 = vunpack.c.h.b16 %v205
      %v303 = vunpack.c.l.b16 %v206
      %v304 = vunpack.c.h.b16 %v206
      %v305 = vunpack.c.l.b16 %v207
      %v306 = vunpack.c.h.b16 %v207
      %v307 = vunpack.c.l.b16 %v208
      %v308 = vunpack.c.h.b16 %v208
      %v309 = vunpack.c.l.b16 %v209
      %v310 = vunpack.c.h.b16 %v209
      %v311 = vunpack.c.l.b16 %v210
      %v312 = vunpack.c.h.b16 %v210
      %v313 = vunpack.c.l.b16 %v211
      %v314 = vunpack.c.h.b16 %v211
      %v315 = vunpack.c.l.b16 %v212
      %v316 = vunpack.c.h.b16 %v212
      %v317 = vunpack.c.l.b16 %v213
      %v318 = vunpack.c.h.b16 %v213
      %v319 = vunpack.c.l.b16 %v214
      %v320 = vunpack.c.h.b16 %v214
      %v321 = vunpack.c.l.b16 %v215
      %v322 = vunpack.c.h.b16 %v215
      %v323 = vunpack.c.l.b16 %v216
      %v324 = vunpack.c.h.b16 %v216
      %v325 = vunpack.c.l.b16 %v217
      %v326 = vunpack.c.h.b16 %v217
      %v327 = vunpack.c.l.b16 %v218
      %v328 = vunpack.c.h.b16 %v218
      %v329 = vunpack.c.l.b16 %v219
      %v330 = vunpack.c.h.b16 %v219
      %v331 = vunpack.c.l.b16 %v220
      %v332 = vunpack.c.h.b16 %v220
      %v333 = vunpack.c.l.b16 %v221
      %v334 = vunpack.c.h.b16 %v221
      %v335 = vunpack.c.l.b16 %v222
      %v336 = vunpack.c.h.b16 %v222
      %v337 = vunpack.c.l.b16 %v223
      %v338 = vunpack.c.h.b16 %v223
      %v339 = vunpack.c.l.b16 %v224
      %v340 = vunpack.c.h.b16 %v224
      %v341 = vunpack.c.l.b16 %v225
      %v342 = vunpack.c.h.b16 %v225
      %v343 = vunpack.c.l.b16 %v226
      %v344 = vunpack.c.h.b16 %v226
      %v345 = vunpack.c.l.b16 %v227
      %v346 = vunpack.c.h.b16 %v227
      %v347 = vunpack.c.l.b16 %v228
      %v348 = vunpack.c.h.b16 %v228
      %v349 = vunpack.c.l.b16 %v229
      %v350 = vunpack.c.h.b16 %v229
      %v351 = vunpack.c.l.b16 %v230
      %v352 = vunpack.c.h.b16 %v230
      %v353 = vunpack.c.l.b16 %v231
      %v354 = vunpack.c.h.b16 %v231
      %v355 = vunpack.c.l.b16 %v232
      %v356 = vunpack.c.h.b16 %v232
      %v357 = vunpack.c.l.b16 %v233
      %v358 = vunpack.c.h.b16 %v233
      %v359 = vunpack.c.l.b16 %v234
      %v360 = vunpack.c.h.b16 %v234
      %v361 = vunpack.c.l.b16 %v235
      %v362 = vunpack.c.h.b16 %v235
      %v363 = vunpack.c.l.b16 %v236
      %v364 = vunpack.c.h.b16 %v236
      %v365 = vunpack.c.l.b16 %v237
      %v366 = vunpack.c.h.b16 %v237
      %v367 = vunpack.c.l.b16 %v238
      %v368 = vunpack.c.h.b16 %v238
      %v369 = vpack.c.b16 %v297, %v289
      %v370 = vpack.c.b16 %v298, %v290
      %v371 = vpack.c.b16 %v299, %v291
      %v372 = vpack.c.b16 %v300, %v292
      %v373 = vpack.c.b16 %v301, %v293
      %v374 = vpack.c.b16 %v302, %v294
      %v375 = vpack.c.b16 %v303, %v295
      %v376 = vpack.c.b16 %v304, %v296
      %v377 = vpack.c.b16 %v313, %v305
      %v378 = vpack.c.b16 %v314, %v306
      %v379 = vpack.c.b16 %v315, %v307
      %v380 = vpack.c.b16 %v316, %v308
      %v381 = vpack.c.b16 %v317, %v309
      %v382 = vpack.c.b16 %v318, %v310
      %v383 = vpack.c.b16 %v319, %v311
      %v384 = vpack.c.b16 %v320, %v312
      %v385 = vpack.c.b16 %v329, %v321
      %v386 = vpack.c.b16 %v330, %v322
      %v387 = vpack.c.b16 %v331, %v323
      %v388 = vpack.c.b16 %v332, %v324
      %v389 = vpack.c.b16 %v333, %v325
      %v390 = vpack.c.b16 %v334, %v326
      %v391 = vpack.c.b16 %v335, %v327
      %v392 = vpack.c.b16 %v336, %v328
      %v393 = vpack.c.b16 %v345, %v337
      %v394 = vpack.c.b16 %v346, %v338
      %v395 = vpack.c.b16 %v347, %v339
      %v396 = vpack.c.b16 %v348, %v340
      %v397 = vpack.c.b16 %v349, %v341
      %v398 = vpack.c.b16 %v350, %v342
      %v399 = vpack.c.b16 %v351, %v343
      %v400 = vpack.c.b16 %v352, %v344
      %v401 = vpack.c.b16 %v361, %v353
      %v402 = vpack.c.b16 %v362, %v354
      %v403 = vpack.c.b16 %v363, %v355
      %v404 = vpack.c.b16 %v364, %v356
      %v405 = vpack.c.b16 %v365, %v357
      %v406 = vpack.c.b16 %v366, %v358
      %v407 = vpack.c.b16 %v367, %v359
      %v408 = vpack.c.b16 %v368, %v360
      %vm449 = vcmask 654336
      %v451 = vsel %vm449, %v239, 0
      %453 = vmatpush.bf16.msra.mxu0 0
      %454 = vmatpush.bf16.msra.mxu0 0
      %455 = vmatpush.bf16.msra.mxu0 0
      %456 = vmatpush.bf16.msra.mxu0 %v401
      %457 = vmatpush.bf16.msra.mxu0 %v393
      %458 = vmatpush.bf16.msra.mxu0 %v385
      %459 = vmatpush.bf16.msra.mxu0 %v377
      %460 = vmatpush.bf16.msra.mxu0 %v369
      %461 = vmatmul.bf16.gmra.mxu0 %v451
      %v462 = vpop.f32.mrf.mxu0
      %v463 = vadd.f32 %v247, %v462
      %v464 = vpop.f32.mrf.mxu0
      %465 = vdwg.mxu0
      %466 = vmatpush.bf16.msra.mxu0 0
      %467 = vmatpush.bf16.msra.mxu0 0
      %468 = vmatpush.bf16.msra.mxu0 0
      %469 = vmatpush.bf16.msra.mxu0 %v402
      %470 = vmatpush.bf16.msra.mxu0 %v394
      %471 = vmatpush.bf16.msra.mxu0 %v386
      %472 = vmatpush.bf16.msra.mxu0 %v378
      %473 = vmatpush.bf16.msra.mxu0 %v370
      %474 = vmatmul.bf16.gmra.mxu0 %v451
      %v475 = vpop.f32.mrf.mxu0
      %v476 = vadd.f32 %v247, %v475
      %v477 = vpop.f32.mrf.mxu0
      %478 = vdwg.mxu0
      %479 = vmatpush.bf16.msra.mxu0 0
      %480 = vmatpush.bf16.msra.mxu0 0
      %481 = vmatpush.bf16.msra.mxu0 0
      %482 = vmatpush.bf16.msra.mxu0 %v403
      %483 = vmatpush.bf16.msra.mxu0 %v395
      %484 = vmatpush.bf16.msra.mxu0 %v387
      %485 = vmatpush.bf16.msra.mxu0 %v379
      %486 = vmatpush.bf16.msra.mxu0 %v371
      %487 = vmatmul.bf16.gmra.mxu0 %v451
      %v488 = vpop.f32.mrf.mxu0
      %v489 = vadd.f32 %v247, %v488
      %v490 = vpop.f32.mrf.mxu0
      %491 = vdwg.mxu0
      %492 = vmatpush.bf16.msra.mxu0 0
      %493 = vmatpush.bf16.msra.mxu0 0
      %494 = vmatpush.bf16.msra.mxu0 0
      %495 = vmatpush.bf16.msra.mxu0 %v404
      %496 = vmatpush.bf16.msra.mxu0 %v396
      %497 = vmatpush.bf16.msra.mxu0 %v388
      %498 = vmatpush.bf16.msra.mxu0 %v380
      %499 = vmatpush.bf16.msra.mxu0 %v372
      %500 = vmatmul.bf16.gmra.mxu0 %v451
      %v501 = vpop.f32.mrf.mxu0
      %v502 = vadd.f32 %v247, %v501
      %v503 = vpop.f32.mrf.mxu0
      %504 = vdwg.mxu0
      %505 = vmatpush.bf16.msra.mxu0 0
      %506 = vmatpush.bf16.msra.mxu0 0
      %507 = vmatpush.bf16.msra.mxu0 0
      %508 = vmatpush.bf16.msra.mxu0 %v405
      %509 = vmatpush.bf16.msra.mxu0 %v397
      %510 = vmatpush.bf16.msra.mxu0 %v389
      %511 = vmatpush.bf16.msra.mxu0 %v381
      %512 = vmatpush.bf16.msra.mxu0 %v373
      %513 = vmatmul.bf16.gmra.mxu0 %v451
      %v514 = vpop.f32.mrf.mxu0
      %v515 = vadd.f32 %v247, %v514
      %v516 = vpop.f32.mrf.mxu0
      %517 = vdwg.mxu0
      %518 = vmatpush.bf16.msra.mxu0 0
      %519 = vmatpush.bf16.msra.mxu0 0
      %520 = vmatpush.bf16.msra.mxu0 0
      %521 = vmatpush.bf16.msra.mxu0 %v406
      %522 = vmatpush.bf16.msra.mxu0 %v398
      %523 = vmatpush.bf16.msra.mxu0 %v390
      %524 = vmatpush.bf16.msra.mxu0 %v382
      %525 = vmatpush.bf16.msra.mxu0 %v374
      %526 = vmatmul.bf16.gmra.mxu0 %v451
      %v527 = vpop.f32.mrf.mxu0
      %v528 = vadd.f32 %v247, %v527
      %v529 = vpop.f32.mrf.mxu0
      %530 = vdwg.mxu0
      %531 = vmatpush.bf16.msra.mxu0 0
      %532 = vmatpush.bf16.msra.mxu0 0
      %533 = vmatpush.bf16.msra.mxu0 0
      %534 = vmatpush.bf16.msra.mxu0 %v407
      %535 = vmatpush.bf16.msra.mxu0 %v399
      %536 = vmatpush.bf16.msra.mxu0 %v391
      %537 = vmatpush.bf16.msra.mxu0 %v383
      %538 = vmatpush.bf16.msra.mxu0 %v375
      %539 = vmatmul.bf16.gmra.mxu0 %v451
      %v540 = vpop.f32.mrf.mxu0
      %v541 = vadd.f32 %v247, %v540
      %v542 = vpop.f32.mrf.mxu0
      %543 = vdwg.mxu0
      %544 = vmatpush.bf16.msra.mxu0 0
      %545 = vmatpush.bf16.msra.mxu0 0
      %546 = vmatpush.bf16.msra.mxu0 0
      %547 = vmatpush.bf16.msra.mxu0 %v408
      %548 = vmatpush.bf16.msra.mxu0 %v400
      %549 = vmatpush.bf16.msra.mxu0 %v392
      %550 = vmatpush.bf16.msra.mxu0 %v384
      %551 = vmatpush.bf16.msra.mxu0 %v376
      %552 = vmatmul.bf16.gmra.mxu0 %v451
      %v553 = vpop.f32.mrf.mxu0
      %v554 = vadd.f32 %v247, %v553
      %v555 = vpop.f32.mrf.mxu0
      %556 = vdwg.mxu0
      %v557 = vmax.f32 %v463, 0.0
      %v558 = vmax.f32 %v476, 0.0
      %v559 = vmax.f32 %v489, 0.0
      %v560 = vmax.f32 %v502, 0.0
      %v561 = vmax.f32 %v515, 0.0
      %v562 = vmax.f32 %v528, 0.0
      %v563 = vmax.f32 %v541, 0.0
      %v564 = vmax.f32 %v554, 0.0
      %v565 = vmax.f32 %v557, %v559
      %v566 = vmax.f32 %v558, %v560
      %567 = vrot.lane.b32.xlu0 %v559, 1
      %v568 = vpop.permute.xlu0 %567
      %569 = vrot.lane.b32.xlu0 %v560, 1
      %v570 = vpop.permute.xlu0 %569
      %v571 = vlaneseq
      %v572 = vand.u32 %v571, 127
      %vm573 = vcmp.lt.s32.totalorder %v572, 1
      %v574 = vsel %vm573, %v568, %v570
      %v575 = vsel %vm573, %v570, %v568
      %v577 = vperm.slane %v241, 0
      %v578 = vperm.slane %v241, 1
      %v581 = vmul.f32 %v575, %v577
      %v582 = vmul.f32 %v574, %v578
      %v583 = vmax.f32 %v565, %v581
      %v584 = vmax.f32 %v566, %v582
      %v585 = vmax.f32 %v561, %v563
      %v586 = vmax.f32 %v562, %v564
      %587 = vrot.lane.b32.xlu0 %v563, 1
      %v588 = vpop.permute.xlu0 %587
      %589 = vrot.lane.b32.xlu0 %v564, 1
      %v590 = vpop.permute.xlu0 %589
      %v591 = vsel %vm573, %v588, %v590
      %v592 = vsel %vm573, %v590, %v588
      %v593 = vmul.f32 %v592, %v577
      %v594 = vmul.f32 %v591, %v578
      %v595 = vmax.f32 %v585, %v593
      %v596 = vmax.f32 %v586, %v594
      %v597 = vmax.f32 %v583, %v595
      %v598 = vmax.f32 %v584, %v596
      %599 = vrot.lane.b32.xlu0 %v595, 16
      %v600 = vpop.permute.xlu0 %599
      %601 = vrot.lane.b32.xlu0 %v596, 16
      %v602 = vpop.permute.xlu0 %601
      %vm603 = vcmp.lt.s32.totalorder %v572, 16
      %v604 = vsel %vm603, %v600, %v602
      %v605 = vsel %vm603, %v602, %v600
      %v607 = vperm.slane %v243, 0
      %v608 = vperm.slane %v243, 1
      %v611 = vmul.f32 %v605, %v607
      %v612 = vmul.f32 %v604, %v608
      %v613 = vmax.f32 %v597, %v611
      %v614 = vmax.f32 %v598, %v612
      %v615 = vpack.c.bf16 %v614, %v613
      %616 = vst [vmem:[%s197] sm:$0xff] %v615
      %p617 = scmp.lt.s32.totalorder %s15, 1
      %s618 = scalar_select %p617, %s15, 1
      %s619 = smul.addr %s618, 2
      %s620 = smul.addr %s619, 4
      %s621 = scalar_lea.vmem %s4, %s620
      // Predicated region
      $region37: #{convnet_forward.3} parent=35 // pred_check
        %p622 = pneg %p122
      $region38: #{convnet_forward.3} parent=35 // pred_check_branch
        %624 = sbr.rel (%p622) target = $region40
      $region39: #{convnet_forward.3} parent=35 // pred_region
        _
      $region40: #{convnet_forward.3} parent=35 // pred_fallthru
        _
    $region36: #{convnet_forward.3} parent=5 // pred_fallthru
      _
    %p625 = scmp.le.s32.totalorder 2, %s10
    // Predicated region
    $region41: #{convnet_forward.3} parent=5 // pred_check
      %p626 = pneg %p625
    $region42: #{convnet_forward.3} parent=5 // pred_check_branch
      %628 = sbr.rel (%p626) target = $region44
    $region43: #{convnet_forward.3} parent=5 // pred_region
      %s629 = ssub.s32 %s10, 2
      // Predicated region
      $region45: #{convnet_forward.3} parent=43 // pred_check
        %p630 = pneg %p128
      $region46: #{convnet_forward.3} parent=43 // pred_check_branch
        %632 = sbr.rel (%p630) target = $region48
      $region47: #{convnet_forward.3} parent=43 // pred_region
        %p633 = scmp.lt.s32.totalorder %s16, 1
        %s634 = scalar_select %p633, %s16, 1
        %s635 = smul.addr %s634, 2
        %s636 = smul.addr %s635, 4
        %s637 = scalar_lea.vmem %s4, %s636
      $region48: #{convnet_forward.3} parent=43 // pred_fallthru
        _
    $region44: #{convnet_forward.3} parent=5 // pred_fallthru
      _
  $region6: #{convnet_forward.3} parent=0 // loop_footer
    %s14 = sadd.s32 1, %s10
  $region7: #{convnet_forward.3} parent=0 // loop_footer_branch
    %9 = sbr.rel target = $region3
  $region8: #{convnet_forward.3} parent=0 // loop_exit
    _

// kernel: convnet_forward.4
$region0: #{convnet_forward.4}
  #allocation0 [shape = 'u32[]', space=smem, size = 0x4, offset = 0x4, fixed_abs, tag = 'smem constant byte address 0x4 - core index']
  #allocation1 [shape = 'u32[72,128]{1,0:T(1,128)}', space=vmem, size = 0x9000, scoped, tag = 'internal scratch']
  %s0 = inlined_call_operand.vmem [shape: bf16[2,200,512], index: 0, kind: input, shape index: {}]
  %s1 = inlined_call_operand.vmem [shape: bf16[16,200], index: 1, kind: input, shape index: {}]
  %s2 = inlined_call_operand.vmem [shape: f32[16,1], index: 2, kind: input, shape index: {}]
  %s3 = inlined_call_operand.vmem [shape: f32[2,128], index: 3, kind: input, shape index: {}]
  %s4 = inlined_call_operand.vmem [shape: bf16[2,16,128], index: 4, kind: output, shape index: {}]
  %s5 = sld [smem:[#allocation0]]
  $region49: #{convnet_forward.4} parent=0
    _
  %s7 = ssub.s32 1, %s5
  %s8 = scalar_select 0, %s7, %s5
  loop: start=0, step=1, limit=4
  $region2: #{convnet_forward.4} parent=0 // loop_pre_header
    _
  $region3: #{convnet_forward.4} parent=0 // loop_header
    %s10 = sphi 0, %s14
    %p11 = scmp.ge.s32.totalorder %s10, 4
    %s20 = sphi 0, %s22
    %s23 = sphi 0, %s20
    %s24 = sphi 0, %s23
    %s40 = sphi 0, %s24
    %s44 = sphi 0, %s44
    %s46 = sphi 0, %s44
    %s47 = sphi 0, %s46
    %s61 = sphi 0, %s47
    %s65 = sphi 0, %s65
    %s67 = sphi 0, %s65
    %s68 = sphi 0, %s67
    %s82 = sphi 0, %s68
    %s86 = sphi 0, %s86
    %s88 = sphi 0, %s86
    %s89 = sphi 0, %s88
    %s103 = sphi 0, %s89
    %s109 = sphi 0, %s111
    %s112 = sphi 0, %s109
    %s113 = sphi 0, %s112
    %s129 = sphi 0, %s113
  $region4: #{convnet_forward.4} parent=0 // loop_header_branch
    %13 = sbr.rel (%p11) target = $region8
  $region5: #{convnet_forward.4} parent=0 // loop_body
    %s15 = ssub.s32 %s10, 1
    %s16 = ssub.s32 %s10, 2
    %s17 = sadd.s32 %s10, 1
    %s18 = ssub.s32 %s10, %s17
    %p19 = scmp.eq.s32.totalorder %s18, 0
    %s21 = sadd.s32 %s20, 1
    %s22 = scalar_select %p19, %s20, %s21
    %p25 = pneg %p19
    %p26 = scmp.eq.s32.totalorder %s10, 1
    %p27 = por %p25, %p26
    %p28 = scmp.ne.s32.totalorder %s20, %s23
    %p29 = scmp.eq.s32.totalorder %s10, 0
    %p30 = por %p28, %p29
    %p31 = scmp.ne.s32.totalorder %s20, %s23
    %p32 = scmp.eq.s32.totalorder %s15, 1
    %p33 = por %p31, %p32
    %p34 = scmp.ne.s32.totalorder %s23, %s24
    %p35 = scmp.eq.s32.totalorder %s15, 0
    %p36 = por %p34, %p35
    %p37 = scmp.ne.s32.totalorder %s23, %s24
    %p38 = scmp.eq.s32.totalorder %s16, 1
    %p39 = por %p37, %p38
    %p41 = scmp.ne.s32.totalorder %s24, %s40
    %p42 = scmp.eq.s32.totalorder %s16, 0
    %p43 = por %p41, %p42
    %s45 = sadd.s32 %s44, 1
    %p48 = scmp.eq.s32.totalorder %s10, 1
    %p49 = scmp.ne.s32.totalorder %s44, %s46
    %p50 = scmp.eq.s32.totalorder %s10, 0
    %p51 = por %p49, %p50
    %p52 = scmp.ne.s32.totalorder %s44, %s46
    %p53 = scmp.eq.s32.totalorder %s15, 1
    %p54 = por %p52, %p53
    %p55 = scmp.ne.s32.totalorder %s46, %s47
    %p56 = scmp.eq.s32.totalorder %s15, 0
    %p57 = por %p55, %p56
    %p58 = scmp.ne.s32.totalorder %s46, %s47
    %p59 = scmp.eq.s32.totalorder %s16, 1
    %p60 = por %p58, %p59
    %p62 = scmp.ne.s32.totalorder %s47, %s61
    %p63 = scmp.eq.s32.totalorder %s16, 0
    %p64 = por %p62, %p63
    %s66 = sadd.s32 %s65, 1
    %p69 = scmp.eq.s32.totalorder %s10, 1
    %p70 = scmp.ne.s32.totalorder %s65, %s67
    %p71 = scmp.eq.s32.totalorder %s10, 0
    %p72 = por %p70, %p71
    %p73 = scmp.ne.s32.totalorder %s65, %s67
    %p74 = scmp.eq.s32.totalorder %s15, 1
    %p75 = por %p73, %p74
    %p76 = scmp.ne.s32.totalorder %s67, %s68
    %p77 = scmp.eq.s32.totalorder %s15, 0
    %p78 = por %p76, %p77
    %p79 = scmp.ne.s32.totalorder %s67, %s68
    %p80 = scmp.eq.s32.totalorder %s16, 1
    %p81 = por %p79, %p80
    %p83 = scmp.ne.s32.totalorder %s68, %s82
    %p84 = scmp.eq.s32.totalorder %s16, 0
    %p85 = por %p83, %p84
    %s87 = sadd.s32 %s86, 1
    %p90 = scmp.eq.s32.totalorder %s10, 1
    %p91 = scmp.ne.s32.totalorder %s86, %s88
    %p92 = scmp.eq.s32.totalorder %s10, 0
    %p93 = por %p91, %p92
    %p94 = scmp.ne.s32.totalorder %s86, %s88
    %p95 = scmp.eq.s32.totalorder %s15, 1
    %p96 = por %p94, %p95
    %p97 = scmp.ne.s32.totalorder %s88, %s89
    %p98 = scmp.eq.s32.totalorder %s15, 0
    %p99 = por %p97, %p98
    %p100 = scmp.ne.s32.totalorder %s88, %s89
    %p101 = scmp.eq.s32.totalorder %s16, 1
    %p102 = por %p100, %p101
    %p104 = scmp.ne.s32.totalorder %s89, %s103
    %p105 = scmp.eq.s32.totalorder %s16, 0
    %p106 = por %p104, %p105
    %s107 = ssub.s32 %s10, %s17
    %p108 = scmp.eq.s32.totalorder %s107, 0
    %s110 = sadd.s32 %s109, 1
    %s111 = scalar_select %p108, %s109, %s110
    %p114 = pneg %p108
    %p115 = scmp.eq.s32.totalorder %s10, 1
    %p116 = por %p114, %p115
    %p117 = scmp.ne.s32.totalorder %s109, %s112
    %p118 = scmp.eq.s32.totalorder %s10, 0
    %p119 = por %p117, %p118
    %p120 = scmp.ne.s32.totalorder %s109, %s112
    %p121 = scmp.eq.s32.totalorder %s15, 1
    %p122 = por %p120, %p121
    %p123 = scmp.ne.s32.totalorder %s112, %s113
    %p124 = scmp.eq.s32.totalorder %s15, 0
    %p125 = por %p123, %p124
    %p126 = scmp.ne.s32.totalorder %s112, %s113
    %p127 = scmp.eq.s32.totalorder %s16, 1
    %p128 = por %p126, %p127
    %p130 = scmp.ne.s32.totalorder %s113, %s129
    %p131 = scmp.eq.s32.totalorder %s16, 0
    %p132 = por %p130, %p131
    %p133 = scmp.le.s32.totalorder 1, %s10
    %p134 = scmp.lt.s32.totalorder %s10, 3
    %p135 = pnand %p133, %p134
    %p136 = pneg %p135
    // Predicated region
    $region9: #{convnet_forward.4} parent=5 // pred_check
      _
    $region10: #{convnet_forward.4} parent=5 // pred_check_branch
      %138 = sbr.rel (%p135) target = $region12
    $region11: #{convnet_forward.4} parent=5 // pred_region
      %s139 = ssub.s32 %s10, 1
      // Predicated region
      $region13: #{convnet_forward.4} parent=11 // pred_check
        %p140 = pneg %p57
      $region14: #{convnet_forward.4} parent=11 // pred_check_branch
        %142 = sbr.rel (%p140) target = $region16
      $region15: #{convnet_forward.4} parent=11 // pred_region
        _
      $region16: #{convnet_forward.4} parent=11 // pred_fallthru
        _
      // Predicated region
      $region17: #{convnet_forward.4} parent=11 // pred_check
        %p143 = pneg %p78
      $region18: #{convnet_forward.4} parent=11 // pred_check_branch
        %145 = sbr.rel (%p143) target = $region20
      $region19: #{convnet_forward.4} parent=11 // pred_region
        _
      $region20: #{convnet_forward.4} parent=11 // pred_fallthru
        _
      // Predicated region
      $region21: #{convnet_forward.4} parent=11 // pred_check
        %p146 = pneg %p99
      $region22: #{convnet_forward.4} parent=11 // pred_check_branch
        %148 = sbr.rel (%p146) target = $region24
      $region23: #{convnet_forward.4} parent=11 // pred_region
        _
      $region24: #{convnet_forward.4} parent=11 // pred_fallthru
        _
    $region12: #{convnet_forward.4} parent=5 // pred_fallthru
      _
    %p149 = scmp.lt.s32.totalorder %s10, 2
    // Predicated region
    $region25: #{convnet_forward.4} parent=5 // pred_check
      %p150 = pneg %p149
    $region26: #{convnet_forward.4} parent=5 // pred_check_branch
      %152 = sbr.rel (%p150) target = $region28
    $region27: #{convnet_forward.4} parent=5 // pred_region
      // Predicated region
      $region29: #{convnet_forward.4} parent=27 // pred_check
        %p153 = pneg %p30
      $region30: #{convnet_forward.4} parent=27 // pred_check_branch
        %155 = sbr.rel (%p153) target = $region32
      $region31: #{convnet_forward.4} parent=27 // pred_region
        %p156 = scmp.lt.s32.totalorder %s10, 1
        %s157 = scalar_select %p156, %s10, 1
        %s158 = smul.addr %s157, 100
        %s159 = smul.addr %s158, 4
        %s160 = scalar_lea.vmem %s0, %s159
      $region32: #{convnet_forward.4} parent=27 // pred_fallthru
        _
    $region28: #{convnet_forward.4} parent=5 // pred_fallthru
      _
    %p161 = scmp.le.s32.totalorder 1, %s10
    %p162 = scmp.lt.s32.totalorder %s10, 3
    %p163 = pnand %p161, %p162
    %p164 = pneg %p163
    // Predicated region
    $region33: #{convnet_forward.4} parent=5 // pred_check
      _
    $region34: #{convnet_forward.4} parent=5 // pred_check_branch
      %166 = sbr.rel (%p163) target = $region36
    $region35: #{convnet_forward.4} parent=5 // pred_region
      %s167 = ssub.s32 %s10, 1
      %p168 = scmp.lt.s32.totalorder %s15, 1
      %s169 = scalar_select %p168, %s15, 1
      %s170 = smul.addr %s169, 100
      %s171 = smul.addr %s170, 4
      %s172 = scalar_lea.vmem %s0, %s171
      %p173 = pneg %p36
      %p174 = pneg %p33
      %p175 = pneg %p57
      %p176 = pneg %p54
      %p177 = pneg %p78
      %p178 = pneg %p75
      %p179 = pneg %p99
      %p180 = pneg %p96
      %p181 = pneg %p125
      %p182 = pneg %p122
      %p183 = scmp.lt.s32.totalorder %s15, 1
      %s184 = scalar_select %p183, %s15, 1
      %s185 = smul.addr %s184, 2
      %s186 = smul.addr %s185, 4
      %s187 = scalar_lea.vmem %s4, %s186
      %p188 = scmp.lt.s32.totalorder %s15, 1
      %s189 = scalar_select %p188, %s15, 1
      %s190 = smul.addr %s189, 100
      %s191 = smul.addr %s190, 4
      %s192 = scalar_lea.vmem %s0, %s191
      %p193 = scmp.lt.s32.totalorder %s15, 1
      %s194 = scalar_select %p193, %s15, 1
      %s195 = smul.addr %s194, 2
      %s196 = smul.addr %s195, 4
      %s197 = scalar_lea.vmem %s4, %s196
      %v199 = vld [vmem:[%s192] sm:$0xff]
      %v200 = vld [vmem:[%s192 + $0x8] sm:$0xff]
      %v201 = vld [vmem:[%s192 + $0x10] sm:$0xff]
      %v202 = vld [vmem:[%s192 + $0x18] sm:$0xff]
      %v203 = vld [vmem:[%s192 + $0x20] sm:$0xff]
      %v204 = vld [vmem:[%s192 + $0x28] sm:$0xff]
      %v205 = vld [vmem:[%s192 + $0x30] sm:$0xff]
      %v206 = vld [vmem:[%s192 + $0x38] sm:$0xff]
      %v207 = vld [vmem:[%s192 + $0x40] sm:$0xff]
      %v208 = vld [vmem:[%s192 + $0x48] sm:$0xff]
      %v209 = vld [vmem:[%s192 + $0x50] sm:$0xff]
      %v210 = vld [vmem:[%s192 + $0x58] sm:$0xff]
      %v211 = vld [vmem:[%s192 + $0x60] sm:$0xff]
      %v212 = vld [vmem:[%s192 + $0x68] sm:$0xff]
      %v213 = vld [vmem:[%s192 + $0x70] sm:$0xff]
      %v214 = vld [vmem:[%s192 + $0x78] sm:$0xff]
      %v215 = vld [vmem:[%s192 + $0x80] sm:$0xff]
      %v216 = vld [vmem:[%s192 + $0x88] sm:$0xff]
      %v217 = vld [vmem:[%s192 + $0x90] sm:$0xff]
      %v218 = vld [vmem:[%s192 + $0x98] sm:$0xff]
      %v219 = vld [vmem:[%s192 + $0xa0] sm:$0xff]
      %v220 = vld [vmem:[%s192 + $0xa8] sm:$0xff]
      %v221 = vld [vmem:[%s192 + $0xb0] sm:$0xff]
      %v222 = vld [vmem:[%s192 + $0xb8] sm:$0xff]
      %v223 = vld [vmem:[%s192 + $0xc0] sm:$0xff]
      %v224 = vld [vmem:[%s192 + $0xc8] sm:$0xff]
      %v225 = vld [vmem:[%s192 + $0xd0] sm:$0xff]
      %v226 = vld [vmem:[%s192 + $0xd8] sm:$0xff]
      %v227 = vld [vmem:[%s192 + $0xe0] sm:$0xff]
      %v228 = vld [vmem:[%s192 + $0xe8] sm:$0xff]
      %v229 = vld [vmem:[%s192 + $0xf0] sm:$0xff]
      %v230 = vld [vmem:[%s192 + $0xf8] sm:$0xff]
      %v231 = vld [vmem:[%s192 + $0x100] sm:$0xff]
      %v232 = vld [vmem:[%s192 + $0x108] sm:$0xff]
      %v233 = vld [vmem:[%s192 + $0x110] sm:$0xff]
      %v234 = vld [vmem:[%s192 + $0x118] sm:$0xff]
      %v235 = vld [vmem:[%s192 + $0x120] sm:$0xff]
      %v236 = vld [vmem:[%s192 + $0x128] sm:$0xff]
      %v237 = vld [vmem:[%s192 + $0x130] sm:$0xff]
      %v238 = vld [vmem:[%s192 + $0x138] sm:$0xff]
      %v239 = vld [vmem:[%s192 + $0x140] sm:$0xff]
      %v240 = vld [vmem:[%s192 + $0x148] sm:$0xff]
      %v241 = vld [vmem:[%s192 + $0x150] sm:$0xff]
      %v242 = vld [vmem:[%s192 + $0x158] sm:$0xff]
      %v243 = vld [vmem:[%s192 + $0x160] sm:$0xff]
      %v244 = vld [vmem:[%s192 + $0x168] sm:$0xff]
      %v245 = vld [vmem:[%s192 + $0x170] sm:$0xff]
      %v246 = vld [vmem:[%s192 + $0x178] sm:$0xff]
      %v247 = vld [vmem:[%s192 + $0x180] sm:$0xff]
      %v248 = vld [vmem:[%s192 + $0x188] sm:$0xff]
      %v249 = vld [vmem:[%s1] sm:$0xff]
      %v250 = vld [vmem:[%s1 + $0x8] sm:$0xff]
      %v251 = vld [vmem:[%s2] sm:$0xff]
      %v252 = vld [vmem:[%s2 + $0x8] sm:$0xff]
      %v253 = vld [vmem:[%s3] sm:$0x1]
      %v254 = vld [vmem:[%s3 + $0x1] sm:$0x1]
      %256 = vset.pattern.permute.xlu0 0
      %257 = vperm.xlu0 %256, %v251
      %v258 = vpop.permute.xlu0 %257
      %261 = vset.pattern.permute.xlu0 0
      %262 = vperm.xlu0 %261, %v252
      %v263 = vpop.permute.xlu0 %262
      %v267 = vunpack.c.l.b16 %v249
      %v268 = vunpack.c.h.b16 %v249
      %v269 = vunpack.c.l.b16 %v250
      %v270 = vunpack.c.h.b16 %v250
      %v271 = vpack.c.b16 %v269, %v267
      %v272 = vpack.c.b16 %v270, %v268
      %v324 = vunpack.c.l.b16 %v199
      %v325 = vunpack.c.h.b16 %v199
      %v326 = vunpack.c.l.b16 %v200
      %v327 = vunpack.c.h.b16 %v200
      %v328 = vunpack.c.l.b16 %v201
      %v329 = vunpack.c.h.b16 %v201
      %v330 = vunpack.c.l.b16 %v202
      %v331 = vunpack.c.h.b16 %v202
      %v332 = vunpack.c.l.b16 %v203
      %v333 = vunpack.c.h.b16 %v203
      %v334 = vunpack.c.l.b16 %v204
      %v335 = vunpack.c.h.b16 %v204
      %v336 = vunpack.c.l.b16 %v205
      %v337 = vunpack.c.h.b16 %v205
      %v338 = vunpack.c.l.b16 %v206
      %v339 = vunpack.c.h.b16 %v206
      %v340 = vunpack.c.l.b16 %v207
      %v341 = vunpack.c.h.b16 %v207
      %v342 = vunpack.c.l.b16 %v208
      %v343 = vunpack.c.h.b16 %v208
      %v344 = vunpack.c.l.b16 %v209
      %v345 = vunpack.c.h.b16 %v209
      %v346 = vunpack.c.l.b16 %v210
      %v347 = vunpack.c.h.b16 %v210
      %v348 = vunpack.c.l.b16 %v211
      %v349 = vunpack.c.h.b16 %v211
      %v350 = vunpack.c.l.b16 %v212
      %v351 = vunpack.c.h.b16 %v212
      %v352 = vunpack.c.l.b16 %v213
      %v353 = vunpack.c.h.b16 %v213
      %v354 = vunpack.c.l.b16 %v214
      %v355 = vunpack.c.h.b16 %v214
      %v356 = vunpack.c.l.b16 %v215
      %v357 = vunpack.c.h.b16 %v215
      %v358 = vunpack.c.l.b16 %v216
      %v359 = vunpack.c.h.b16 %v216
      %v360 = vunpack.c.l.b16 %v217
      %v361 = vunpack.c.h.b16 %v217
      %v362 = vunpack.c.l.b16 %v218
      %v363 = vunpack.c.h.b16 %v218
      %v364 = vunpack.c.l.b16 %v219
      %v365 = vunpack.c.h.b16 %v219
      %v366 = vunpack.c.l.b16 %v220
      %v367 = vunpack.c.h.b16 %v220
      %v368 = vunpack.c.l.b16 %v221
      %v369 = vunpack.c.h.b16 %v221
      %v370 = vunpack.c.l.b16 %v222
      %v371 = vunpack.c.h.b16 %v222
      %v372 = vunpack.c.l.b16 %v223
      %v373 = vunpack.c.h.b16 %v223
      %v374 = vunpack.c.l.b16 %v224
      %v375 = vunpack.c.h.b16 %v224
      %v376 = vunpack.c.l.b16 %v225
      %v377 = vunpack.c.h.b16 %v225
      %v378 = vunpack.c.l.b16 %v226
      %v379 = vunpack.c.h.b16 %v226
      %v380 = vunpack.c.l.b16 %v227
      %v381 = vunpack.c.h.b16 %v227
      %v382 = vunpack.c.l.b16 %v228
      %v383 = vunpack.c.h.b16 %v228
      %v384 = vunpack.c.l.b16 %v229
      %v385 = vunpack.c.h.b16 %v229
      %v386 = vunpack.c.l.b16 %v230
      %v387 = vunpack.c.h.b16 %v230
      %v388 = vunpack.c.l.b16 %v231
      %v389 = vunpack.c.h.b16 %v231
      %v390 = vunpack.c.l.b16 %v232
      %v391 = vunpack.c.h.b16 %v232
      %v392 = vunpack.c.l.b16 %v233
      %v393 = vunpack.c.h.b16 %v233
      %v394 = vunpack.c.l.b16 %v234
      %v395 = vunpack.c.h.b16 %v234
      %v396 = vunpack.c.l.b16 %v235
      %v397 = vunpack.c.h.b16 %v235
      %v398 = vunpack.c.l.b16 %v236
      %v399 = vunpack.c.h.b16 %v236
      %v400 = vunpack.c.l.b16 %v237
      %v401 = vunpack.c.h.b16 %v237
      %v402 = vunpack.c.l.b16 %v238
      %v403 = vunpack.c.h.b16 %v238
      %v404 = vunpack.c.l.b16 %v239
      %v405 = vunpack.c.h.b16 %v239
      %v406 = vunpack.c.l.b16 %v240
      %v407 = vunpack.c.h.b16 %v240
      %v408 = vunpack.c.l.b16 %v241
      %v409 = vunpack.c.h.b16 %v241
      %v410 = vunpack.c.l.b16 %v242
      %v411 = vunpack.c.h.b16 %v242
      %v412 = vunpack.c.l.b16 %v243
      %v413 = vunpack.c.h.b16 %v243
      %v414 = vunpack.c.l.b16 %v244
      %v415 = vunpack.c.h.b16 %v244
      %v416 = vunpack.c.l.b16 %v245
      %v417 = vunpack.c.h.b16 %v245
      %v418 = vunpack.c.l.b16 %v246
      %v419 = vunpack.c.h.b16 %v246
      %v420 = vunpack.c.l.b16 %v247
      %v421 = vunpack.c.h.b16 %v247
      %v422 = vunpack.c.l.b16 %v248
      %v423 = vunpack.c.h.b16 %v248
      %v424 = vpack.c.b16 %v328, %v324
      %v425 = vpack.c.b16 %v329, %v325
      %v426 = vpack.c.b16 %v330, %v326
      %v427 = vpack.c.b16 %v331, %v327
      %v428 = vpack.c.b16 %v336, %v332
      %v429 = vpack.c.b16 %v337, %v333
      %v430 = vpack.c.b16 %v338, %v334
      %v431 = vpack.c.b16 %v339, %v335
      %v432 = vpack.c.b16 %v344, %v340
      %v433 = vpack.c.b16 %v345, %v341
      %v434 = vpack.c.b16 %v346, %v342
      %v435 = vpack.c.b16 %v347, %v343
      %v436 = vpack.c.b16 %v352, %v348
      %v437 = vpack.c.b16 %v353, %v349
      %v438 = vpack.c.b16 %v354, %v350
      %v439 = vpack.c.b16 %v355, %v351
      %v440 = vpack.c.b16 %v360, %v356
      %v441 = vpack.c.b16 %v361, %v357
      %v442 = vpack.c.b16 %v362, %v358
      %v443 = vpack.c.b16 %v363, %v359
      %v444 = vpack.c.b16 %v368, %v364
      %v445 = vpack.c.b16 %v369, %v365
      %v446 = vpack.c.b16 %v370, %v366
      %v447 = vpack.c.b16 %v371, %v367
      %v448 = vpack.c.b16 %v376, %v372
      %v449 = vpack.c.b16 %v377, %v373
      %v450 = vpack.c.b16 %v378, %v374
      %v451 = vpack.c.b16 %v379, %v375
      %v452 = vpack.c.b16 %v384, %v380
      %v453 = vpack.c.b16 %v385, %v381
      %v454 = vpack.c.b16 %v386, %v382
      %v455 = vpack.c.b16 %v387, %v383
      %v456 = vpack.c.b16 %v392, %v388
      %v457 = vpack.c.b16 %v393, %v389
      %v458 = vpack.c.b16 %v394, %v390
      %v459 = vpack.c.b16 %v395, %v391
      %v460 = vpack.c.b16 %v400, %v396
      %v461 = vpack.c.b16 %v401, %v397
      %v462 = vpack.c.b16 %v402, %v398
      %v463 = vpack.c.b16 %v403, %v399
      %v464 = vpack.c.b16 %v408, %v404
      %v465 = vpack.c.b16 %v409, %v405
      %v466 = vpack.c.b16 %v410, %v406
      %v467 = vpack.c.b16 %v411, %v407
      %v468 = vpack.c.b16 %v416, %v412
      %v469 = vpack.c.b16 %v417, %v413
      %v470 = vpack.c.b16 %v418, %v414
      %v471 = vpack.c.b16 %v419, %v415
      %v472 = vpack.c.b16 %v420, %v420
      %v473 = vpack.c.b16 %v421, %v421
      %v474 = vpack.c.b16 %v422, %v422
      %v475 = vpack.c.b16 %v423, %v423
      %vm524 = vcmask 588800
      %v526 = vsel %vm524, %v272, 0
      %vm528 = vcmask 1043456
      %v530 = vsel %vm528, %v472, 0
      %v533 = vsel %vm528, %v473, 0
      %v536 = vsel %vm528, %v474, 0
      %v539 = vsel %vm528, %v475, 0
      %541 = vmatpush.bf16.msra.mxu0 %v452
      %542 = vmatpush.bf16.msra.mxu0 %v448
      %543 = vmatpush.bf16.msra.mxu0 %v444
      %544 = vmatpush.bf16.msra.mxu0 %v440
      %545 = vmatpush.bf16.msra.mxu0 %v436
      %546 = vmatpush.bf16.msra.mxu0 %v432
      %547 = vmatpush.bf16.msra.mxu0 %v428
      %548 = vmatpush.bf16.msra.mxu0 %v424
      %549 = vmatmul.bf16.gmra.mxu0 %v271
      %v550 = vpop.f32.mrf.mxu0
      %v551 = vadd.f32 %v258, %v550
      %v552 = vpop.f32.mrf.mxu0
      %v553 = vadd.f32 %v263, %v552
      %554 = vdwg.mxu0
      %555 = vmatpush.bf16.msra.mxu0 0
      %556 = vmatpush.bf16.msra.mxu0 0
      %557 = vmatpush.bf16.msra.mxu0 0
      %558 = vmatpush.bf16.msra.mxu0 %v530
      %559 = vmatpush.bf16.msra.mxu0 %v468
      %560 = vmatpush.bf16.msra.mxu0 %v464
      %561 = vmatpush.bf16.msra.mxu0 %v460
      %562 = vmatpush.bf16.msra.mxu0 %v456
      %563 = vmatmul.bf16.gmra.mxu0 %v526
      %v564 = vpop.f32.mrf.mxu0
      %v565 = vadd.f32 %v551, %v564
      %v566 = vpop.f32.mrf.mxu0
      %v567 = vadd.f32 %v553, %v566
      %568 = vdwg.mxu0
      %569 = vmatpush.bf16.msra.mxu0 %v453
      %570 = vmatpush.bf16.msra.mxu0 %v449
      %571 = vmatpush.bf16.msra.mxu0 %v445
      %572 = vmatpush.bf16.msra.mxu0 %v441
      %573 = vmatpush.bf16.msra.mxu0 %v437
      %574 = vmatpush.bf16.msra.mxu0 %v433
      %575 = vmatpush.bf16.msra.mxu0 %v429
      %576 = vmatpush.bf16.msra.mxu0 %v425
      %577 = vmatmul.bf16.gmra.mxu0 %v271
      %v578 = vpop.f32.mrf.mxu0
      %v579 = vadd.f32 %v258, %v578
      %v580 = vpop.f32.mrf.mxu0
      %v581 = vadd.f32 %v263, %v580
      %582 = vdwg.mxu0
      %583 = vmatpush.bf16.msra.mxu0 0
      %584 = vmatpush.bf16.msra.mxu0 0
      %585 = vmatpush.bf16.msra.mxu0 0
      %586 = vmatpush.bf16.msra.mxu0 %v533
      %587 = vmatpush.bf16.msra.mxu0 %v469
      %588 = vmatpush.bf16.msra.mxu0 %v465
      %589 = vmatpush.bf16.msra.mxu0 %v461
      %590 = vmatpush.bf16.msra.mxu0 %v457
      %591 = vmatmul.bf16.gmra.mxu0 %v526
      %v592 = vpop.f32.mrf.mxu0
      %v593 = vadd.f32 %v579, %v592
      %v594 = vpop.f32.mrf.mxu0
      %v595 = vadd.f32 %v581, %v594
      %596 = vdwg.mxu0
      %597 = vmatpush.bf16.msra.mxu0 %v454
      %598 = vmatpush.bf16.msra.mxu0 %v450
      %599 = vmatpush.bf16.msra.mxu0 %v446
      %600 = vmatpush.bf16.msra.mxu0 %v442
      %601 = vmatpush.bf16.msra.mxu0 %v438
      %602 = vmatpush.bf16.msra.mxu0 %v434
      %603 = vmatpush.bf16.msra.mxu0 %v430
      %604 = vmatpush.bf16.msra.mxu0 %v426
      %605 = vmatmul.bf16.gmra.mxu0 %v271
      %v606 = vpop.f32.mrf.mxu0
      %v607 = vadd.f32 %v258, %v606
      %v608 = vpop.f32.mrf.mxu0
      %v609 = vadd.f32 %v263, %v608
      %610 = vdwg.mxu0
      %611 = vmatpush.bf16.msra.mxu0 0
      %612 = vmatpush.bf16.msra.mxu0 0
      %613 = vmatpush.bf16.msra.mxu0 0
      %614 = vmatpush.bf16.msra.mxu0 %v536
      %615 = vmatpush.bf16.msra.mxu0 %v470
      %616 = vmatpush.bf16.msra.mxu0 %v466
      %617 = vmatpush.bf16.msra.mxu0 %v462
      %618 = vmatpush.bf16.msra.mxu0 %v458
      %619 = vmatmul.bf16.gmra.mxu0 %v526
      %v620 = vpop.f32.mrf.mxu0
      %v621 = vadd.f32 %v607, %v620
      %v622 = vpop.f32.mrf.mxu0
      %v623 = vadd.f32 %v609, %v622
      %624 = vdwg.mxu0
      %625 = vmatpush.bf16.msra.mxu0 %v455
      %626 = vmatpush.bf16.msra.mxu0 %v451
      %627 = vmatpush.bf16.msra.mxu0 %v447
      %628 = vmatpush.bf16.msra.mxu0 %v443
      %629 = vmatpush.bf16.msra.mxu0 %v439
      %630 = vmatpush.bf16.msra.mxu0 %v435
      %631 = vmatpush.bf16.msra.mxu0 %v431
      %632 = vmatpush.bf16.msra.mxu0 %v427
      %633 = vmatmul.bf16.gmra.mxu0 %v271
      %v634 = vpop.f32.mrf.mxu0
      %v635 = vadd.f32 %v258, %v634
      %v636 = vpop.f32.mrf.mxu0
      %v637 = vadd.f32 %v263, %v636
      %638 = vdwg.mxu0
      %639 = vmatpush.bf16.msra.mxu0 0
      %640 = vmatpush.bf16.msra.mxu0 0
      %641 = vmatpush.bf16.msra.mxu0 0
      %642 = vmatpush.bf16.msra.mxu0 %v539
      %643 = vmatpush.bf16.msra.mxu0 %v471
      %644 = vmatpush.bf16.msra.mxu0 %v467
      %645 = vmatpush.bf16.msra.mxu0 %v463
      %646 = vmatpush.bf16.msra.mxu0 %v459
      %647 = vmatmul.bf16.gmra.mxu0 %v526
      %v648 = vpop.f32.mrf.mxu0
      %v649 = vadd.f32 %v635, %v648
      %v650 = vpop.f32.mrf.mxu0
      %v651 = vadd.f32 %v637, %v650
      %652 = vdwg.mxu0
      %v653 = vmax.f32 %v565, 0.0
      %v654 = vmax.f32 %v593, 0.0
      %v655 = vmax.f32 %v621, 0.0
      %v656 = vmax.f32 %v649, 0.0
      %v657 = vmax.f32 %v567, 0.0
      %v658 = vmax.f32 %v595, 0.0
      %v659 = vmax.f32 %v623, 0.0
      %v660 = vmax.f32 %v651, 0.0
      %v661 = vmax.f32 %v653, %v654
      %v662 = vmax.f32 %v657, %v658
      %663 = vrot.lane.b32.xlu0 %v654, 1
      %v664 = vpop.permute.xlu0 %663
      %665 = vrot.lane.b32.xlu0 %v658, 1
      %v666 = vpop.permute.xlu0 %665
      %v667 = vperm.slane %v253, 0
      %v668 = vmul.f32 %v664, %v667
      %v669 = vmul.f32 %v666, %v667
      %v670 = vmax.f32 %v661, %v668
      %v671 = vmax.f32 %v662, %v669
      %v672 = vmax.f32 %v655, %v656
      %v673 = vmax.f32 %v659, %v660
      %674 = vrot.lane.b32.xlu0 %v656, 1
      %v675 = vpop.permute.xlu0 %674
      %676 = vrot.lane.b32.xlu0 %v660, 1
      %v677 = vpop.permute.xlu0 %676
      %v678 = vmul.f32 %v675, %v667
      %v679 = vmul.f32 %v677, %v667
      %v680 = vmax.f32 %v672, %v678
      %v681 = vmax.f32 %v673, %v679
      %v682 = vmax.f32 %v670, %v680
      %v683 = vmax.f32 %v671, %v681
      %684 = vrot.lane.b32.xlu0 %v680, 6
      %v685 = vpop.permute.xlu0 %684
      %686 = vrot.lane.b32.xlu0 %v681, 6
      %v687 = vpop.permute.xlu0 %686
      %v688 = vperm.slane %v254, 0
      %v689 = vmul.f32 %v685, %v688
      %v690 = vmul.f32 %v687, %v688
      %v691 = vmax.f32 %v682, %v689
      %v692 = vmax.f32 %v683, %v690
      %v693 = vpack.c.bf16 %v691, %v691
      %v694 = vpack.c.bf16 %v692, %v692
      %695 = vst [vmem:[%s197] sm:$0xf] %v693
      %696 = vst [vmem:[%s197 + $0x4] sm:$0xf] %v694
      %p697 = scmp.lt.s32.totalorder %s15, 1
      %s698 = scalar_select %p697, %s15, 1
      %s699 = smul.addr %s698, 2
      %s700 = smul.addr %s699, 4
      %s701 = scalar_lea.vmem %s4, %s700
      // Predicated region
      $region37: #{convnet_forward.4} parent=35 // pred_check
        %p702 = pneg %p122
      $region38: #{convnet_forward.4} parent=35 // pred_check_branch
        %704 = sbr.rel (%p702) target = $region40
      $region39: #{convnet_forward.4} parent=35 // pred_region
        _
      $region40: #{convnet_forward.4} parent=35 // pred_fallthru
        _
    $region36: #{convnet_forward.4} parent=5 // pred_fallthru
      _
    %p705 = scmp.le.s32.totalorder 2, %s10
    // Predicated region
    $region41: #{convnet_forward.4} parent=5 // pred_check
      %p706 = pneg %p705
    $region42: #{convnet_forward.4} parent=5 // pred_check_branch
      %708 = sbr.rel (%p706) target = $region44
    $region43: #{convnet_forward.4} parent=5 // pred_region
      %s709 = ssub.s32 %s10, 2
      // Predicated region
      $region45: #{convnet_forward.4} parent=43 // pred_check
        %p710 = pneg %p128
      $region46: #{convnet_forward.4} parent=43 // pred_check_branch
        %712 = sbr.rel (%p710) target = $region48
      $region47: #{convnet_forward.4} parent=43 // pred_region
        %p713 = scmp.lt.s32.totalorder %s16, 1
        %s714 = scalar_select %p713, %s16, 1
        %s715 = smul.addr %s714, 2
        %s716 = smul.addr %s715, 4
        %s717 = scalar_lea.vmem %s4, %s716
      $region48: #{convnet_forward.4} parent=43 // pred_fallthru
        _
    $region44: #{convnet_forward.4} parent=5 // pred_fallthru
      _
  $region6: #{convnet_forward.4} parent=0 // loop_footer
    %s14 = sadd.s32 1, %s10
  $region7: #{convnet_forward.4} parent=0 // loop_footer_branch
    %9 = sbr.rel target = $region3
  $region8: #{convnet_forward.4} parent=0 // loop_exit
    _

// kernel: convnet_forward.5
$region0: #{convnet_forward.5}
  #allocation0 [shape = 'u32[]', space=smem, size = 0x4, offset = 0x4, fixed_abs, tag = 'smem constant byte address 0x4 - core index']
  #allocation1 [shape = 'u32[72,128]{1,0:T(1,128)}', space=vmem, size = 0x9000, scoped, tag = 'internal scratch']
  #allocation2 [shape = 'f32[1,1]{1,0:T(1,128)S(1)}', space=vmem, size = 0x200, scoped, tag = 'scoped memory for convnet_forward.5']
  %s0 = inlined_call_operand.vmem [shape: bf16[2,144,2048], index: 0, kind: input, shape index: {}]
  %s1 = inlined_call_operand.vmem [shape: bf16[32,144], index: 1, kind: input, shape index: {}]
  %s2 = inlined_call_operand.vmem [shape: f32[32,1], index: 2, kind: input, shape index: {}]
  %s3 = inlined_call_operand.vmem [shape: f32[2,512], index: 3, kind: input, shape index: {}]
  %s4 = inlined_call_operand.vmem [shape: bf16[4,32,32], index: 4, kind: input, shape index: {}]
  %s5 = inlined_call_operand.vmem [shape: f32[32,1], index: 5, kind: input, shape index: {}]
  %s6 = inlined_call_operand.vmem [shape: bf16[8,32], index: 6, kind: input, shape index: {}]
  %s7 = inlined_call_operand.vmem [shape: f32[8,1], index: 7, kind: input, shape index: {}]
  %s8 = inlined_call_operand.vmem [shape: bf16[1,8], index: 8, kind: input, shape index: {}]
  %s9 = inlined_call_operand.<no memory space> [shape: f32[1,1], index: 9, kind: input, shape index: {}]
  %s10 = inlined_call_operand.vmem [shape: f32[2,1,128], index: 10, kind: output, shape index: {}]
  %s11 = sld [smem:[#allocation0]]
  $region73: #{convnet_forward.5} parent=0
    _
  %s13 = ssub.s32 1, %s11
  %s14 = scalar_select 0, %s13, %s11
  %v15 = vstv %s9
  %16 = vst [vmem:[#allocation2] sm:$0x1] %v15
  loop: start=0, step=1, limit=4
  $region2: #{convnet_forward.5} parent=0 // loop_pre_header
    _
  $region3: #{convnet_forward.5} parent=0 // loop_header
    %s18 = sphi 0, %s22
    %p19 = scmp.ge.s32.totalorder %s18, 4
    %s28 = sphi 0, %s30
    %s31 = sphi 0, %s28
    %s32 = sphi 0, %s31
    %s48 = sphi 0, %s32
    %s52 = sphi 0, %s52
    %s54 = sphi 0, %s52
    %s55 = sphi 0, %s54
    %s69 = sphi 0, %s55
    %s73 = sphi 0, %s73
    %s75 = sphi 0, %s73
    %s76 = sphi 0, %s75
    %s90 = sphi 0, %s76
    %s94 = sphi 0, %s94
    %s96 = sphi 0, %s94
    %s97 = sphi 0, %s96
    %s111 = sphi 0, %s97
    %s115 = sphi 0, %s115
    %s117 = sphi 0, %s115
    %s118 = sphi 0, %s117
    %s132 = sphi 0, %s118
    %s136 = sphi 0, %s136
    %s138 = sphi 0, %s136
    %s139 = sphi 0, %s138
    %s153 = sphi 0, %s139
    %s157 = sphi 0, %s157
    %s159 = sphi 0, %s157
    %s160 = sphi 0, %s159
    %s174 = sphi 0, %s160
    %s178 = sphi 0, %s178
    %s180 = sphi 0, %s178
    %s181 = sphi 0, %s180
    %s195 = sphi 0, %s181
    %s199 = sphi 0, %s199
    %s201 = sphi 0, %s199
    %s202 = sphi 0, %s201
    %s216 = sphi 0, %s202
    %s220 = sphi 0, %s220
    %s222 = sphi 0, %s220
    %s223 = sphi 0, %s222
    %s237 = sphi 0, %s223
    %s243 = sphi 0, %s245
    %s246 = sphi 0, %s243
    %s247 = sphi 0, %s246
    %s263 = sphi 0, %s247
  $region4: #{convnet_forward.5} parent=0 // loop_header_branch
    %21 = sbr.rel (%p19) target = $region8
  $region5: #{convnet_forward.5} parent=0 // loop_body
    %s23 = ssub.s32 %s18, 1
    %s24 = ssub.s32 %s18, 2
    %s25 = sadd.s32 %s18, 1
    %s26 = ssub.s32 %s18, %s25
    %p27 = scmp.eq.s32.totalorder %s26, 0
    %s29 = sadd.s32 %s28, 1
    %s30 = scalar_select %p27, %s28, %s29
    %p33 = pneg %p27
    %p34 = scmp.eq.s32.totalorder %s18, 1
    %p35 = por %p33, %p34
    %p36 = scmp.ne.s32.totalorder %s28, %s31
    %p37 = scmp.eq.s32.totalorder %s18, 0
    %p38 = por %p36, %p37
    %p39 = scmp.ne.s32.totalorder %s28, %s31
    %p40 = scmp.eq.s32.totalorder %s23, 1
    %p41 = por %p39, %p40
    %p42 = scmp.ne.s32.totalorder %s31, %s32
    %p43 = scmp.eq.s32.totalorder %s23, 0
    %p44 = por %p42, %p43
    %p45 = scmp.ne.s32.totalorder %s31, %s32
    %p46 = scmp.eq.s32.totalorder %s24, 1
    %p47 = por %p45, %p46
    %p49 = scmp.ne.s32.totalorder %s32, %s48
    %p50 = scmp.eq.s32.totalorder %s24, 0
    %p51 = por %p49, %p50
    %s53 = sadd.s32 %s52, 1
    %p56 = scmp.eq.s32.totalorder %s18, 1
    %p57 = scmp.ne.s32.totalorder %s52, %s54
    %p58 = scmp.eq.s32.totalorder %s18, 0
    %p59 = por %p57, %p58
    %p60 = scmp.ne.s32.totalorder %s52, %s54
    %p61 = scmp.eq.s32.totalorder %s23, 1
    %p62 = por %p60, %p61
    %p63 = scmp.ne.s32.totalorder %s54, %s55
    %p64 = scmp.eq.s32.totalorder %s23, 0
    %p65 = por %p63, %p64
    %p66 = scmp.ne.s32.totalorder %s54, %s55
    %p67 = scmp.eq.s32.totalorder %s24, 1
    %p68 = por %p66, %p67
    %p70 = scmp.ne.s32.totalorder %s55, %s69
    %p71 = scmp.eq.s32.totalorder %s24, 0
    %p72 = por %p70, %p71
    %s74 = sadd.s32 %s73, 1
    %p77 = scmp.eq.s32.totalorder %s18, 1
    %p78 = scmp.ne.s32.totalorder %s73, %s75
    %p79 = scmp.eq.s32.totalorder %s18, 0
    %p80 = por %p78, %p79
    %p81 = scmp.ne.s32.totalorder %s73, %s75
    %p82 = scmp.eq.s32.totalorder %s23, 1
    %p83 = por %p81, %p82
    %p84 = scmp.ne.s32.totalorder %s75, %s76
    %p85 = scmp.eq.s32.totalorder %s23, 0
    %p86 = por %p84, %p85
    %p87 = scmp.ne.s32.totalorder %s75, %s76
    %p88 = scmp.eq.s32.totalorder %s24, 1
    %p89 = por %p87, %p88
    %p91 = scmp.ne.s32.totalorder %s76, %s90
    %p92 = scmp.eq.s32.totalorder %s24, 0
    %p93 = por %p91, %p92
    %s95 = sadd.s32 %s94, 1
    %p98 = scmp.eq.s32.totalorder %s18, 1
    %p99 = scmp.ne.s32.totalorder %s94, %s96
    %p100 = scmp.eq.s32.totalorder %s18, 0
    %p101 = por %p99, %p100
    %p102 = scmp.ne.s32.totalorder %s94, %s96
    %p103 = scmp.eq.s32.totalorder %s23, 1
    %p104 = por %p102, %p103
    %p105 = scmp.ne.s32.totalorder %s96, %s97
    %p106 = scmp.eq.s32.totalorder %s23, 0
    %p107 = por %p105, %p106
    %p108 = scmp.ne.s32.totalorder %s96, %s97
    %p109 = scmp.eq.s32.totalorder %s24, 1
    %p110 = por %p108, %p109
    %p112 = scmp.ne.s32.totalorder %s97, %s111
    %p113 = scmp.eq.s32.totalorder %s24, 0
    %p114 = por %p112, %p113
    %s116 = sadd.s32 %s115, 1
    %p119 = scmp.eq.s32.totalorder %s18, 1
    %p120 = scmp.ne.s32.totalorder %s115, %s117
    %p121 = scmp.eq.s32.totalorder %s18, 0
    %p122 = por %p120, %p121
    %p123 = scmp.ne.s32.totalorder %s115, %s117
    %p124 = scmp.eq.s32.totalorder %s23, 1
    %p125 = por %p123, %p124
    %p126 = scmp.ne.s32.totalorder %s117, %s118
    %p127 = scmp.eq.s32.totalorder %s23, 0
    %p128 = por %p126, %p127
    %p129 = scmp.ne.s32.totalorder %s117, %s118
    %p130 = scmp.eq.s32.totalorder %s24, 1
    %p131 = por %p129, %p130
    %p133 = scmp.ne.s32.totalorder %s118, %s132
    %p134 = scmp.eq.s32.totalorder %s24, 0
    %p135 = por %p133, %p134
    %s137 = sadd.s32 %s136, 1
    %p140 = scmp.eq.s32.totalorder %s18, 1
    %p141 = scmp.ne.s32.totalorder %s136, %s138
    %p142 = scmp.eq.s32.totalorder %s18, 0
    %p143 = por %p141, %p142
    %p144 = scmp.ne.s32.totalorder %s136, %s138
    %p145 = scmp.eq.s32.totalorder %s23, 1
    %p146 = por %p144, %p145
    %p147 = scmp.ne.s32.totalorder %s138, %s139
    %p148 = scmp.eq.s32.totalorder %s23, 0
    %p149 = por %p147, %p148
    %p150 = scmp.ne.s32.totalorder %s138, %s139
    %p151 = scmp.eq.s32.totalorder %s24, 1
    %p152 = por %p150, %p151
    %p154 = scmp.ne.s32.totalorder %s139, %s153
    %p155 = scmp.eq.s32.totalorder %s24, 0
    %p156 = por %p154, %p155
    %s158 = sadd.s32 %s157, 1
    %p161 = scmp.eq.s32.totalorder %s18, 1
    %p162 = scmp.ne.s32.totalorder %s157, %s159
    %p163 = scmp.eq.s32.totalorder %s18, 0
    %p164 = por %p162, %p163
    %p165 = scmp.ne.s32.totalorder %s157, %s159
    %p166 = scmp.eq.s32.totalorder %s23, 1
    %p167 = por %p165, %p166
    %p168 = scmp.ne.s32.totalorder %s159, %s160
    %p169 = scmp.eq.s32.totalorder %s23, 0
    %p170 = por %p168, %p169
    %p171 = scmp.ne.s32.totalorder %s159, %s160
    %p172 = scmp.eq.s32.totalorder %s24, 1
    %p173 = por %p171, %p172
    %p175 = scmp.ne.s32.totalorder %s160, %s174
    %p176 = scmp.eq.s32.totalorder %s24, 0
    %p177 = por %p175, %p176
    %s179 = sadd.s32 %s178, 1
    %p182 = scmp.eq.s32.totalorder %s18, 1
    %p183 = scmp.ne.s32.totalorder %s178, %s180
    %p184 = scmp.eq.s32.totalorder %s18, 0
    %p185 = por %p183, %p184
    %p186 = scmp.ne.s32.totalorder %s178, %s180
    %p187 = scmp.eq.s32.totalorder %s23, 1
    %p188 = por %p186, %p187
    %p189 = scmp.ne.s32.totalorder %s180, %s181
    %p190 = scmp.eq.s32.totalorder %s23, 0
    %p191 = por %p189, %p190
    %p192 = scmp.ne.s32.totalorder %s180, %s181
    %p193 = scmp.eq.s32.totalorder %s24, 1
    %p194 = por %p192, %p193
    %p196 = scmp.ne.s32.totalorder %s181, %s195
    %p197 = scmp.eq.s32.totalorder %s24, 0
    %p198 = por %p196, %p197
    %s200 = sadd.s32 %s199, 1
    %p203 = scmp.eq.s32.totalorder %s18, 1
    %p204 = scmp.ne.s32.totalorder %s199, %s201
    %p205 = scmp.eq.s32.totalorder %s18, 0
    %p206 = por %p204, %p205
    %p207 = scmp.ne.s32.totalorder %s199, %s201
    %p208 = scmp.eq.s32.totalorder %s23, 1
    %p209 = por %p207, %p208
    %p210 = scmp.ne.s32.totalorder %s201, %s202
    %p211 = scmp.eq.s32.totalorder %s23, 0
    %p212 = por %p210, %p211
    %p213 = scmp.ne.s32.totalorder %s201, %s202
    %p214 = scmp.eq.s32.totalorder %s24, 1
    %p215 = por %p213, %p214
    %p217 = scmp.ne.s32.totalorder %s202, %s216
    %p218 = scmp.eq.s32.totalorder %s24, 0
    %p219 = por %p217, %p218
    %s221 = sadd.s32 %s220, 1
    %p224 = scmp.eq.s32.totalorder %s18, 1
    %p225 = scmp.ne.s32.totalorder %s220, %s222
    %p226 = scmp.eq.s32.totalorder %s18, 0
    %p227 = por %p225, %p226
    %p228 = scmp.ne.s32.totalorder %s220, %s222
    %p229 = scmp.eq.s32.totalorder %s23, 1
    %p230 = por %p228, %p229
    %p231 = scmp.ne.s32.totalorder %s222, %s223
    %p232 = scmp.eq.s32.totalorder %s23, 0
    %p233 = por %p231, %p232
    %p234 = scmp.ne.s32.totalorder %s222, %s223
    %p235 = scmp.eq.s32.totalorder %s24, 1
    %p236 = por %p234, %p235
    %p238 = scmp.ne.s32.totalorder %s223, %s237
    %p239 = scmp.eq.s32.totalorder %s24, 0
    %p240 = por %p238, %p239
    %s241 = ssub.s32 %s18, %s25
    %p242 = scmp.eq.s32.totalorder %s241, 0
    %s244 = sadd.s32 %s243, 1
    %s245 = scalar_select %p242, %s243, %s244
    %p248 = pneg %p242
    %p249 = scmp.eq.s32.totalorder %s18, 1
    %p250 = por %p248, %p249
    %p251 = scmp.ne.s32.totalorder %s243, %s246
    %p252 = scmp.eq.s32.totalorder %s18, 0
    %p253 = por %p251, %p252
    %p254 = scmp.ne.s32.totalorder %s243, %s246
    %p255 = scmp.eq.s32.totalorder %s23, 1
    %p256 = por %p254, %p255
    %p257 = scmp.ne.s32.totalorder %s246, %s247
    %p258 = scmp.eq.s32.totalorder %s23, 0
    %p259 = por %p257, %p258
    %p260 = scmp.ne.s32.totalorder %s246, %s247
    %p261 = scmp.eq.s32.totalorder %s24, 1
    %p262 = por %p260, %p261
    %p264 = scmp.ne.s32.totalorder %s247, %s263
    %p265 = scmp.eq.s32.totalorder %s24, 0
    %p266 = por %p264, %p265
    %p267 = scmp.le.s32.totalorder 1, %s18
    %p268 = scmp.lt.s32.totalorder %s18, 3
    %p269 = pnand %p267, %p268
    %p270 = pneg %p269
    // Predicated region
    $region9: #{convnet_forward.5} parent=5 // pred_check
      _
    $region10: #{convnet_forward.5} parent=5 // pred_check_branch
      %272 = sbr.rel (%p269) target = $region12
    $region11: #{convnet_forward.5} parent=5 // pred_region
      %s273 = ssub.s32 %s18, 1
      // Predicated region
      $region13: #{convnet_forward.5} parent=11 // pred_check
        %p274 = pneg %p65
      $region14: #{convnet_forward.5} parent=11 // pred_check_branch
        %276 = sbr.rel (%p274) target = $region16
      $region15: #{convnet_forward.5} parent=11 // pred_region
        _
      $region16: #{convnet_forward.5} parent=11 // pred_fallthru
        _
      // Predicated region
      $region17: #{convnet_forward.5} parent=11 // pred_check
        %p277 = pneg %p86
      $region18: #{convnet_forward.5} parent=11 // pred_check_branch
        %279 = sbr.rel (%p277) target = $region20
      $region19: #{convnet_forward.5} parent=11 // pred_region
        _
      $region20: #{convnet_forward.5} parent=11 // pred_fallthru
        _
      // Predicated region
      $region21: #{convnet_forward.5} parent=11 // pred_check
        %p280 = pneg %p107
      $region22: #{convnet_forward.5} parent=11 // pred_check_branch
        %282 = sbr.rel (%p280) target = $region24
      $region23: #{convnet_forward.5} parent=11 // pred_region
        _
      $region24: #{convnet_forward.5} parent=11 // pred_fallthru
        _
      // Predicated region
      $region25: #{convnet_forward.5} parent=11 // pred_check
        %p283 = pneg %p128
      $region26: #{convnet_forward.5} parent=11 // pred_check_branch
        %285 = sbr.rel (%p283) target = $region28
      $region27: #{convnet_forward.5} parent=11 // pred_region
        _
      $region28: #{convnet_forward.5} parent=11 // pred_fallthru
        _
      // Predicated region
      $region29: #{convnet_forward.5} parent=11 // pred_check
        %p286 = pneg %p149
      $region30: #{convnet_forward.5} parent=11 // pred_check_branch
        %288 = sbr.rel (%p286) target = $region32
      $region31: #{convnet_forward.5} parent=11 // pred_region
        _
      $region32: #{convnet_forward.5} parent=11 // pred_fallthru
        _
      // Predicated region
      $region33: #{convnet_forward.5} parent=11 // pred_check
        %p289 = pneg %p170
      $region34: #{convnet_forward.5} parent=11 // pred_check_branch
        %291 = sbr.rel (%p289) target = $region36
      $region35: #{convnet_forward.5} parent=11 // pred_region
        _
      $region36: #{convnet_forward.5} parent=11 // pred_fallthru
        _
      // Predicated region
      $region37: #{convnet_forward.5} parent=11 // pred_check
        %p292 = pneg %p191
      $region38: #{convnet_forward.5} parent=11 // pred_check_branch
        %294 = sbr.rel (%p292) target = $region40
      $region39: #{convnet_forward.5} parent=11 // pred_region
        _
      $region40: #{convnet_forward.5} parent=11 // pred_fallthru
        _
      // Predicated region
      $region41: #{convnet_forward.5} parent=11 // pred_check
        %p295 = pneg %p212
      $region42: #{convnet_forward.5} parent=11 // pred_check_branch
        %297 = sbr.rel (%p295) target = $region44
      $region43: #{convnet_forward.5} parent=11 // pred_region
        _
      $region44: #{convnet_forward.5} parent=11 // pred_fallthru
        _
      // Predicated region
      $region45: #{convnet_forward.5} parent=11 // pred_check
        %p298 = pneg %p233
      $region46: #{convnet_forward.5} parent=11 // pred_check_branch
        %300 = sbr.rel (%p298) target = $region48
      $region47: #{convnet_forward.5} parent=11 // pred_region
        _
      $region48: #{convnet_forward.5} parent=11 // pred_fallthru
        _
    $region12: #{convnet_forward.5} parent=5 // pred_fallthru
      _
    %p301 = scmp.lt.s32.totalorder %s18, 2
    // Predicated region
    $region49: #{convnet_forward.5} parent=5 // pred_check
      %p302 = pneg %p301
    $region50: #{convnet_forward.5} parent=5 // pred_check_branch
      %304 = sbr.rel (%p302) target = $region52
    $region51: #{convnet_forward.5} parent=5 // pred_region
      // Predicated region
      $region53: #{convnet_forward.5} parent=51 // pred_check
        %p305 = pneg %p38
      $region54: #{convnet_forward.5} parent=51 // pred_check_branch
        %307 = sbr.rel (%p305) target = $region56
      $region55: #{convnet_forward.5} parent=51 // pred_region
        %p308 = scmp.lt.s32.totalorder %s18, 1
        %s309 = scalar_select %p308, %s18, 1
        %s310 = smul.addr %s309, 288
        %s311 = smul.addr %s310, 4
        %s312 = scalar_lea.vmem %s0, %s311
      $region56: #{convnet_forward.5} parent=51 // pred_fallthru
        _
    $region52: #{convnet_forward.5} parent=5 // pred_fallthru
      _
    %p313 = scmp.le.s32.totalorder 1, %s18
    %p314 = scmp.lt.s32.totalorder %s18, 3
    %p315 = pnand %p313, %p314
    %p316 = pneg %p315
    // Predicated region
    $region57: #{convnet_forward.5} parent=5 // pred_check
      _
    $region58: #{convnet_forward.5} parent=5 // pred_check_branch
      %318 = sbr.rel (%p315) target = $region60
    $region59: #{convnet_forward.5} parent=5 // pred_region
      %s319 = ssub.s32 %s18, 1
      %p320 = scmp.lt.s32.totalorder %s23, 1
      %s321 = scalar_select %p320, %s23, 1
      %s322 = smul.addr %s321, 288
      %s323 = smul.addr %s322, 4
      %s324 = scalar_lea.vmem %s0, %s323
      %p325 = pneg %p44
      %p326 = pneg %p41
      %p327 = pneg %p65
      %p328 = pneg %p62
      %p329 = pneg %p86
      %p330 = pneg %p83
      %p331 = pneg %p107
      %p332 = pneg %p104
      %p333 = pneg %p128
      %p334 = pneg %p125
      %p335 = pneg %p149
      %p336 = pneg %p146
      %p337 = pneg %p170
      %p338 = pneg %p167
      %p339 = pneg %p191
      %p340 = pneg %p188
      %p341 = pneg %p212
      %p342 = pneg %p209
      %p343 = pneg %p233
      %p344 = pneg %p230
      %p345 = pneg %p259
      %p346 = pneg %p256
      %p347 = scmp.lt.s32.totalorder %s23, 1
      %s348 = scalar_select %p347, %s23, 1
      %s349 = scalar_lea.vmem %s10, %s348
      %p350 = scmp.lt.s32.totalorder %s23, 1
      %s351 = scalar_select %p350, %s23, 1
      %s352 = smul.addr %s351, 288
      %s353 = smul.addr %s352, 4
      %s354 = scalar_lea.vmem %s0, %s353
      %p355 = scmp.lt.s32.totalorder %s23, 1
      %s356 = scalar_select %p355, %s23, 1
      %s357 = scalar_lea.vmem %s10, %s356
      %v359 = vld [vmem:[%s354] sm:$0xff]
      %v360 = vld [vmem:[%s354 + $0x8] sm:$0xff]
      %v361 = vld [vmem:[%s354 + $0x10] sm:$0xff]
      %v362 = vld [vmem:[%s354 + $0x18] sm:$0xff]
      %v363 = vld [vmem:[%s354 + $0x20] sm:$0xff]
      %v364 = vld [vmem:[%s354 + $0x28] sm:$0xff]
      %v365 = vld [vmem:[%s354 + $0x30] sm:$0xff]
      %v366 = vld [vmem:[%s354 + $0x38] sm:$0xff]
      %v367 = vld [vmem:[%s354 + $0x40] sm:$0xff]
      %v368 = vld [vmem:[%s354 + $0x48] sm:$0xff]
      %v369 = vld [vmem:[%s354 + $0x50] sm:$0xff]
      %v370 = vld [vmem:[%s354 + $0x58] sm:$0xff]
      %v371 = vld [vmem:[%s354 + $0x60] sm:$0xff]
      %v372 = vld [vmem:[%s354 + $0x68] sm:$0xff]
      %v373 = vld [vmem:[%s354 + $0x70] sm:$0xff]
      %v374 = vld [vmem:[%s354 + $0x78] sm:$0xff]
      %v375 = vld [vmem:[%s354 + $0x80] sm:$0xff]
      %v376 = vld [vmem:[%s354 + $0x88] sm:$0xff]
      %v377 = vld [vmem:[%s354 + $0x90] sm:$0xff]
      %v378 = vld [vmem:[%s354 + $0x98] sm:$0xff]
      %v379 = vld [vmem:[%s354 + $0xa0] sm:$0xff]
      %v380 = vld [vmem:[%s354 + $0xa8] sm:$0xff]
      %v381 = vld [vmem:[%s354 + $0xb0] sm:$0xff]
      %v382 = vld [vmem:[%s354 + $0xb8] sm:$0xff]
      %v383 = vld [vmem:[%s354 + $0xc0] sm:$0xff]
      %v384 = vld [vmem:[%s354 + $0xc8] sm:$0xff]
      %v385 = vld [vmem:[%s354 + $0xd0] sm:$0xff]
      %v386 = vld [vmem:[%s354 + $0xd8] sm:$0xff]
      %v387 = vld [vmem:[%s354 + $0xe0] sm:$0xff]
      %v388 = vld [vmem:[%s354 + $0xe8] sm:$0xff]
      %v389 = vld [vmem:[%s354 + $0xf0] sm:$0xff]
      %v390 = vld [vmem:[%s354 + $0xf8] sm:$0xff]
      %v391 = vld [vmem:[%s354 + $0x100] sm:$0xff]
      %v392 = vld [vmem:[%s354 + $0x108] sm:$0xff]
      %v393 = vld [vmem:[%s354 + $0x110] sm:$0xff]
      %v394 = vld [vmem:[%s354 + $0x118] sm:$0xff]
      %v395 = vld [vmem:[%s354 + $0x120] sm:$0xff]
      %v396 = vld [vmem:[%s354 + $0x128] sm:$0xff]
      %v397 = vld [vmem:[%s354 + $0x130] sm:$0xff]
      %v398 = vld [vmem:[%s354 + $0x138] sm:$0xff]
      %v399 = vld [vmem:[%s354 + $0x140] sm:$0xff]
      %v400 = vld [vmem:[%s354 + $0x148] sm:$0xff]
      %v401 = vld [vmem:[%s354 + $0x150] sm:$0xff]
      %v402 = vld [vmem:[%s354 + $0x158] sm:$0xff]
      %v403 = vld [vmem:[%s354 + $0x160] sm:$0xff]
      %v404 = vld [vmem:[%s354 + $0x168] sm:$0xff]
      %v405 = vld [vmem:[%s354 + $0x170] sm:$0xff]
      %v406 = vld [vmem:[%s354 + $0x178] sm:$0xff]
      %v407 = vld [vmem:[%s354 + $0x180] sm:$0xff]
      %v408 = vld [vmem:[%s354 + $0x188] sm:$0xff]
      %v409 = vld [vmem:[%s354 + $0x190] sm:$0xff]
      %v410 = vld [vmem:[%s354 + $0x198] sm:$0xff]
      %v411 = vld [vmem:[%s354 + $0x1a0] sm:$0xff]
      %v412 = vld [vmem:[%s354 + $0x1a8] sm:$0xff]
      %v413 = vld [vmem:[%s354 + $0x1b0] sm:$0xff]
      %v414 = vld [vmem:[%s354 + $0x1b8] sm:$0xff]
      %v415 = vld [vmem:[%s354 + $0x1c0] sm:$0xff]
      %v416 = vld [vmem:[%s354 + $0x1c8] sm:$0xff]
      %v417 = vld [vmem:[%s354 + $0x1d0] sm:$0xff]
      %v418 = vld [vmem:[%s354 + $0x1d8] sm:$0xff]
      %v419 = vld [vmem:[%s354 + $0x1e0] sm:$0xff]
      %v420 = vld [vmem:[%s354 + $0x1e8] sm:$0xff]
      %v421 = vld [vmem:[%s354 + $0x1f0] sm:$0xff]
      %v422 = vld [vmem:[%s354 + $0x1f8] sm:$0xff]
      %v423 = vld [vmem:[%s354 + $0x200] sm:$0xff]
      %v424 = vld [vmem:[%s354 + $0x208] sm:$0xff]
      %v425 = vld [vmem:[%s354 + $0x210] sm:$0xff]
      %v426 = vld [vmem:[%s354 + $0x218] sm:$0xff]
      %v427 = vld [vmem:[%s354 + $0x220] sm:$0xff]
      %v428 = vld [vmem:[%s354 + $0x228] sm:$0xff]
      %v429 = vld [vmem:[%s354 + $0x230] sm:$0xff]
      %v430 = vld [vmem:[%s354 + $0x238] sm:$0xff]
      %v431 = vld [vmem:[%s354 + $0x240] sm:$0xff]
      %v432 = vld [vmem:[%s354 + $0x248] sm:$0xff]
      %v433 = vld [vmem:[%s354 + $0x250] sm:$0xff]
      %v434 = vld [vmem:[%s354 + $0x258] sm:$0xff]
      %v435 = vld [vmem:[%s354 + $0x260] sm:$0xff]
      %v436 = vld [vmem:[%s354 + $0x268] sm:$0xff]
      %v437 = vld [vmem:[%s354 + $0x270] sm:$0xff]
      %v438 = vld [vmem:[%s354 + $0x278] sm:$0xff]
      %v439 = vld [vmem:[%s354 + $0x280] sm:$0xff]
      %v440 = vld [vmem:[%s354 + $0x288] sm:$0xff]
      %v441 = vld [vmem:[%s354 + $0x290] sm:$0xff]
      %v442 = vld [vmem:[%s354 + $0x298] sm:$0xff]
      %v443 = vld [vmem:[%s354 + $0x2a0] sm:$0xff]
      %v444 = vld [vmem:[%s354 + $0x2a8] sm:$0xff]
      %v445 = vld [vmem:[%s354 + $0x2b0] sm:$0xff]
      %v446 = vld [vmem:[%s354 + $0x2b8] sm:$0xff]
      %v447 = vld [vmem:[%s354 + $0x2c0] sm:$0xff]
      %v448 = vld [vmem:[%s354 + $0x2c8] sm:$0xff]
      %v449 = vld [vmem:[%s354 + $0x2d0] sm:$0xff]
      %v450 = vld [vmem:[%s354 + $0x2d8] sm:$0xff]
      %v451 = vld [vmem:[%s354 + $0x2e0] sm:$0xff]
      %v452 = vld [vmem:[%s354 + $0x2e8] sm:$0xff]
      %v453 = vld [vmem:[%s354 + $0x2f0] sm:$0xff]
      %v454 = vld [vmem:[%s354 + $0x2f8] sm:$0xff]
      %v455 = vld [vmem:[%s354 + $0x300] sm:$0xff]
      %v456 = vld [vmem:[%s354 + $0x308] sm:$0xff]
      %v457 = vld [vmem:[%s354 + $0x310] sm:$0xff]
      %v458 = vld [vmem:[%s354 + $0x318] sm:$0xff]
      %v459 = vld [vmem:[%s354 + $0x320] sm:$0xff]
      %v460 = vld [vmem:[%s354 + $0x328] sm:$0xff]
      %v461 = vld [vmem:[%s354 + $0x330] sm:$0xff]
      %v462 = vld [vmem:[%s354 + $0x338] sm:$0xff]
      %v463 = vld [vmem:[%s354 + $0x340] sm:$0xff]
      %v464 = vld [vmem:[%s354 + $0x348] sm:$0xff]
      %v465 = vld [vmem:[%s354 + $0x350] sm:$0xff]
      %v466 = vld [vmem:[%s354 + $0x358] sm:$0xff]
      %v467 = vld [vmem:[%s354 + $0x360] sm:$0xff]
      %v468 = vld [vmem:[%s354 + $0x368] sm:$0xff]
      %v469 = vld [vmem:[%s354 + $0x370] sm:$0xff]
      %v470 = vld [vmem:[%s354 + $0x378] sm:$0xff]
      %v471 = vld [vmem:[%s354 + $0x380] sm:$0xff]
      %v472 = vld [vmem:[%s354 + $0x388] sm:$0xff]
      %v473 = vld [vmem:[%s354 + $0x390] sm:$0xff]
      %v474 = vld [vmem:[%s354 + $0x398] sm:$0xff]
      %v475 = vld [vmem:[%s354 + $0x3a0] sm:$0xff]
      %v476 = vld [vmem:[%s354 + $0x3a8] sm:$0xff]
      %v477 = vld [vmem:[%s354 + $0x3b0] sm:$0xff]
      %v478 = vld [vmem:[%s354 + $0x3b8] sm:$0xff]
      %v479 = vld [vmem:[%s354 + $0x3c0] sm:$0xff]
      %v480 = vld [vmem:[%s354 + $0x3c8] sm:$0xff]
      %v481 = vld [vmem:[%s354 + $0x3d0] sm:$0xff]
      %v482 = vld [vmem:[%s354 + $0x3d8] sm:$0xff]
      %v483 = vld [vmem:[%s354 + $0x3e0] sm:$0xff]
      %v484 = vld [vmem:[%s354 + $0x3e8] sm:$0xff]
      %v485 = vld [vmem:[%s354 + $0x3f0] sm:$0xff]
      %v486 = vld [vmem:[%s354 + $0x3f8] sm:$0xff]
      %v487 = vld [vmem:[%s354 + $0x400] sm:$0xff]
      %v488 = vld [vmem:[%s354 + $0x408] sm:$0xff]
      %v489 = vld [vmem:[%s354 + $0x410] sm:$0xff]
      %v490 = vld [vmem:[%s354 + $0x418] sm:$0xff]
      %v491 = vld [vmem:[%s354 + $0x420] sm:$0xff]
      %v492 = vld [vmem:[%s354 + $0x428] sm:$0xff]
      %v493 = vld [vmem:[%s354 + $0x430] sm:$0xff]
      %v494 = vld [vmem:[%s354 + $0x438] sm:$0xff]
      %v495 = vld [vmem:[%s354 + $0x440] sm:$0xff]
      %v496 = vld [vmem:[%s354 + $0x448] sm:$0xff]
      %v497 = vld [vmem:[%s354 + $0x450] sm:$0xff]
      %v498 = vld [vmem:[%s354 + $0x458] sm:$0xff]
      %v499 = vld [vmem:[%s354 + $0x460] sm:$0xff]
      %v500 = vld [vmem:[%s354 + $0x468] sm:$0xff]
      %v501 = vld [vmem:[%s354 + $0x470] sm:$0xff]
      %v502 = vld [vmem:[%s354 + $0x478] sm:$0xff]
      %v503 = vld [vmem:[%s1] sm:$0xff]
      %v504 = vld [vmem:[%s1 + $0x8] sm:$0xff]
      %v505 = vld [vmem:[%s1 + $0x10] sm:$0xff]
      %v506 = vld [vmem:[%s1 + $0x18] sm:$0xff]
      %v507 = vld [vmem:[%s2] sm:$0xff]
      %v508 = vld [vmem:[%s2 + $0x8] sm:$0xff]
      %v509 = vld [vmem:[%s2 + $0x10] sm:$0xff]
      %v510 = vld [vmem:[%s2 + $0x18] sm:$0xff]
      %v511 = vld [vmem:[%s3] ss:$2 sm:$0xf]
      %s512 = scalar_lea.vmem %s3, 1
      %v513 = vld [vmem:[%s512] ss:$2 sm:$0xf]
      %515 = vset.pattern.permute.xlu0 0
      %516 = vperm.xlu0 %515, %v507
      %v517 = vpop.permute.xlu0 %516
      %520 = vset.pattern.permute.xlu0 0
      %521 = vperm.xlu0 %520, %v508
      %v522 = vpop.permute.xlu0 %521
      %525 = vset.pattern.permute.xlu0 0
      %526 = vperm.xlu0 %525, %v509
      %v527 = vpop.permute.xlu0 %526
      %530 = vset.pattern.permute.xlu0 0
      %531 = vperm.xlu0 %530, %v510
      %v532 = vpop.permute.xlu0 %531
      %v538 = vunpack.c.l.b16 %v503
      %v539 = vunpack.c.h.b16 %v503
      %v540 = vunpack.c.l.b16 %v504
      %v541 = vunpack.c.h.b16 %v504
      %v542 = vunpack.c.l.b16 %v505
      %v543 = vunpack.c.h.b16 %v505
      %v544 = vunpack.c.l.b16 %v506
      %v545 = vunpack.c.h.b16 %v506
      %v546 = vpack.c.b16 %v540, %v538
      %v547 = vpack.c.b16 %v541, %v539
      %v548 = vpack.c.b16 %v544, %v542
      %v549 = vpack.c.b16 %v545, %v543
      %v696 = vunpack.c.l.b16 %v359
      %v697 = vunpack.c.h.b16 %v359
      %v698 = vunpack.c.l.b16 %v360
      %v699 = vunpack.c.h.b16 %v360
      %v700 = vunpack.c.l.b16 %v361
      %v701 = vunpack.c.h.b16 %v361
      %v702 = vunpack.c.l.b16 %v362
      %v703 = vunpack.c.h.b16 %v362
      %v704 = vunpack.c.l.b16 %v363
      %v705 = vunpack.c.h.b16 %v363
      %v706 = vunpack.c.l.b16 %v364
      %v707 = vunpack.c.h.b16 %v364
      %v708 = vunpack.c.l.b16 %v365
      %v709 = vunpack.c.h.b16 %v365
      %v710 = vunpack.c.l.b16 %v366
      %v711 = vunpack.c.h.b16 %v366
      %v712 = vunpack.c.l.b16 %v367
      %v713 = vunpack.c.h.b16 %v367
      %v714 = vunpack.c.l.b16 %v368
      %v715 = vunpack.c.h.b16 %v368
      %v716 = vunpack.c.l.b16 %v369
      %v717 = vunpack.c.h.b16 %v369
      %v718 = vunpack.c.l.b16 %v370
      %v719 = vunpack.c.h.b16 %v370
      %v720 = vunpack.c.l.b16 %v371
      %v721 = vunpack.c.h.b16 %v371
      %v722 = vunpack.c.l.b16 %v372
      %v723 = vunpack.c.h.b16 %v372
      %v724 = vunpack.c.l.b16 %v373
      %v725 = vunpack.c.h.b16 %v373
      %v726 = vunpack.c.l.b16 %v374
      %v727 = vunpack.c.h.b16 %v374
      %v728 = vunpack.c.l.b16 %v375
      %v729 = vunpack.c.h.b16 %v375
      %v730 = vunpack.c.l.b16 %v376
      %v731 = vunpack.c.h.b16 %v376
      %v732 = vunpack.c.l.b16 %v377
      %v733 = vunpack.c.h.b16 %v377
      %v734 = vunpack.c.l.b16 %v378
      %v735 = vunpack.c.h.b16 %v378
      %v736 = vunpack.c.l.b16 %v379
      %v737 = vunpack.c.h.b16 %v379
      %v738 = vunpack.c.l.b16 %v380
      %v739 = vunpack.c.h.b16 %v380
      %v740 = vunpack.c.l.b16 %v381
      %v741 = vunpack.c.h.b16 %v381
      %v742 = vunpack.c.l.b16 %v382
      %v743 = vunpack.c.h.b16 %v382
      %v744 = vunpack.c.l.b16 %v383
      %v745 = vunpack.c.h.b16 %v383
      %v746 = vunpack.c.l.b16 %v384
      %v747 = vunpack.c.h.b16 %v384
      %v748 = vunpack.c.l.b16 %v385
      %v749 = vunpack.c.h.b16 %v385
      %v750 = vunpack.c.l.b16 %v386
      %v751 = vunpack.c.h.b16 %v386
      %v752 = vunpack.c.l.b16 %v387
      %v753 = vunpack.c.h.b16 %v387
      %v754 = vunpack.c.l.b16 %v388
      %v755 = vunpack.c.h.b16 %v388
      %v756 = vunpack.c.l.b16 %v389
      %v757 = vunpack.c.h.b16 %v389
      %v758 = vunpack.c.l.b16 %v390
      %v759 = vunpack.c.h.b16 %v390
      %v760 = vunpack.c.l.b16 %v391
      %v761 = vunpack.c.h.b16 %v391
      %v762 = vunpack.c.l.b16 %v392
      %v763 = vunpack.c.h.b16 %v392
      %v764 = vunpack.c.l.b16 %v393
      %v765 = vunpack.c.h.b16 %v393
      %v766 = vunpack.c.l.b16 %v394
      %v767 = vunpack.c.h.b16 %v394
      %v768 = vunpack.c.l.b16 %v395
      %v769 = vunpack.c.h.b16 %v395
      %v770 = vunpack.c.l.b16 %v396
      %v771 = vunpack.c.h.b16 %v396
      %v772 = vunpack.c.l.b16 %v397
      %v773 = vunpack.c.h.b16 %v397
      %v774 = vunpack.c.l.b16 %v398
      %v775 = vunpack.c.h.b16 %v398
      %v776 = vunpack.c.l.b16 %v399
      %v777 = vunpack.c.h.b16 %v399
      %v778 = vunpack.c.l.b16 %v400
      %v779 = vunpack.c.h.b16 %v400
      %v780 = vunpack.c.l.b16 %v401
      %v781 = vunpack.c.h.b16 %v401
      %v782 = vunpack.c.l.b16 %v402
      %v783 = vunpack.c.h.b16 %v402
      %v784 = vunpack.c.l.b16 %v403
      %v785 = vunpack.c.h.b16 %v403
      %v786 = vunpack.c.l.b16 %v404
      %v787 = vunpack.c.h.b16 %v404
      %v788 = vunpack.c.l.b16 %v405
      %v789 = vunpack.c.h.b16 %v405
      %v790 = vunpack.c.l.b16 %v406
      %v791 = vunpack.c.h.b16 %v406
      %v792 = vunpack.c.l.b16 %v407
      %v793 = vunpack.c.h.b16 %v407
      %v794 = vunpack.c.l.b16 %v408
      %v795 = vunpack.c.h.b16 %v408
      %v796 = vunpack.c.l.b16 %v409
      %v797 = vunpack.c.h.b16 %v409
      %v798 = vunpack.c.l.b16 %v410
      %v799 = vunpack.c.h.b16 %v410
      %v800 = vunpack.c.l.b16 %v411
      %v801 = vunpack.c.h.b16 %v411
      %v802 = vunpack.c.l.b16 %v412
      %v803 = vunpack.c.h.b16 %v412
      %v804 = vunpack.c.l.b16 %v413
      %v805 = vunpack.c.h.b16 %v413
      %v806 = vunpack.c.l.b16 %v414
      %v807 = vunpack.c.h.b16 %v414
      %v808 = vunpack.c.l.b16 %v415
      %v809 = vunpack.c.h.b16 %v415
      %v810 = vunpack.c.l.b16 %v416
      %v811 = vunpack.c.h.b16 %v416
      %v812 = vunpack.c.l.b16 %v417
      %v813 = vunpack.c.h.b16 %v417
      %v814 = vunpack.c.l.b16 %v418
      %v815 = vunpack.c.h.b16 %v418
      %v816 = vunpack.c.l.b16 %v419
      %v817 = vunpack.c.h.b16 %v419
      %v818 = vunpack.c.l.b16 %v420
      %v819 = vunpack.c.h.b16 %v420
      %v820 = vunpack.c.l.b16 %v421
      %v821 = vunpack.c.h.b16 %v421
      %v822 = vunpack.c.l.b16 %v422
      %v823 = vunpack.c.h.b16 %v422
      %v824 = vunpack.c.l.b16 %v423
      %v825 = vunpack.c.h.b16 %v423
      %v826 = vunpack.c.l.b16 %v424
      %v827 = vunpack.c.h.b16 %v424
      %v828 = vunpack.c.l.b16 %v425
      %v829 = vunpack.c.h.b16 %v425
      %v830 = vunpack.c.l.b16 %v426
      %v831 = vunpack.c.h.b16 %v426
      %v832 = vunpack.c.l.b16 %v427
      %v833 = vunpack.c.h.b16 %v427
      %v834 = vunpack.c.l.b16 %v428
      %v835 = vunpack.c.h.b16 %v428
      %v836 = vunpack.c.l.b16 %v429
      %v837 = vunpack.c.h.b16 %v429
      %v838 = vunpack.c.l.b16 %v430
      %v839 = vunpack.c.h.b16 %v430
      %v840 = vunpack.c.l.b16 %v431
      %v841 = vunpack.c.h.b16 %v431
      %v842 = vunpack.c.l.b16 %v432
      %v843 = vunpack.c.h.b16 %v432
      %v844 = vunpack.c.l.b16 %v433
      %v845 = vunpack.c.h.b16 %v433
      %v846 = vunpack.c.l.b16 %v434
      %v847 = vunpack.c.h.b16 %v434
      %v848 = vunpack.c.l.b16 %v435
      %v849 = vunpack.c.h.b16 %v435
      %v850 = vunpack.c.l.b16 %v436
      %v851 = vunpack.c.h.b16 %v436
      %v852 = vunpack.c.l.b16 %v437
      %v853 = vunpack.c.h.b16 %v437
      %v854 = vunpack.c.l.b16 %v438
      %v855 = vunpack.c.h.b16 %v438
      %v856 = vunpack.c.l.b16 %v439
      %v857 = vunpack.c.h.b16 %v439
      %v858 = vunpack.c.l.b16 %v440
      %v859 = vunpack.c.h.b16 %v440
      %v860 = vunpack.c.l.b16 %v441
      %v861 = vunpack.c.h.b16 %v441
      %v862 = vunpack.c.l.b16 %v442
      %v863 = vunpack.c.h.b16 %v442
      %v864 = vunpack.c.l.b16 %v443
      %v865 = vunpack.c.h.b16 %v443
      %v866 = vunpack.c.l.b16 %v444
      %v867 = vunpack.c.h.b16 %v444
      %v868 = vunpack.c.l.b16 %v445
      %v869 = vunpack.c.h.b16 %v445
      %v870 = vunpack.c.l.b16 %v446
      %v871 = vunpack.c.h.b16 %v446
      %v872 = vunpack.c.l.b16 %v447
      %v873 = vunpack.c.h.b16 %v447
      %v874 = vunpack.c.l.b16 %v448
      %v875 = vunpack.c.h.b16 %v448
      %v876 = vunpack.c.l.b16 %v449
      %v877 = vunpack.c.h.b16 %v449
      %v878 = vunpack.c.l.b16 %v450
      %v879 = vunpack.c.h.b16 %v450
      %v880 = vunpack.c.l.b16 %v451
      %v881 = vunpack.c.h.b16 %v451
      %v882 = vunpack.c.l.b16 %v452
      %v883 = vunpack.c.h.b16 %v452
      %v884 = vunpack.c.l.b16 %v453
      %v885 = vunpack.c.h.b16 %v453
      %v886 = vunpack.c.l.b16 %v454
      %v887 = vunpack.c.h.b16 %v454
      %v888 = vunpack.c.l.b16 %v455
      %v889 = vunpack.c.h.b16 %v455
      %v890 = vunpack.c.l.b16 %v456
      %v891 = vunpack.c.h.b16 %v456
      %v892 = vunpack.c.l.b16 %v457
      %v893 = vunpack.c.h.b16 %v457
      %v894 = vunpack.c.l.b16 %v458
      %v895 = vunpack.c.h.b16 %v458
      %v896 = vunpack.c.l.b16 %v459
      %v897 = vunpack.c.h.b16 %v459
      %v898 = vunpack.c.l.b16 %v460
      %v899 = vunpack.c.h.b16 %v460
      %v900 = vunpack.c.l.b16 %v461
      %v901 = vunpack.c.h.b16 %v461
      %v902 = vunpack.c.l.b16 %v462
      %v903 = vunpack.c.h.b16 %v462
      %v904 = vunpack.c.l.b16 %v463
      %v905 = vunpack.c.h.b16 %v463
      %v906 = vunpack.c.l.b16 %v464
      %v907 = vunpack.c.h.b16 %v464
      %v908 = vunpack.c.l.b16 %v465
      %v909 = vunpack.c.h.b16 %v465
      %v910 = vunpack.c.l.b16 %v466
      %v911 = vunpack.c.h.b16 %v466
      %v912 = vunpack.c.l.b16 %v467
      %v913 = vunpack.c.h.b16 %v467
      %v914 = vunpack.c.l.b16 %v468
      %v915 = vunpack.c.h.b16 %v468
      %v916 = vunpack.c.l.b16 %v469
      %v917 = vunpack.c.h.b16 %v469
      %v918 = vunpack.c.l.b16 %v470
      %v919 = vunpack.c.h.b16 %v470
      %v920 = vunpack.c.l.b16 %v471
      %v921 = vunpack.c.h.b16 %v471
      %v922 = vunpack.c.l.b16 %v472
      %v923 = vunpack.c.h.b16 %v472
      %v924 = vunpack.c.l.b16 %v473
      %v925 = vunpack.c.h.b16 %v473
      %v926 = vunpack.c.l.b16 %v474
      %v927 = vunpack.c.h.b16 %v474
      %v928 = vunpack.c.l.b16 %v475
      %v929 = vunpack.c.h.b16 %v475
      %v930 = vunpack.c.l.b16 %v476
      %v931 = vunpack.c.h.b16 %v476
      %v932 = vunpack.c.l.b16 %v477
      %v933 = vunpack.c.h.b16 %v477
      %v934 = vunpack.c.l.b16 %v478
      %v935 = vunpack.c.h.b16 %v478
      %v936 = vunpack.c.l.b16 %v479
      %v937 = vunpack.c.h.b16 %v479
      %v938 = vunpack.c.l.b16 %v480
      %v939 = vunpack.c.h.b16 %v480
      %v940 = vunpack.c.l.b16 %v481
      %v941 = vunpack.c.h.b16 %v481
      %v942 = vunpack.c.l.b16 %v482
      %v943 = vunpack.c.h.b16 %v482
      %v944 = vunpack.c.l.b16 %v483
      %v945 = vunpack.c.h.b16 %v483
      %v946 = vunpack.c.l.b16 %v484
      %v947 = vunpack.c.h.b16 %v484
      %v948 = vunpack.c.l.b16 %v485
      %v949 = vunpack.c.h.b16 %v485
      %v950 = vunpack.c.l.b16 %v486
      %v951 = vunpack.c.h.b16 %v486
      %v952 = vunpack.c.l.b16 %v487
      %v953 = vunpack.c.h.b16 %v487
      %v954 = vunpack.c.l.b16 %v488
      %v955 = vunpack.c.h.b16 %v488
      %v956 = vunpack.c.l.b16 %v489
      %v957 = vunpack.c.h.b16 %v489
      %v958 = vunpack.c.l.b16 %v490
      %v959 = vunpack.c.h.b16 %v490
      %v960 = vunpack.c.l.b16 %v491
      %v961 = vunpack.c.h.b16 %v491
      %v962 = vunpack.c.l.b16 %v492
      %v963 = vunpack.c.h.b16 %v492
      %v964 = vunpack.c.l.b16 %v493
      %v965 = vunpack.c.h.b16 %v493
      %v966 = vunpack.c.l.b16 %v494
      %v967 = vunpack.c.h.b16 %v494
      %v968 = vunpack.c.l.b16 %v495
      %v969 = vunpack.c.h.b16 %v495
      %v970 = vunpack.c.l.b16 %v496
      %v971 = vunpack.c.h.b16 %v496
      %v972 = vunpack.c.l.b16 %v497
      %v973 = vunpack.c.h.b16 %v497
      %v974 = vunpack.c.l.b16 %v498
      %v975 = vunpack.c.h.b16 %v498
      %v976 = vunpack.c.l.b16 %v499
      %v977 = vunpack.c.h.b16 %v499
      %v978 = vunpack.c.l.b16 %v500
      %v979 = vunpack.c.h.b16 %v500
      %v980 = vunpack.c.l.b16 %v501
      %v981 = vunpack.c.h.b16 %v501
      %v982 = vunpack.c.l.b16 %v502
      %v983 = vunpack.c.h.b16 %v502
      %v984 = vpack.c.b16 %v712, %v696
      %v985 = vpack.c.b16 %v713, %v697
      %v986 = vpack.c.b16 %v714, %v698
      %v987 = vpack.c.b16 %v715, %v699
      %v988 = vpack.c.b16 %v716, %v700
      %v989 = vpack.c.b16 %v717, %v701
      %v990 = vpack.c.b16 %v718, %v702
      %v991 = vpack.c.b16 %v719, %v703
      %v992 = vpack.c.b16 %v720, %v704
      %v993 = vpack.c.b16 %v721, %v705
      %v994 = vpack.c.b16 %v722, %v706
      %v995 = vpack.c.b16 %v723, %v707
      %v996 = vpack.c.b16 %v724, %v708
      %v997 = vpack.c.b16 %v725, %v709
      %v998 = vpack.c.b16 %v726, %v710
      %v999 = vpack.c.b16 %v727, %v711
      %v1000 = vpack.c.b16 %v744, %v728
      %v1001 = vpack.c.b16 %v745, %v729
      %v1002 = vpack.c.b16 %v746, %v730
      %v1003 = vpack.c.b16 %v747, %v731
      %v1004 = vpack.c.b16 %v748, %v732
      %v1005 = vpack.c.b16 %v749, %v733
      %v1006 = vpack.c.b16 %v750, %v734
      %v1007 = vpack.c.b16 %v751, %v735
      %v1008 = vpack.c.b16 %v752, %v736
      %v1009 = vpack.c.b16 %v753, %v737
      %v1010 = vpack.c.b16 %v754, %v738
      %v1011 = vpack.c.b16 %v755, %v739
      %v1012 = vpack.c.b16 %v756, %v740
      %v1013 = vpack.c.b16 %v757, %v741
      %v1014 = vpack.c.b16 %v758, %v742
      %v1015 = vpack.c.b16 %v759, %v743
      %v1016 = vpack.c.b16 %v776, %v760
      %v1017 = vpack.c.b16 %v777, %v761
      %v1018 = vpack.c.b16 %v778, %v762
      %v1019 = vpack.c.b16 %v779, %v763
      %v1020 = vpack.c.b16 %v780, %v764
      %v1021 = vpack.c.b16 %v781, %v765
      %v1022 = vpack.c.b16 %v782, %v766
      %v1023 = vpack.c.b16 %v783, %v767
      %v1024 = vpack.c.b16 %v784, %v768
      %v1025 = vpack.c.b16 %v785, %v769
      %v1026 = vpack.c.b16 %v786, %v770
      %v1027 = vpack.c.b16 %v787, %v771
      %v1028 = vpack.c.b16 %v788, %v772
      %v1029 = vpack.c.b16 %v789, %v773
      %v1030 = vpack.c.b16 %v790, %v774
      %v1031 = vpack.c.b16 %v791, %v775
      %v1032 = vpack.c.b16 %v808, %v792
      %v1033 = vpack.c.b16 %v809, %v793
      %v1034 = vpack.c.b16 %v810, %v794
      %v1035 = vpack.c.b16 %v811, %v795
      %v1036 = vpack.c.b16 %v812, %v796
      %v1037 = vpack.c.b16 %v813, %v797
      %v1038 = vpack.c.b16 %v814, %v798
      %v1039 = vpack.c.b16 %v815, %v799
      %v1040 = vpack.c.b16 %v816, %v800
      %v1041 = vpack.c.b16 %v817, %v801
      %v1042 = vpack.c.b16 %v818, %v802
      %v1043 = vpack.c.b16 %v819, %v803
      %v1044 = vpack.c.b16 %v820, %v804
      %v1045 = vpack.c.b16 %v821, %v805
      %v1046 = vpack.c.b16 %v822, %v806
      %v1047 = vpack.c.b16 %v823, %v807
      %v1048 = vpack.c.b16 %v840, %v824
      %v1049 = vpack.c.b16 %v841, %v825
      %v1050 = vpack.c.b16 %v842, %v826
      %v1051 = vpack.c.b16 %v843, %v827
      %v1052 = vpack.c.b16 %v844, %v828
      %v1053 = vpack.c.b16 %v845, %v829
      %v1054 = vpack.c.b16 %v846, %v830
      %v1055 = vpack.c.b16 %v847, %v831
      %v1056 = vpack.c.b16 %v848, %v832
      %v1057 = vpack.c.b16 %v849, %v833
      %v1058 = vpack.c.b16 %v850, %v834
      %v1059 = vpack.c.b16 %v851, %v835
      %v1060 = vpack.c.b16 %v852, %v836
      %v1061 = vpack.c.b16 %v853, %v837
      %v1062 = vpack.c.b16 %v854, %v838
      %v1063 = vpack.c.b16 %v855, %v839
      %v1064 = vpack.c.b16 %v872, %v856
      %v1065 = vpack.c.b16 %v873, %v857
      %v1066 = vpack.c.b16 %v874, %v858
      %v1067 = vpack.c.b16 %v875, %v859
      %v1068 = vpack.c.b16 %v876, %v860
      %v1069 = vpack.c.b16 %v877, %v861
      %v1070 = vpack.c.b16 %v878, %v862
      %v1071 = vpack.c.b16 %v879, %v863
      %v1072 = vpack.c.b16 %v880, %v864
      %v1073 = vpack.c.b16 %v881, %v865
      %v1074 = vpack.c.b16 %v882, %v866
      %v1075 = vpack.c.b16 %v883, %v867
      %v1076 = vpack.c.b16 %v884, %v868
      %v1077 = vpack.c.b16 %v885, %v869
      %v1078 = vpack.c.b16 %v886, %v870
      %v1079 = vpack.c.b16 %v887, %v871
      %v1080 = vpack.c.b16 %v904, %v888
      %v1081 = vpack.c.b16 %v905, %v889
      %v1082 = vpack.c.b16 %v906, %v890
      %v1083 = vpack.c.b16 %v907, %v891
      %v1084 = vpack.c.b16 %v908, %v892
      %v1085 = vpack.c.b16 %v909, %v893
      %v1086 = vpack.c.b16 %v910, %v894
      %v1087 = vpack.c.b16 %v911, %v895
      %v1088 = vpack.c.b16 %v912, %v896
      %v1089 = vpack.c.b16 %v913, %v897
      %v1090 = vpack.c.b16 %v914, %v898
      %v1091 = vpack.c.b16 %v915, %v899
      %v1092 = vpack.c.b16 %v916, %v900
      %v1093 = vpack.c.b16 %v917, %v901
      %v1094 = vpack.c.b16 %v918, %v902
      %v1095 = vpack.c.b16 %v919, %v903
      %v1096 = vpack.c.b16 %v936, %v920
      %v1097 = vpack.c.b16 %v937, %v921
      %v1098 = vpack.c.b16 %v938, %v922
      %v1099 = vpack.c.b16 %v939, %v923
      %v1100 = vpack.c.b16 %v940, %v924
      %v1101 = vpack.c.b16 %v941, %v925
      %v1102 = vpack.c.b16 %v942, %v926
      %v1103 = vpack.c.b16 %v943, %v927
      %v1104 = vpack.c.b16 %v944, %v928
      %v1105 = vpack.c.b16 %v945, %v929
      %v1106 = vpack.c.b16 %v946, %v930
      %v1107 = vpack.c.b16 %v947, %v931
      %v1108 = vpack.c.b16 %v948, %v932
      %v1109 = vpack.c.b16 %v949, %v933
      %v1110 = vpack.c.b16 %v950, %v934
      %v1111 = vpack.c.b16 %v951, %v935
      %v1112 = vpack.c.b16 %v968, %v952
      %v1113 = vpack.c.b16 %v969, %v953
      %v1114 = vpack.c.b16 %v970, %v954
      %v1115 = vpack.c.b16 %v971, %v955
      %v1116 = vpack.c.b16 %v972, %v956
      %v1117 = vpack.c.b16 %v973, %v957
      %v1118 = vpack.c.b16 %v974, %v958
      %v1119 = vpack.c.b16 %v975, %v959
      %v1120 = vpack.c.b16 %v976, %v960
      %v1121 = vpack.c.b16 %v977, %v961
      %v1122 = vpack.c.b16 %v978, %v962
      %v1123 = vpack.c.b16 %v979, %v963
      %v1124 = vpack.c.b16 %v980, %v964
      %v1125 = vpack.c.b16 %v981, %v965
      %v1126 = vpack.c.b16 %v982, %v966
      %v1127 = vpack.c.b16 %v983, %v967
      %vm1272 = vcmask 130048
      %v1274 = vsel %vm1272, %v547, 0
      %v1277 = vsel %vm1272, %v549, 0
      %1279 = vmatpush.bf16.msra.mxu0 %v1096
      %1280 = vmatpush.bf16.msra.mxu0 %v1080
      %1281 = vmatpush.bf16.msra.mxu0 %v1064
      %1282 = vmatpush.bf16.msra.mxu0 %v1048
      %1283 = vmatpush.bf16.msra.mxu0 %v1032
      %1284 = vmatpush.bf16.msra.mxu0 %v1016
      %1285 = vmatpush.bf16.msra.mxu0 %v1000
      %1286 = vmatpush.bf16.msra.mxu0 %v984
      %1287 = vmatmul.bf16.gmra.mxu0 %v546
      %v1288 = vpop.f32.mrf.mxu0
      %v1289 = vadd.f32 %v517, %v1288
      %v1290 = vpop.f32.mrf.mxu0
      %v1291 = vadd.f32 %v522, %v1290
      %1292 = vmatmul.bf16.gmra.mxu0 %v548
      %v1293 = vpop.f32.mrf.mxu0
      %v1294 = vadd.f32 %v527, %v1293
      %v1295 = vpop.f32.mrf.mxu0
      %v1296 = vadd.f32 %v532, %v1295
      %1297 = vdwg.mxu0
      %1298 = vmatpush.bf16.msra.mxu0 0
      %1299 = vmatpush.bf16.msra.mxu0 0
      %1300 = vmatpush.bf16.msra.mxu0 0
      %1301 = vmatpush.bf16.msra.mxu0 0
      %1302 = vmatpush.bf16.msra.mxu0 0
      %1303 = vmatpush.bf16.msra.mxu0 0
      %1304 = vmatpush.bf16.msra.mxu0 0
      %1305 = vmatpush.bf16.msra.mxu0 %v1112
      %1306 = vmatmul.bf16.gmra.mxu0 %v1274
      %v1307 = vpop.f32.mrf.mxu0
      %v1308 = vadd.f32 %v1289, %v1307
      %v1309 = vpop.f32.mrf.mxu0
      %v1310 = vadd.f32 %v1291, %v1309
      %1311 = vmatmul.bf16.gmra.mxu0 %v1277
      %v1312 = vpop.f32.mrf.mxu0
      %v1313 = vadd.f32 %v1294, %v1312
      %v1314 = vpop.f32.mrf.mxu0
      %v1315 = vadd.f32 %v1296, %v1314
      %1316 = vdwg.mxu0
      %1317 = vmatpush.bf16.msra.mxu0 %v1097
      %1318 = vmatpush.bf16.msra.mxu0 %v1081
      %1319 = vmatpush.bf16.msra.mxu0 %v1065
      %1320 = vmatpush.bf16.msra.mxu0 %v1049
      %1321 = vmatpush.bf16.msra.mxu0 %v1033
      %1322 = vmatpush.bf16.msra.mxu0 %v1017
      %1323 = vmatpush.bf16.msra.mxu0 %v1001
      %1324 = vmatpush.bf16.msra.mxu0 %v985
      %1325 = vmatmul.bf16.gmra.mxu0 %v546
      %v1326 = vpop.f32.mrf.mxu0
      %v1327 = vadd.f32 %v517, %v1326
      %v1328 = vpop.f32.mrf.mxu0
      %v1329 = vadd.f32 %v522, %v1328
      %1330 = vmatmul.bf16.gmra.mxu0 %v548
      %v1331 = vpop.f32.mrf.mxu0
      %v1332 = vadd.f32 %v527, %v1331
      %v1333 = vpop.f32.mrf.mxu0
      %v1334 = vadd.f32 %v532, %v1333
      %1335 = vdwg.mxu0
      %1336 = vmatpush.bf16.msra.mxu0 0
      %1337 = vmatpush.bf16.msra.mxu0 0
      %1338 = vmatpush.bf16.msra.mxu0 0
      %1339 = vmatpush.bf16.msra.mxu0 0
      %1340 = vmatpush.bf16.msra.mxu0 0
      %1341 = vmatpush.bf16.msra.mxu0 0
      %1342 = vmatpush.bf16.msra.mxu0 0
      %1343 = vmatpush.bf16.msra.mxu0 %v1113
      %1344 = vmatmul.bf16.gmra.mxu0 %v1274
      %v1345 = vpop.f32.mrf.mxu0
      %v1346 = vadd.f32 %v1327, %v1345
      %v1347 = vpop.f32.mrf.mxu0
      %v1348 = vadd.f32 %v1329, %v1347
      %1349 = vmatmul.bf16.gmra.mxu0 %v1277
      %v1350 = vpop.f32.mrf.mxu0
      %v1351 = vadd.f32 %v1332, %v1350
      %v1352 = vpop.f32.mrf.mxu0
      %v1353 = vadd.f32 %v1334, %v1352
      %1354 = vdwg.mxu0
      %1355 = vmatpush.bf16.msra.mxu0 %v1098
      %1356 = vmatpush.bf16.msra.mxu0 %v1082
      %1357 = vmatpush.bf16.msra.mxu0 %v1066
      %1358 = vmatpush.bf16.msra.mxu0 %v1050
      %1359 = vmatpush.bf16.msra.mxu0 %v1034
      %1360 = vmatpush.bf16.msra.mxu0 %v1018
      %1361 = vmatpush.bf16.msra.mxu0 %v1002
      %1362 = vmatpush.bf16.msra.mxu0 %v986
      %1363 = vmatmul.bf16.gmra.mxu0 %v546
      %v1364 = vpop.f32.mrf.mxu0
      %v1365 = vadd.f32 %v517, %v1364
      %v1366 = vpop.f32.mrf.mxu0
      %v1367 = vadd.f32 %v522, %v1366
      %1368 = vmatmul.bf16.gmra.mxu0 %v548
      %v1369 = vpop.f32.mrf.mxu0
      %v1370 = vadd.f32 %v527, %v1369
      %v1371 = vpop.f32.mrf.mxu0
      %v1372 = vadd.f32 %v532, %v1371
      %1373 = vdwg.mxu0
      %1374 = vmatpush.bf16.msra.mxu0 0
      %1375 = vmatpush.bf16.msra.mxu0 0
      %1376 = vmatpush.bf16.msra.mxu0 0
      %1377 = vmatpush.bf16.msra.mxu0 0
      %1378 = vmatpush.bf16.msra.mxu0 0
      %1379 = vmatpush.bf16.msra.mxu0 0
      %1380 = vmatpush.bf16.msra.mxu0 0
      %1381 = vmatpush.bf16.msra.mxu0 %v1114
      %1382 = vmatmul.bf16.gmra.mxu0 %v1274
      %v1383 = vpop.f32.mrf.mxu0
      %v1384 = vadd.f32 %v1365, %v1383
      %v1385 = vpop.f32.mrf.mxu0
      %v1386 = vadd.f32 %v1367, %v1385
      %1387 = vmatmul.bf16.gmra.mxu0 %v1277
      %v1388 = vpop.f32.mrf.mxu0
      %v1389 = vadd.f32 %v1370, %v1388
      %v1390 = vpop.f32.mrf.mxu0
      %v1391 = vadd.f32 %v1372, %v1390
      %1392 = vdwg.mxu0
      %1393 = vmatpush.bf16.msra.mxu0 %v1099
      %1394 = vmatpush.bf16.msra.mxu0 %v1083
      %1395 = vmatpush.bf16.msra.mxu0 %v1067
      %1396 = vmatpush.bf16.msra.mxu0 %v1051
      %1397 = vmatpush.bf16.msra.mxu0 %v1035
      %1398 = vmatpush.bf16.msra.mxu0 %v1019
      %1399 = vmatpush.bf16.msra.mxu0 %v1003
      %1400 = vmatpush.bf16.msra.mxu0 %v987
      %1401 = vmatmul.bf16.gmra.mxu0 %v546
      %v1402 = vpop.f32.mrf.mxu0
      %v1403 = vadd.f32 %v517, %v1402
      %v1404 = vpop.f32.mrf.mxu0
      %v1405 = vadd.f32 %v522, %v1404
      %1406 = vmatmul.bf16.gmra.mxu0 %v548
      %v1407 = vpop.f32.mrf.mxu0
      %v1408 = vadd.f32 %v527, %v1407
      %v1409 = vpop.f32.mrf.mxu0
      %v1410 = vadd.f32 %v532, %v1409
      %1411 = vdwg.mxu0
      %1412 = vmatpush.bf16.msra.mxu0 0
      %1413 = vmatpush.bf16.msra.mxu0 0
      %1414 = vmatpush.bf16.msra.mxu0 0
      %1415 = vmatpush.bf16.msra.mxu0 0
      %1416 = vmatpush.bf16.msra.mxu0 0
      %1417 = vmatpush.bf16.msra.mxu0 0
      %1418 = vmatpush.bf16.msra.mxu0 0
      %1419 = vmatpush.bf16.msra.mxu0 %v1115
      %1420 = vmatmul.bf16.gmra.mxu0 %v1274
      %v1421 = vpop.f32.mrf.mxu0
      %v1422 = vadd.f32 %v1403, %v1421
      %v1423 = vpop.f32.mrf.mxu0
      %v1424 = vadd.f32 %v1405, %v1423
      %1425 = vmatmul.bf16.gmra.mxu0 %v1277
      %v1426 = vpop.f32.mrf.mxu0
      %v1427 = vadd.f32 %v1408, %v1426
      %v1428 = vpop.f32.mrf.mxu0
      %v1429 = vadd.f32 %v1410, %v1428
      %1430 = vdwg.mxu0
      %1431 = vmatpush.bf16.msra.mxu0 %v1100
      %1432 = vmatpush.bf16.msra.mxu0 %v1084
      %1433 = vmatpush.bf16.msra.mxu0 %v1068
      %1434 = vmatpush.bf16.msra.mxu0 %v1052
      %1435 = vmatpush.bf16.msra.mxu0 %v1036
      %1436 = vmatpush.bf16.msra.mxu0 %v1020
      %1437 = vmatpush.bf16.msra.mxu0 %v1004
      %1438 = vmatpush.bf16.msra.mxu0 %v988
      %1439 = vmatmul.bf16.gmra.mxu0 %v546
      %v1440 = vpop.f32.mrf.mxu0
      %v1441 = vadd.f32 %v517, %v1440
      %v1442 = vpop.f32.mrf.mxu0
      %v1443 = vadd.f32 %v522, %v1442
      %1444 = vmatmul.bf16.gmra.mxu0 %v548
      %v1445 = vpop.f32.mrf.mxu0
      %v1446 = vadd.f32 %v527, %v1445
      %v1447 = vpop.f32.mrf.mxu0
      %v1448 = vadd.f32 %v532, %v1447
      %1449 = vdwg.mxu0
      %1450 = vmatpush.bf16.msra.mxu0 0
      %1451 = vmatpush.bf16.msra.mxu0 0
      %1452 = vmatpush.bf16.msra.mxu0 0
      %1453 = vmatpush.bf16.msra.mxu0 0
      %1454 = vmatpush.bf16.msra.mxu0 0
      %1455 = vmatpush.bf16.msra.mxu0 0
      %1456 = vmatpush.bf16.msra.mxu0 0
      %1457 = vmatpush.bf16.msra.mxu0 %v1116
      %1458 = vmatmul.bf16.gmra.mxu0 %v1274
      %v1459 = vpop.f32.mrf.mxu0
      %v1460 = vadd.f32 %v1441, %v1459
      %v1461 = vpop.f32.mrf.mxu0
      %v1462 = vadd.f32 %v1443, %v1461
      %1463 = vmatmul.bf16.gmra.mxu0 %v1277
      %v1464 = vpop.f32.mrf.mxu0
      %v1465 = vadd.f32 %v1446, %v1464
      %v1466 = vpop.f32.mrf.mxu0
      %v1467 = vadd.f32 %v1448, %v1466
      %1468 = vdwg.mxu0
      %1469 = vmatpush.bf16.msra.mxu0 %v1101
      %1470 = vmatpush.bf16.msra.mxu0 %v1085
      %1471 = vmatpush.bf16.msra.mxu0 %v1069
      %1472 = vmatpush.bf16.msra.mxu0 %v1053
      %1473 = vmatpush.bf16.msra.mxu0 %v1037
      %1474 = vmatpush.bf16.msra.mxu0 %v1021
      %1475 = vmatpush.bf16.msra.mxu0 %v1005
      %1476 = vmatpush.bf16.msra.mxu0 %v989
      %1477 = vmatmul.bf16.gmra.mxu0 %v546
      %v1478 = vpop.f32.mrf.mxu0
      %v1479 = vadd.f32 %v517, %v1478
      %v1480 = vpop.f32.mrf.mxu0
      %v1481 = vadd.f32 %v522, %v1480
      %1482 = vmatmul.bf16.gmra.mxu0 %v548
      %v1483 = vpop.f32.mrf.mxu0
      %v1484 = vadd.f32 %v527, %v1483
      %v1485 = vpop.f32.mrf.mxu0
      %v1486 = vadd.f32 %v532, %v1485
      %1487 = vdwg.mxu0
      %1488 = vmatpush.bf16.msra.mxu0 0
      %1489 = vmatpush.bf16.msra.mxu0 0
      %1490 = vmatpush.bf16.msra.mxu0 0
      %1491 = vmatpush.bf16.msra.mxu0 0
      %1492 = vmatpush.bf16.msra.mxu0 0
      %1493 = vmatpush.bf16.msra.mxu0 0
      %1494 = vmatpush.bf16.msra.mxu0 0
      %1495 = vmatpush.bf16.msra.mxu0 %v1117
      %1496 = vmatmul.bf16.gmra.mxu0 %v1274
      %v1497 = vpop.f32.mrf.mxu0
      %v1498 = vadd.f32 %v1479, %v1497
      %v1499 = vpop.f32.mrf.mxu0
      %v1500 = vadd.f32 %v1481, %v1499
      %1501 = vmatmul.bf16.gmra.mxu0 %v1277
      %v1502 = vpop.f32.mrf.mxu0
      %v1503 = vadd.f32 %v1484, %v1502
      %v1504 = vpop.f32.mrf.mxu0
      %v1505 = vadd.f32 %v1486, %v1504
      %1506 = vdwg.mxu0
      %1507 = vmatpush.bf16.msra.mxu0 %v1102
      %1508 = vmatpush.bf16.msra.mxu0 %v1086
      %1509 = vmatpush.bf16.msra.mxu0 %v1070
      %1510 = vmatpush.bf16.msra.mxu0 %v1054
      %1511 = vmatpush.bf16.msra.mxu0 %v1038
      %1512 = vmatpush.bf16.msra.mxu0 %v1022
      %1513 = vmatpush.bf16.msra.mxu0 %v1006
      %1514 = vmatpush.bf16.msra.mxu0 %v990
      %1515 = vmatmul.bf16.gmra.mxu0 %v546
      %v1516 = vpop.f32.mrf.mxu0
      %v1517 = vadd.f32 %v517, %v1516
      %v1518 = vpop.f32.mrf.mxu0
      %v1519 = vadd.f32 %v522, %v1518
      %1520 = vmatmul.bf16.gmra.mxu0 %v548
      %v1521 = vpop.f32.mrf.mxu0
      %v1522 = vadd.f32 %v527, %v1521
      %v1523 = vpop.f32.mrf.mxu0
      %v1524 = vadd.f32 %v532, %v1523
      %1525 = vdwg.mxu0
      %1526 = vmatpush.bf16.msra.mxu0 0
      %1527 = vmatpush.bf16.msra.mxu0 0
      %1528 = vmatpush.bf16.msra.mxu0 0
      %1529 = vmatpush.bf16.msra.mxu0 0
      %1530 = vmatpush.bf16.msra.mxu0 0
      %1531 = vmatpush.bf16.msra.mxu0 0
      %1532 = vmatpush.bf16.msra.mxu0 0
      %1533 = vmatpush.bf16.msra.mxu0 %v1118
      %1534 = vmatmul.bf16.gmra.mxu0 %v1274
      %v1535 = vpop.f32.mrf.mxu0
      %v1536 = vadd.f32 %v1517, %v1535
      %v1537 = vpop.f32.mrf.mxu0
      %v1538 = vadd.f32 %v1519, %v1537
      %1539 = vmatmul.bf16.gmra.mxu0 %v1277
      %v1540 = vpop.f32.mrf.mxu0
      %v1541 = vadd.f32 %v1522, %v1540
      %v1542 = vpop.f32.mrf.mxu0
      %v1543 = vadd.f32 %v1524, %v1542
      %1544 = vdwg.mxu0
      %1545 = vmatpush.bf16.msra.mxu0 %v1103
      %1546 = vmatpush.bf16.msra.mxu0 %v1087
      %1547 = vmatpush.bf16.msra.mxu0 %v1071
      %1548 = vmatpush.bf16.msra.mxu0 %v1055
      %1549 = vmatpush.bf16.msra.mxu0 %v1039
      %1550 = vmatpush.bf16.msra.mxu0 %v1023
      %1551 = vmatpush.bf16.msra.mxu0 %v1007
      %1552 = vmatpush.bf16.msra.mxu0 %v991
      %1553 = vmatmul.bf16.gmra.mxu0 %v546
      %v1554 = vpop.f32.mrf.mxu0
      %v1555 = vadd.f32 %v517, %v1554
      %v1556 = vpop.f32.mrf.mxu0
      %v1557 = vadd.f32 %v522, %v1556
      %1558 = vmatmul.bf16.gmra.mxu0 %v548
      %v1559 = vpop.f32.mrf.mxu0
      %v1560 = vadd.f32 %v527, %v1559
      %v1561 = vpop.f32.mrf.mxu0
      %v1562 = vadd.f32 %v532, %v1561
      %1563 = vdwg.mxu0
      %1564 = vmatpush.bf16.msra.mxu0 0
      %1565 = vmatpush.bf16.msra.mxu0 0
      %1566 = vmatpush.bf16.msra.mxu0 0
      %1567 = vmatpush.bf16.msra.mxu0 0
      %1568 = vmatpush.bf16.msra.mxu0 0
      %1569 = vmatpush.bf16.msra.mxu0 0
      %1570 = vmatpush.bf16.msra.mxu0 0
      %1571 = vmatpush.bf16.msra.mxu0 %v1119
      %1572 = vmatmul.bf16.gmra.mxu0 %v1274
      %v1573 = vpop.f32.mrf.mxu0
      %v1574 = vadd.f32 %v1555, %v1573
      %v1575 = vpop.f32.mrf.mxu0
      %v1576 = vadd.f32 %v1557, %v1575
      %1577 = vmatmul.bf16.gmra.mxu0 %v1277
      %v1578 = vpop.f32.mrf.mxu0
      %v1579 = vadd.f32 %v1560, %v1578
      %v1580 = vpop.f32.mrf.mxu0
      %v1581 = vadd.f32 %v1562, %v1580
      %1582 = vdwg.mxu0
      %1583 = vmatpush.bf16.msra.mxu0 %v1104
      %1584 = vmatpush.bf16.msra.mxu0 %v1088
      %1585 = vmatpush.bf16.msra.mxu0 %v1072
      %1586 = vmatpush.bf16.msra.mxu0 %v1056
      %1587 = vmatpush.bf16.msra.mxu0 %v1040
      %1588 = vmatpush.bf16.msra.mxu0 %v1024
      %1589 = vmatpush.bf16.msra.mxu0 %v1008
      %1590 = vmatpush.bf16.msra.mxu0 %v992
      %1591 = vmatmul.bf16.gmra.mxu0 %v546
      %v1592 = vpop.f32.mrf.mxu0
      %v1593 = vadd.f32 %v517, %v1592
      %v1594 = vpop.f32.mrf.mxu0
      %v1595 = vadd.f32 %v522, %v1594
      %1596 = vmatmul.bf16.gmra.mxu0 %v548
      %v1597 = vpop.f32.mrf.mxu0
      %v1598 = vadd.f32 %v527, %v1597
      %v1599 = vpop.f32.mrf.mxu0
      %v1600 = vadd.f32 %v532, %v1599
      %1601 = vdwg.mxu0
      %1602 = vmatpush.bf16.msra.mxu0 0
      %1603 = vmatpush.bf16.msra.mxu0 0
      %1604 = vmatpush.bf16.msra.mxu0 0
      %1605 = vmatpush.bf16.msra.mxu0 0
      %1606 = vmatpush.bf16.msra.mxu0 0
      %1607 = vmatpush.bf16.msra.mxu0 0
      %1608 = vmatpush.bf16.msra.mxu0 0
      %1609 = vmatpush.bf16.msra.mxu0 %v1120
      %1610 = vmatmul.bf16.gmra.mxu0 %v1274
      %v1611 = vpop.f32.mrf.mxu0
      %v1612 = vadd.f32 %v1593, %v1611
      %v1613 = vpop.f32.mrf.mxu0
      %v1614 = vadd.f32 %v1595, %v1613
      %1615 = vmatmul.bf16.gmra.mxu0 %v1277
      %v1616 = vpop.f32.mrf.mxu0
      %v1617 = vadd.f32 %v1598, %v1616
      %v1618 = vpop.f32.mrf.mxu0
      %v1619 = vadd.f32 %v1600, %v1618
      %1620 = vdwg.mxu0
      %1621 = vmatpush.bf16.msra.mxu0 %v1105
      %1622 = vmatpush.bf16.msra.mxu0 %v1089
      %1623 = vmatpush.bf16.msra.mxu0 %v1073
      %1624 = vmatpush.bf16.msra.mxu0 %v1057
      %1625 = vmatpush.bf16.msra.mxu0 %v1041
      %1626 = vmatpush.bf16.msra.mxu0 %v1025
      %1627 = vmatpush.bf16.msra.mxu0 %v1009
      %1628 = vmatpush.bf16.msra.mxu0 %v993
      %1629 = vmatmul.bf16.gmra.mxu0 %v546
      %v1630 = vpop.f32.mrf.mxu0
      %v1631 = vadd.f32 %v517, %v1630
      %v1632 = vpop.f32.mrf.mxu0
      %v1633 = vadd.f32 %v522, %v1632
      %1634 = vmatmul.bf16.gmra.mxu0 %v548
      %v1635 = vpop.f32.mrf.mxu0
      %v1636 = vadd.f32 %v527, %v1635
      %v1637 = vpop.f32.mrf.mxu0
      %v1638 = vadd.f32 %v532, %v1637
      %1639 = vdwg.mxu0
      %1640 = vmatpush.bf16.msra.mxu0 0
      %1641 = vmatpush.bf16.msra.mxu0 0
      %1642 = vmatpush.bf16.msra.mxu0 0
      %1643 = vmatpush.bf16.msra.mxu0 0
      %1644 = vmatpush.bf16.msra.mxu0 0
      %1645 = vmatpush.bf16.msra.mxu0 0
      %1646 = vmatpush.bf16.msra.mxu0 0
      %1647 = vmatpush.bf16.msra.mxu0 %v1121
      %1648 = vmatmul.bf16.gmra.mxu0 %v1274
      %v1649 = vpop.f32.mrf.mxu0
      %v1650 = vadd.f32 %v1631, %v1649
      %v1651 = vpop.f32.mrf.mxu0
      %v1652 = vadd.f32 %v1633, %v1651
      %1653 = vmatmul.bf16.gmra.mxu0 %v1277
      %v1654 = vpop.f32.mrf.mxu0
      %v1655 = vadd.f32 %v1636, %v1654
      %v1656 = vpop.f32.mrf.mxu0
      %v1657 = vadd.f32 %v1638, %v1656
      %1658 = vdwg.mxu0
      %1659 = vmatpush.bf16.msra.mxu0 %v1106
      %1660 = vmatpush.bf16.msra.mxu0 %v1090
      %1661 = vmatpush.bf16.msra.mxu0 %v1074
      %1662 = vmatpush.bf16.msra.mxu0 %v1058
      %1663 = vmatpush.bf16.msra.mxu0 %v1042
      %1664 = vmatpush.bf16.msra.mxu0 %v1026
      %1665 = vmatpush.bf16.msra.mxu0 %v1010
      %1666 = vmatpush.bf16.msra.mxu0 %v994
      %1667 = vmatmul.bf16.gmra.mxu0 %v546
      %v1668 = vpop.f32.mrf.mxu0
      %v1669 = vadd.f32 %v517, %v1668
      %v1670 = vpop.f32.mrf.mxu0
      %v1671 = vadd.f32 %v522, %v1670
      %1672 = vmatmul.bf16.gmra.mxu0 %v548
      %v1673 = vpop.f32.mrf.mxu0
      %v1674 = vadd.f32 %v527, %v1673
      %v1675 = vpop.f32.mrf.mxu0
      %v1676 = vadd.f32 %v532, %v1675
      %1677 = vdwg.mxu0
      %1678 = vmatpush.bf16.msra.mxu0 0
      %1679 = vmatpush.bf16.msra.mxu0 0
      %1680 = vmatpush.bf16.msra.mxu0 0
      %1681 = vmatpush.bf16.msra.mxu0 0
      %1682 = vmatpush.bf16.msra.mxu0 0
      %1683 = vmatpush.bf16.msra.mxu0 0
      %1684 = vmatpush.bf16.msra.mxu0 0
      %1685 = vmatpush.bf16.msra.mxu0 %v1122
      %1686 = vmatmul.bf16.gmra.mxu0 %v1274
      %v1687 = vpop.f32.mrf.mxu0
      %v1688 = vadd.f32 %v1669, %v1687
      %v1689 = vpop.f32.mrf.mxu0
      %v1690 = vadd.f32 %v1671, %v1689
      %1691 = vmatmul.bf16.gmra.mxu0 %v1277
      %v1692 = vpop.f32.mrf.mxu0
      %v1693 = vadd.f32 %v1674, %v1692
      %v1694 = vpop.f32.mrf.mxu0
      %v1695 = vadd.f32 %v1676, %v1694
      %1696 = vdwg.mxu0
      %1697 = vmatpush.bf16.msra.mxu0 %v1107
      %1698 = vmatpush.bf16.msra.mxu0 %v1091
      %1699 = vmatpush.bf16.msra.mxu0 %v1075
      %1700 = vmatpush.bf16.msra.mxu0 %v1059
      %1701 = vmatpush.bf16.msra.mxu0 %v1043
      %1702 = vmatpush.bf16.msra.mxu0 %v1027
      %1703 = vmatpush.bf16.msra.mxu0 %v1011
      %1704 = vmatpush.bf16.msra.mxu0 %v995
      %1705 = vmatmul.bf16.gmra.mxu0 %v546
      %v1706 = vpop.f32.mrf.mxu0
      %v1707 = vadd.f32 %v517, %v1706
      %v1708 = vpop.f32.mrf.mxu0
      %v1709 = vadd.f32 %v522, %v1708
      %1710 = vmatmul.bf16.gmra.mxu0 %v548
      %v1711 = vpop.f32.mrf.mxu0
      %v1712 = vadd.f32 %v527, %v1711
      %v1713 = vpop.f32.mrf.mxu0
      %v1714 = vadd.f32 %v532, %v1713
      %1715 = vdwg.mxu0
      %1716 = vmatpush.bf16.msra.mxu0 0
      %1717 = vmatpush.bf16.msra.mxu0 0
      %1718 = vmatpush.bf16.msra.mxu0 0
      %1719 = vmatpush.bf16.msra.mxu0 0
      %1720 = vmatpush.bf16.msra.mxu0 0
      %1721 = vmatpush.bf16.msra.mxu0 0
      %1722 = vmatpush.bf16.msra.mxu0 0
      %1723 = vmatpush.bf16.msra.mxu0 %v1123
      %1724 = vmatmul.bf16.gmra.mxu0 %v1274
      %v1725 = vpop.f32.mrf.mxu0
      %v1726 = vadd.f32 %v1707, %v1725
      %v1727 = vpop.f32.mrf.mxu0
      %v1728 = vadd.f32 %v1709, %v1727
      %1729 = vmatmul.bf16.gmra.mxu0 %v1277
      %v1730 = vpop.f32.mrf.mxu0
      %v1731 = vadd.f32 %v1712, %v1730
      %v1732 = vpop.f32.mrf.mxu0
      %v1733 = vadd.f32 %v1714, %v1732
      %1734 = vdwg.mxu0
      %1735 = vmatpush.bf16.msra.mxu0 %v1108
      %1736 = vmatpush.bf16.msra.mxu0 %v1092
      %1737 = vmatpush.bf16.msra.mxu0 %v1076
      %1738 = vmatpush.bf16.msra.mxu0 %v1060
      %1739 = vmatpush.bf16.msra.mxu0 %v1044
      %1740 = vmatpush.bf16.msra.mxu0 %v1028
      %1741 = vmatpush.bf16.msra.mxu0 %v1012
      %1742 = vmatpush.bf16.msra.mxu0 %v996
      %1743 = vmatmul.bf16.gmra.mxu0 %v546
      %v1744 = vpop.f32.mrf.mxu0
      %v1745 = vadd.f32 %v517, %v1744
      %v1746 = vpop.f32.mrf.mxu0
      %v1747 = vadd.f32 %v522, %v1746
      %1748 = vmatmul.bf16.gmra.mxu0 %v548
      %v1749 = vpop.f32.mrf.mxu0
      %v1750 = vadd.f32 %v527, %v1749
      %v1751 = vpop.f32.mrf.mxu0
      %v1752 = vadd.f32 %v532, %v1751
      %1753 = vdwg.mxu0
      %1754 = vmatpush.bf16.msra.mxu0 0
      %1755 = vmatpush.bf16.msra.mxu0 0
      %1756 = vmatpush.bf16.msra.mxu0 0
      %1757 = vmatpush.bf16.msra.mxu0 0
      %1758 = vmatpush.bf16.msra.mxu0 0
      %1759 = vmatpush.bf16.msra.mxu0 0
      %1760 = vmatpush.bf16.msra.mxu0 0
      %1761 = vmatpush.bf16.msra.mxu0 %v1124
      %1762 = vmatmul.bf16.gmra.mxu0 %v1274
      %v1763 = vpop.f32.mrf.mxu0
      %v1764 = vadd.f32 %v1745, %v1763
      %v1765 = vpop.f32.mrf.mxu0
      %v1766 = vadd.f32 %v1747, %v1765
      %1767 = vmatmul.bf16.gmra.mxu0 %v1277
      %v1768 = vpop.f32.mrf.mxu0
      %v1769 = vadd.f32 %v1750, %v1768
      %v1770 = vpop.f32.mrf.mxu0
      %v1771 = vadd.f32 %v1752, %v1770
      %1772 = vdwg.mxu0
      %1773 = vmatpush.bf16.msra.mxu0 %v1109
      %1774 = vmatpush.bf16.msra.mxu0 %v1093
      %1775 = vmatpush.bf16.msra.mxu0 %v1077
      %1776 = vmatpush.bf16.msra.mxu0 %v1061
      %1777 = vmatpush.bf16.msra.mxu0 %v1045
      %1778 = vmatpush.bf16.msra.mxu0 %v1029
      %1779 = vmatpush.bf16.msra.mxu0 %v1013
      %1780 = vmatpush.bf16.msra.mxu0 %v997
      %1781 = vmatmul.bf16.gmra.mxu0 %v546
      %v1782 = vpop.f32.mrf.mxu0
      %v1783 = vadd.f32 %v517, %v1782
      %v1784 = vpop.f32.mrf.mxu0
      %v1785 = vadd.f32 %v522, %v1784
      %1786 = vmatmul.bf16.gmra.mxu0 %v548
      %v1787 = vpop.f32.mrf.mxu0
      %v1788 = vadd.f32 %v527, %v1787
      %v1789 = vpop.f32.mrf.mxu0
      %v1790 = vadd.f32 %v532, %v1789
      %1791 = vdwg.mxu0
      %1792 = vmatpush.bf16.msra.mxu0 0
      %1793 = vmatpush.bf16.msra.mxu0 0
      %1794 = vmatpush.bf16.msra.mxu0 0
      %1795 = vmatpush.bf16.msra.mxu0 0
      %1796 = vmatpush.bf16.msra.mxu0 0
      %1797 = vmatpush.bf16.msra.mxu0 0
      %1798 = vmatpush.bf16.msra.mxu0 0
      %1799 = vmatpush.bf16.msra.mxu0 %v1125
      %1800 = vmatmul.bf16.gmra.mxu0 %v1274
      %v1801 = vpop.f32.mrf.mxu0
      %v1802 = vadd.f32 %v1783, %v1801
      %v1803 = vpop.f32.mrf.mxu0
      %v1804 = vadd.f32 %v1785, %v1803
      %1805 = vmatmul.bf16.gmra.mxu0 %v1277
      %v1806 = vpop.f32.mrf.mxu0
      %v1807 = vadd.f32 %v1788, %v1806
      %v1808 = vpop.f32.mrf.mxu0
      %v1809 = vadd.f32 %v1790, %v1808
      %1810 = vdwg.mxu0
      %1811 = vmatpush.bf16.msra.mxu0 %v1110
      %1812 = vmatpush.bf16.msra.mxu0 %v1094
      %1813 = vmatpush.bf16.msra.mxu0 %v1078
      %1814 = vmatpush.bf16.msra.mxu0 %v1062
      %1815 = vmatpush.bf16.msra.mxu0 %v1046
      %1816 = vmatpush.bf16.msra.mxu0 %v1030
      %1817 = vmatpush.bf16.msra.mxu0 %v1014
      %1818 = vmatpush.bf16.msra.mxu0 %v998
      %1819 = vmatmul.bf16.gmra.mxu0 %v546
      %v1820 = vpop.f32.mrf.mxu0
      %v1821 = vadd.f32 %v517, %v1820
      %v1822 = vpop.f32.mrf.mxu0
      %v1823 = vadd.f32 %v522, %v1822
      %1824 = vmatmul.bf16.gmra.mxu0 %v548
      %v1825 = vpop.f32.mrf.mxu0
      %v1826 = vadd.f32 %v527, %v1825
      %v1827 = vpop.f32.mrf.mxu0
      %v1828 = vadd.f32 %v532, %v1827
      %1829 = vdwg.mxu0
      %1830 = vmatpush.bf16.msra.mxu0 0
      %1831 = vmatpush.bf16.msra.mxu0 0
      %1832 = vmatpush.bf16.msra.mxu0 0
      %1833 = vmatpush.bf16.msra.mxu0 0
      %1834 = vmatpush.bf16.msra.mxu0 0
      %1835 = vmatpush.bf16.msra.mxu0 0
      %1836 = vmatpush.bf16.msra.mxu0 0
      %1837 = vmatpush.bf16.msra.mxu0 %v1126
      %1838 = vmatmul.bf16.gmra.mxu0 %v1274
      %v1839 = vpop.f32.mrf.mxu0
      %v1840 = vadd.f32 %v1821, %v1839
      %v1841 = vpop.f32.mrf.mxu0
      %v1842 = vadd.f32 %v1823, %v1841
      %1843 = vmatmul.bf16.gmra.mxu0 %v1277
      %v1844 = vpop.f32.mrf.mxu0
      %v1845 = vadd.f32 %v1826, %v1844
      %v1846 = vpop.f32.mrf.mxu0
      %v1847 = vadd.f32 %v1828, %v1846
      %1848 = vdwg.mxu0
      %1849 = vmatpush.bf16.msra.mxu0 %v1111
      %1850 = vmatpush.bf16.msra.mxu0 %v1095
      %1851 = vmatpush.bf16.msra.mxu0 %v1079
      %1852 = vmatpush.bf16.msra.mxu0 %v1063
      %1853 = vmatpush.bf16.msra.mxu0 %v1047
      %1854 = vmatpush.bf16.msra.mxu0 %v1031
      %1855 = vmatpush.bf16.msra.mxu0 %v1015
      %1856 = vmatpush.bf16.msra.mxu0 %v999
      %1857 = vmatmul.bf16.gmra.mxu0 %v546
      %v1858 = vpop.f32.mrf.mxu0
      %v1859 = vadd.f32 %v517, %v1858
      %v1860 = vpop.f32.mrf.mxu0
      %v1861 = vadd.f32 %v522, %v1860
      %1862 = vmatmul.bf16.gmra.mxu0 %v548
      %v1863 = vpop.f32.mrf.mxu0
      %v1864 = vadd.f32 %v527, %v1863
      %v1865 = vpop.f32.mrf.mxu0
      %v1866 = vadd.f32 %v532, %v1865
      %1867 = vdwg.mxu0
      %1868 = vmatpush.bf16.msra.mxu0 0
      %1869 = vmatpush.bf16.msra.mxu0 0
      %1870 = vmatpush.bf16.msra.mxu0 0
      %1871 = vmatpush.bf16.msra.mxu0 0
      %1872 = vmatpush.bf16.msra.mxu0 0
      %1873 = vmatpush.bf16.msra.mxu0 0
      %1874 = vmatpush.bf16.msra.mxu0 0
      %1875 = vmatpush.bf16.msra.mxu0 %v1127
      %1876 = vmatmul.bf16.gmra.mxu0 %v1274
      %v1877 = vpop.f32.mrf.mxu0
      %v1878 = vadd.f32 %v1859, %v1877
      %v1879 = vpop.f32.mrf.mxu0
      %v1880 = vadd.f32 %v1861, %v1879
      %1881 = vmatmul.bf16.gmra.mxu0 %v1277
      %v1882 = vpop.f32.mrf.mxu0
      %v1883 = vadd.f32 %v1864, %v1882
      %v1884 = vpop.f32.mrf.mxu0
      %v1885 = vadd.f32 %v1866, %v1884
      %1886 = vdwg.mxu0
      %v1887 = vmax.f32 %v1308, 0.0
      %v1888 = vmax.f32 %v1346, 0.0
      %v1889 = vmax.f32 %v1384, 0.0
      %v1890 = vmax.f32 %v1422, 0.0
      %v1891 = vmax.f32 %v1460, 0.0
      %v1892 = vmax.f32 %v1498, 0.0
      %v1893 = vmax.f32 %v1536, 0.0
      %v1894 = vmax.f32 %v1574, 0.0
      %v1895 = vmax.f32 %v1612, 0.0
      %v1896 = vmax.f32 %v1650, 0.0
      %v1897 = vmax.f32 %v1688, 0.0
      %v1898 = vmax.f32 %v1726, 0.0
      %v1899 = vmax.f32 %v1764, 0.0
      %v1900 = vmax.f32 %v1802, 0.0
      %v1901 = vmax.f32 %v1840, 0.0
      %v1902 = vmax.f32 %v1878, 0.0
      %v1903 = vmax.f32 %v1310, 0.0
      %v1904 = vmax.f32 %v1348, 0.0
      %v1905 = vmax.f32 %v1386, 0.0
      %v1906 = vmax.f32 %v1424, 0.0
      %v1907 = vmax.f32 %v1462, 0.0
      %v1908 = vmax.f32 %v1500, 0.0
      %v1909 = vmax.f32 %v1538, 0.0
      %v1910 = vmax.f32 %v1576, 0.0
      %v1911 = vmax.f32 %v1614, 0.0
      %v1912 = vmax.f32 %v1652, 0.0
      %v1913 = vmax.f32 %v1690, 0.0
      %v1914 = vmax.f32 %v1728, 0.0
      %v1915 = vmax.f32 %v1766, 0.0
      %v1916 = vmax.f32 %v1804, 0.0
      %v1917 = vmax.f32 %v1842, 0.0
      %v1918 = vmax.f32 %v1880, 0.0
      %v1919 = vmax.f32 %v1313, 0.0
      %v1920 = vmax.f32 %v1351, 0.0
      %v1921 = vmax.f32 %v1389, 0.0
      %v1922 = vmax.f32 %v1427, 0.0
      %v1923 = vmax.f32 %v1465, 0.0
      %v1924 = vmax.f32 %v1503, 0.0
      %v1925 = vmax.f32 %v1541, 0.0
      %v1926 = vmax.f32 %v1579, 0.0
      %v1927 = vmax.f32 %v1617, 0.0
      %v1928 = vmax.f32 %v1655, 0.0
      %v1929 = vmax.f32 %v1693, 0.0
      %v1930 = vmax.f32 %v1731, 0.0
      %v1931 = vmax.f32 %v1769, 0.0
      %v1932 = vmax.f32 %v1807, 0.0
      %v1933 = vmax.f32 %v1845, 0.0
      %v1934 = vmax.f32 %v1883, 0.0
      %v1935 = vmax.f32 %v1315, 0.0
      %v1936 = vmax.f32 %v1353, 0.0
      %v1937 = vmax.f32 %v1391, 0.0
      %v1938 = vmax.f32 %v1429, 0.0
      %v1939 = vmax.f32 %v1467, 0.0
      %v1940 = vmax.f32 %v1505, 0.0
      %v1941 = vmax.f32 %v1543, 0.0
      %v1942 = vmax.f32 %v1581, 0.0
      %v1943 = vmax.f32 %v1619, 0.0
      %v1944 = vmax.f32 %v1657, 0.0
      %v1945 = vmax.f32 %v1695, 0.0
      %v1946 = vmax.f32 %v1733, 0.0
      %v1947 = vmax.f32 %v1771, 0.0
      %v1948 = vmax.f32 %v1809, 0.0
      %v1949 = vmax.f32 %v1847, 0.0
      %v1950 = vmax.f32 %v1885, 0.0
      %v1951 = vmax.f32 %v1887, %v1891
      %v1952 = vmax.f32 %v1888, %v1892
      %v1953 = vmax.f32 %v1889, %v1893
      %v1954 = vmax.f32 %v1890, %v1894
      %v1955 = vmax.f32 %v1903, %v1907
      %v1956 = vmax.f32 %v1904, %v1908
      %v1957 = vmax.f32 %v1905, %v1909
      %v1958 = vmax.f32 %v1906, %v1910
      %v1959 = vmax.f32 %v1919, %v1923
      %v1960 = vmax.f32 %v1920, %v1924
      %v1961 = vmax.f32 %v1921, %v1925
      %v1962 = vmax.f32 %v1922, %v1926
      %v1963 = vmax.f32 %v1935, %v1939
      %v1964 = vmax.f32 %v1936, %v1940
      %v1965 = vmax.f32 %v1937, %v1941
      %v1966 = vmax.f32 %v1938, %v1942
      %v1968 = vperm.slane %v511, 0
      %v1969 = vperm.slane %v511, 1
      %v1970 = vperm.slane %v511, 2
      %v1971 = vperm.slane %v511, 3
      %v1976 = vmul.f32 %v1894, %v1968
      %v1977 = vmul.f32 %v1891, %v1969
      %v1978 = vmul.f32 %v1892, %v1970
      %v1979 = vmul.f32 %v1893, %v1971
      %v1980 = vmul.f32 %v1910, %v1968
      %v1981 = vmul.f32 %v1907, %v1969
      %v1982 = vmul.f32 %v1908, %v1970
      %v1983 = vmul.f32 %v1909, %v1971
      %v1984 = vmul.f32 %v1926, %v1968
      %v1985 = vmul.f32 %v1923, %v1969
      %v1986 = vmul.f32 %v1924, %v1970
      %v1987 = vmul.f32 %v1925, %v1971
      %v1988 = vmul.f32 %v1942, %v1968
      %v1989 = vmul.f32 %v1939, %v1969
      %v1990 = vmul.f32 %v1940, %v1970
      %v1991 = vmul.f32 %v1941, %v1971
      %v1992 = vmax.f32 %v1951, %v1976
      %v1993 = vmax.f32 %v1952, %v1977
      %v1994 = vmax.f32 %v1953, %v1978
      %v1995 = vmax.f32 %v1954, %v1979
      %v1996 = vmax.f32 %v1955, %v1980
      %v1997 = vmax.f32 %v1956, %v1981
      %v1998 = vmax.f32 %v1957, %v1982
      %v1999 = vmax.f32 %v1958, %v1983
      %v2000 = vmax.f32 %v1959, %v1984
      %v2001 = vmax.f32 %v1960, %v1985
      %v2002 = vmax.f32 %v1961, %v1986
      %v2003 = vmax.f32 %v1962, %v1987
      %v2004 = vmax.f32 %v1963, %v1988
      %v2005 = vmax.f32 %v1964, %v1989
      %v2006 = vmax.f32 %v1965, %v1990
      %v2007 = vmax.f32 %v1966, %v1991
      %v2008 = vmax.f32 %v1895, %v1899
      %v2009 = vmax.f32 %v1896, %v1900
      %v2010 = vmax.f32 %v1897, %v1901
      %v2011 = vmax.f32 %v1898, %v1902
      %v2012 = vmax.f32 %v1911, %v1915
      %v2013 = vmax.f32 %v1912, %v1916
      %v2014 = vmax.f32 %v1913, %v1917
      %v2015 = vmax.f32 %v1914, %v1918
      %v2016 = vmax.f32 %v1927, %v1931
      %v2017 = vmax.f32 %v1928, %v1932
      %v2018 = vmax.f32 %v1929, %v1933
      %v2019 = vmax.f32 %v1930, %v1934
      %v2020 = vmax.f32 %v1943, %v1947
      %v2021 = vmax.f32 %v1944, %v1948
      %v2022 = vmax.f32 %v1945, %v1949
      %v2023 = vmax.f32 %v1946, %v1950
      %v2024 = vmul.f32 %v1902, %v1968
      %v2025 = vmul.f32 %v1899, %v1969
      %v2026 = vmul.f32 %v1900, %v1970
      %v2027 = vmul.f32 %v1901, %v1971
      %v2028 = vmul.f32 %v1918, %v1968
      %v2029 = vmul.f32 %v1915, %v1969
      %v2030 = vmul.f32 %v1916, %v1970
      %v2031 = vmul.f32 %v1917, %v1971
      %v2032 = vmul.f32 %v1934, %v1968
      %v2033 = vmul.f32 %v1931, %v1969
      %v2034 = vmul.f32 %v1932, %v1970
      %v2035 = vmul.f32 %v1933, %v1971
      %v2036 = vmul.f32 %v1950, %v1968
      %v2037 = vmul.f32 %v1947, %v1969
      %v2038 = vmul.f32 %v1948, %v1970
      %v2039 = vmul.f32 %v1949, %v1971
      %v2040 = vmax.f32 %v2008, %v2024
      %v2041 = vmax.f32 %v2009, %v2025
      %v2042 = vmax.f32 %v2010, %v2026
      %v2043 = vmax.f32 %v2011, %v2027
      %v2044 = vmax.f32 %v2012, %v2028
      %v2045 = vmax.f32 %v2013, %v2029
      %v2046 = vmax.f32 %v2014, %v2030
      %v2047 = vmax.f32 %v2015, %v2031
      %v2048 = vmax.f32 %v2016, %v2032
      %v2049 = vmax.f32 %v2017, %v2033
      %v2050 = vmax.f32 %v2018, %v2034
      %v2051 = vmax.f32 %v2019, %v2035
      %v2052 = vmax.f32 %v2020, %v2036
      %v2053 = vmax.f32 %v2021, %v2037
      %v2054 = vmax.f32 %v2022, %v2038
      %v2055 = vmax.f32 %v2023, %v2039
      %v2056 = vmax.f32 %v1992, %v2040
      %v2057 = vmax.f32 %v1993, %v2041
      %v2058 = vmax.f32 %v1994, %v2042
      %v2059 = vmax.f32 %v1995, %v2043
      %v2060 = vmax.f32 %v1996, %v2044
      %v2061 = vmax.f32 %v1997, %v2045
      %v2062 = vmax.f32 %v1998, %v2046
      %v2063 = vmax.f32 %v1999, %v2047
      %v2064 = vmax.f32 %v2000, %v2048
      %v2065 = vmax.f32 %v2001, %v2049
      %v2066 = vmax.f32 %v2002, %v2050
      %v2067 = vmax.f32 %v2003, %v2051
      %v2068 = vmax.f32 %v2004, %v2052
      %v2069 = vmax.f32 %v2005, %v2053
      %v2070 = vmax.f32 %v2006, %v2054
      %v2071 = vmax.f32 %v2007, %v2055
      %v2073 = vperm.slane %v513, 0
      %v2074 = vperm.slane %v513, 1
      %v2075 = vperm.slane %v513, 2
      %v2076 = vperm.slane %v513, 3
      %v2081 = vmul.f32 %v2042, %v2073
      %v2082 = vmul.f32 %v2043, %v2074
      %v2083 = vmul.f32 %v2040, %v2075
      %v2084 = vmul.f32 %v2041, %v2076
      %v2085 = vmul.f32 %v2046, %v2073
      %v2086 = vmul.f32 %v2047, %v2074
      %v2087 = vmul.f32 %v2044, %v2075
      %v2088 = vmul.f32 %v2045, %v2076
      %v2089 = vmul.f32 %v2050, %v2073
      %v2090 = vmul.f32 %v2051, %v2074
      %v2091 = vmul.f32 %v2048, %v2075
      %v2092 = vmul.f32 %v2049, %v2076
      %v2093 = vmul.f32 %v2054, %v2073
      %v2094 = vmul.f32 %v2055, %v2074
      %v2095 = vmul.f32 %v2052, %v2075
      %v2096 = vmul.f32 %v2053, %v2076
      %v2097 = vmax.f32 %v2056, %v2081
      %v2098 = vmax.f32 %v2057, %v2082
      %v2099 = vmax.f32 %v2058, %v2083
      %v2100 = vmax.f32 %v2059, %v2084
      %v2101 = vmax.f32 %v2060, %v2085
      %v2102 = vmax.f32 %v2061, %v2086
      %v2103 = vmax.f32 %v2062, %v2087
      %v2104 = vmax.f32 %v2063, %v2088
      %v2105 = vmax.f32 %v2064, %v2089
      %v2106 = vmax.f32 %v2065, %v2090
      %v2107 = vmax.f32 %v2066, %v2091
      %v2108 = vmax.f32 %v2067, %v2092
      %v2109 = vmax.f32 %v2068, %v2093
      %v2110 = vmax.f32 %v2069, %v2094
      %v2111 = vmax.f32 %v2070, %v2095
      %v2112 = vmax.f32 %v2071, %v2096
      %v2113 = vpack.c.bf16 %v2098, %v2097
      %v2114 = vpack.c.bf16 %v2100, %v2099
      %v2115 = vpack.c.bf16 %v2102, %v2101
      %v2116 = vpack.c.bf16 %v2104, %v2103
      %v2117 = vpack.c.bf16 %v2106, %v2105
      %v2118 = vpack.c.bf16 %v2108, %v2107
      %v2119 = vpack.c.bf16 %v2110, %v2109
      %v2120 = vpack.c.bf16 %v2112, %v2111
      %v2121 = vld [vmem:[%s4] sm:$0xf]
      %v2122 = vld [vmem:[%s4 + $0x4] sm:$0xf]
      %v2123 = vld [vmem:[%s4 + $0x8] sm:$0xf]
      %v2124 = vld [vmem:[%s4 + $0xc] sm:$0xf]
      %s2125 = scalar_lea.vmem %s4, 16
      %v2126 = vld [vmem:[%s2125] sm:$0xf]
      %v2127 = vld [vmem:[%s2125 + $0x4] sm:$0xf]
      %v2128 = vld [vmem:[%s2125 + $0x8] sm:$0xf]
      %v2129 = vld [vmem:[%s2125 + $0xc] sm:$0xf]
      %v2134 = vunpack.c.l.b16 %v2126
      %v2135 = vunpack.c.l.b16 %v2127
      %v2136 = vunpack.c.l.b16 %v2128
      %v2137 = vunpack.c.l.b16 %v2129
      %v2138 = vpack.c.b16 %v2135, %v2134
      %v2139 = vpack.c.b16 %v2137, %v2136
      %v2144 = vunpack.c.h.b16 %v2113
      %v2145 = vunpack.c.h.b16 %v2115
      %v2146 = vunpack.c.h.b16 %v2117
      %v2147 = vunpack.c.h.b16 %v2119
      %v2148 = vpack.c.b16 %v2145, %v2144
      %v2149 = vpack.c.b16 %v2147, %v2146
      %vm2152 = vcmask 261120
      %v2154 = vsel %vm2152, %v2138, 0
      %v2157 = vsel %vm2152, %v2139, 0
      %2159 = vmatpush.bf16.msra.mxu0 0
      %2160 = vmatpush.bf16.msra.mxu0 0
      %2161 = vmatpush.bf16.msra.mxu0 0
      %2162 = vmatpush.bf16.msra.mxu0 0
      %2163 = vmatpush.bf16.msra.mxu0 0
      %2164 = vmatpush.bf16.msra.mxu0 0
      %2165 = vmatpush.bf16.msra.mxu0 %v2149
      %2166 = vmatpush.bf16.msra.mxu0 %v2148
      %2167 = vmatmul.bf16.gmra.mxu0 %v2154
      %v2168 = vpop.f32.mrf.mxu0
      %v2169 = vadd.f32 0.0, %v2168
      %v2170 = vpop.f32.mrf.mxu0
      %v2171 = vadd.f32 0.0, %v2170
      %2172 = vmatmul.bf16.gmra.mxu0 %v2157
      %v2173 = vpop.f32.mrf.mxu0
      %v2174 = vadd.f32 0.0, %v2173
      %v2175 = vpop.f32.mrf.mxu0
      %v2176 = vadd.f32 0.0, %v2175
      %2177 = vdwg.mxu0
      %v2182 = vunpack.c.l.b16 %v2121
      %v2183 = vunpack.c.l.b16 %v2122
      %v2184 = vunpack.c.l.b16 %v2123
      %v2185 = vunpack.c.l.b16 %v2124
      %v2186 = vpack.c.b16 %v2183, %v2182
      %v2187 = vpack.c.b16 %v2185, %v2184
      %v2188 = vunpack.c.l.b16 %v2113
      %v2189 = vunpack.c.l.b16 %v2115
      %v2190 = vunpack.c.l.b16 %v2117
      %v2191 = vunpack.c.l.b16 %v2119
      %v2192 = vpack.c.b16 %v2189, %v2188
      %v2193 = vpack.c.b16 %v2191, %v2190
      %v2197 = vsel %vm2152, %v2186, 0
      %v2200 = vsel %vm2152, %v2187, 0
      %2202 = vmatpush.bf16.msra.mxu0 0
      %2203 = vmatpush.bf16.msra.mxu0 0
      %2204 = vmatpush.bf16.msra.mxu0 0
      %2205 = vmatpush.bf16.msra.mxu0 0
      %2206 = vmatpush.bf16.msra.mxu0 0
      %2207 = vmatpush.bf16.msra.mxu0 0
      %2208 = vmatpush.bf16.msra.mxu0 %v2193
      %2209 = vmatpush.bf16.msra.mxu0 %v2192
      %2210 = vmatmul.bf16.gmra.mxu0 %v2197
      %v2211 = vpop.f32.mrf.mxu0
      %v2212 = vadd.f32 %v2169, %v2211
      %v2213 = vpop.f32.mrf.mxu0
      %v2214 = vadd.f32 %v2171, %v2213
      %2215 = vmatmul.bf16.gmra.mxu0 %v2200
      %v2216 = vpop.f32.mrf.mxu0
      %v2217 = vadd.f32 %v2174, %v2216
      %v2218 = vpop.f32.mrf.mxu0
      %v2219 = vadd.f32 %v2176, %v2218
      %2220 = vdwg.mxu0
      %s2221 = scalar_lea.vmem %s4, 32
      %v2222 = vld [vmem:[%s2221] sm:$0xf]
      %v2223 = vld [vmem:[%s2221 + $0x4] sm:$0xf]
      %v2224 = vld [vmem:[%s2221 + $0x8] sm:$0xf]
      %v2225 = vld [vmem:[%s2221 + $0xc] sm:$0xf]
      %v2230 = vunpack.c.l.b16 %v2222
      %v2231 = vunpack.c.l.b16 %v2223
      %v2232 = vunpack.c.l.b16 %v2224
      %v2233 = vunpack.c.l.b16 %v2225
      %v2234 = vpack.c.b16 %v2231, %v2230
      %v2235 = vpack.c.b16 %v2233, %v2232
      %v2240 = vunpack.c.l.b16 %v2114
      %v2241 = vunpack.c.l.b16 %v2116
      %v2242 = vunpack.c.l.b16 %v2118
      %v2243 = vunpack.c.l.b16 %v2120
      %v2244 = vpack.c.b16 %v2241, %v2240
      %v2245 = vpack.c.b16 %v2243, %v2242
      %v2249 = vsel %vm2152, %v2234, 0
      %v2252 = vsel %vm2152, %v2235, 0
      %2254 = vmatpush.bf16.msra.mxu0 0
      %2255 = vmatpush.bf16.msra.mxu0 0
      %2256 = vmatpush.bf16.msra.mxu0 0
      %2257 = vmatpush.bf16.msra.mxu0 0
      %2258 = vmatpush.bf16.msra.mxu0 0
      %2259 = vmatpush.bf16.msra.mxu0 0
      %2260 = vmatpush.bf16.msra.mxu0 %v2245
      %2261 = vmatpush.bf16.msra.mxu0 %v2244
      %2262 = vmatmul.bf16.gmra.mxu0 %v2249
      %v2263 = vpop.f32.mrf.mxu0
      %v2264 = vadd.f32 0.0, %v2263
      %v2265 = vpop.f32.mrf.mxu0
      %v2266 = vadd.f32 0.0, %v2265
      %2267 = vmatmul.bf16.gmra.mxu0 %v2252
      %v2268 = vpop.f32.mrf.mxu0
      %v2269 = vadd.f32 0.0, %v2268
      %v2270 = vpop.f32.mrf.mxu0
      %v2271 = vadd.f32 0.0, %v2270
      %2272 = vdwg.mxu0
      %v2273 = vadd.f32 %v2212, %v2264
      %v2274 = vadd.f32 %v2214, %v2266
      %v2275 = vadd.f32 %v2217, %v2269
      %v2276 = vadd.f32 %v2219, %v2271
      %s2277 = scalar_lea.vmem %s4, 48
      %v2278 = vld [vmem:[%s2277] sm:$0xf]
      %v2279 = vld [vmem:[%s2277 + $0x4] sm:$0xf]
      %v2280 = vld [vmem:[%s2277 + $0x8] sm:$0xf]
      %v2281 = vld [vmem:[%s2277 + $0xc] sm:$0xf]
      %v2286 = vunpack.c.l.b16 %v2278
      %v2287 = vunpack.c.l.b16 %v2279
      %v2288 = vunpack.c.l.b16 %v2280
      %v2289 = vunpack.c.l.b16 %v2281
      %v2290 = vpack.c.b16 %v2287, %v2286
      %v2291 = vpack.c.b16 %v2289, %v2288
      %v2292 = vunpack.c.h.b16 %v2114
      %v2293 = vunpack.c.h.b16 %v2116
      %v2294 = vunpack.c.h.b16 %v2118
      %v2295 = vunpack.c.h.b16 %v2120
      %v2296 = vpack.c.b16 %v2293, %v2292
      %v2297 = vpack.c.b16 %v2295, %v2294
      %v2301 = vsel %vm2152, %v2290, 0
      %v2304 = vsel %vm2152, %v2291, 0
      %2306 = vmatpush.bf16.msra.mxu0 0
      %2307 = vmatpush.bf16.msra.mxu0 0
      %2308 = vmatpush.bf16.msra.mxu0 0
      %2309 = vmatpush.bf16.msra.mxu0 0
      %2310 = vmatpush.bf16.msra.mxu0 0
      %2311 = vmatpush.bf16.msra.mxu0 0
      %2312 = vmatpush.bf16.msra.mxu0 %v2297
      %2313 = vmatpush.bf16.msra.mxu0 %v2296
      %2314 = vmatmul.bf16.gmra.mxu0 %v2301
      %v2315 = vpop.f32.mrf.mxu0
      %v2316 = vadd.f32 0.0, %v2315
      %v2317 = vpop.f32.mrf.mxu0
      %v2318 = vadd.f32 0.0, %v2317
      %2319 = vmatmul.bf16.gmra.mxu0 %v2304
      %v2320 = vpop.f32.mrf.mxu0
      %v2321 = vadd.f32 0.0, %v2320
      %v2322 = vpop.f32.mrf.mxu0
      %v2323 = vadd.f32 0.0, %v2322
      %2324 = vdwg.mxu0
      %v2325 = vadd.f32 %v2273, %v2316
      %v2326 = vadd.f32 %v2274, %v2318
      %v2327 = vadd.f32 %v2275, %v2321
      %v2328 = vadd.f32 %v2276, %v2323
      %v2329 = vld [vmem:[%s5] sm:$0xff]
      %v2330 = vld [vmem:[%s5 + $0x8] sm:$0xff]
      %v2331 = vld [vmem:[%s5 + $0x10] sm:$0xff]
      %v2332 = vld [vmem:[%s5 + $0x18] sm:$0xff]
      %2334 = vset.pattern.permute.xlu0 0
      %2335 = vperm.xlu0 %2334, %v2329
      %v2336 = vpop.permute.xlu0 %2335
      %2339 = vset.pattern.permute.xlu0 0
      %2340 = vperm.xlu0 %2339, %v2330
      %v2341 = vpop.permute.xlu0 %2340
      %2344 = vset.pattern.permute.xlu0 0
      %2345 = vperm.xlu0 %2344, %v2331
      %v2346 = vpop.permute.xlu0 %2345
      %2349 = vset.pattern.permute.xlu0 0
      %2350 = vperm.xlu0 %2349, %v2332
      %v2351 = vpop.permute.xlu0 %2350
      %v2353 = vadd.f32 %v2325, %v2336
      %v2354 = vadd.f32 %v2326, %v2341
      %v2355 = vadd.f32 %v2327, %v2346
      %v2356 = vadd.f32 %v2328, %v2351
      %v2357 = vmax.f32 %v2353, 0.0
      %v2358 = vmax.f32 %v2354, 0.0
      %v2359 = vmax.f32 %v2355, 0.0
      %v2360 = vmax.f32 %v2356, 0.0
      %v2361 = vpack.c.bf16 %v2358, %v2357
      %v2362 = vpack.c.bf16 %v2360, %v2359
      %v2363 = vld [vmem:[%s6] sm:$0xf]
      %v2364 = vld [vmem:[%s7] sm:$0xff]
      %2366 = vset.pattern.permute.xlu0 0
      %2367 = vperm.xlu0 %2366, %v2364
      %v2368 = vpop.permute.xlu0 %2367
      %v2371 = vsel %vm2152, %v2363, 0
      %2373 = vmatpush.bf16.msra.mxu0 0
      %2374 = vmatpush.bf16.msra.mxu0 0
      %2375 = vmatpush.bf16.msra.mxu0 0
      %2376 = vmatpush.bf16.msra.mxu0 0
      %2377 = vmatpush.bf16.msra.mxu0 0
      %2378 = vmatpush.bf16.msra.mxu0 0
      %2379 = vmatpush.bf16.msra.mxu0 %v2362
      %2380 = vmatpush.bf16.msra.mxu0 %v2361
      %2381 = vmatmul.bf16.gmra.mxu0 %v2371
      %v2382 = vpop.f32.mrf.mxu0
      %v2383 = vadd.f32 %v2368, %v2382
      %v2384 = vpop.f32.mrf.mxu0
      %2385 = vdwg.mxu0
      %v2386 = vmax.f32 %v2383, 0.0
      %v2387 = vpack.c.bf16 %v2386, %v2386
      %v2388 = vld [vmem:[%s8] sm:$0x1]
      %v2389 = vld [vmem:[#allocation2] sm:$0x1]
      %2391 = vset.pattern.permute.xlu0 0
      %2392 = vperm.xlu0 %2391, %v2389
      %v2393 = vpop.permute.xlu0 %2392
      %v2395 = vperm.slane %v2393, 0
      %vm2396 = vcmask 64512
      %v2398 = vsel %vm2396, %v2388, 0
      %vm2400 = vcmask 1043456
      %v2402 = vsel %vm2400, %v2387, 0
      %2404 = vmatpush.bf16.msra.mxu0 0
      %2405 = vmatpush.bf16.msra.mxu0 0
      %2406 = vmatpush.bf16.msra.mxu0 0
      %2407 = vmatpush.bf16.msra.mxu0 0
      %2408 = vmatpush.bf16.msra.mxu0 0
      %2409 = vmatpush.bf16.msra.mxu0 0
      %2410 = vmatpush.bf16.msra.mxu0 0
      %2411 = vmatpush.bf16.msra.mxu0 %v2402
      %2412 = vmatmul.bf16.gmra.mxu0 %v2398
      %v2413 = vpop.f32.mrf.mxu0
      %v2414 = vadd.f32 %v2395, %v2413
      %v2415 = vpop.f32.mrf.mxu0
      %2416 = vdwg.mxu0
      %2417 = vst [vmem:[%s357] sm:$0x1] %v2414
      %p2418 = scmp.lt.s32.totalorder %s23, 1
      %s2419 = scalar_select %p2418, %s23, 1
      %s2420 = scalar_lea.vmem %s10, %s2419
      // Predicated region
      $region61: #{convnet_forward.5} parent=59 // pred_check
        %p2421 = pneg %p256
      $region62: #{convnet_forward.5} parent=59 // pred_check_branch
        %2423 = sbr.rel (%p2421) target = $region64
      $region63: #{convnet_forward.5} parent=59 // pred_region
        _
      $region64: #{convnet_forward.5} parent=59 // pred_fallthru
        _
    $region60: #{convnet_forward.5} parent=5 // pred_fallthru
      _
    %p2424 = scmp.le.s32.totalorder 2, %s18
    // Predicated region
    $region65: #{convnet_forward.5} parent=5 // pred_check
      %p2425 = pneg %p2424
    $region66: #{convnet_forward.5} parent=5 // pred_check_branch
      %2427 = sbr.rel (%p2425) target = $region68
    $region67: #{convnet_forward.5} parent=5 // pred_region
      %s2428 = ssub.s32 %s18, 2
      // Predicated region
      $region69: #{convnet_forward.5} parent=67 // pred_check
        %p2429 = pneg %p262
      $region70: #{convnet_forward.5} parent=67 // pred_check_branch
        %2431 = sbr.rel (%p2429) target = $region72
      $region71: #{convnet_forward.5} parent=67 // pred_region
        %p2432 = scmp.lt.s32.totalorder %s24, 1
        %s2433 = scalar_select %p2432, %s24, 1
        %s2434 = scalar_lea.vmem %s10, %s2433
      $region72: #{convnet_forward.5} parent=67 // pred_fallthru
        _
    $region68: #{convnet_forward.5} parent=5 // pred_fallthru
      _
  $region6: #{convnet_forward.5} parent=0 // loop_footer
    %s22 = sadd.s32 1, %s18
  $region7: #{convnet_forward.5} parent=0 // loop_footer_branch
    %17 = sbr.rel target = $region3
  $region8: #{convnet_forward.5} parent=0 // loop_exit
    _

</llo_original>
